<compile_context>
chip_gen: v7x
topology: tpu7x:2x2x1
jax: 0.10.0
libtpu: 0.0.40
codegen_flags: <defaults>
</compile_context>

<pallas_src>
import math
from functools import partial

import jax
import jax.numpy as jnp
from jax.experimental import pallas as pl
from jax.experimental.pallas import tpu as pltpu


def _default_vmem_limit():
    # v7x has only 64 MiB VMEM per TensorCore -> leave headroom; v5e/v6e have 128 MiB
    # -> raise the default scoped limit so larger tiles fit.
    try:
        cap = getattr(pltpu.get_tpu_info(), "vmem_capacity_bytes", None)
        if cap:
            return int(cap) * 3 // 4
    except Exception:
        pass
    return 48 * 1024 * 1024


VMEM_LIMIT = _default_vmem_limit()


def _pick_tile(n, target, align):
    """Largest divisor of n that is <= target and a multiple of `align`; else n (full)."""
    if n <= target:
        return n
    t = (target // align) * align
    while t >= align:
        if n % t == 0:
            return t
        t -= align
    return n


# ----------------------------- in-kernel helpers -----------------------------
def _layernorm(x, gamma, beta, eps=1e-5):
    mu = jnp.mean(x, axis=-1, keepdims=True)
    var = jnp.mean(jnp.square(x - mu), axis=-1, keepdims=True)
    return (x - mu) * jax.lax.rsqrt(var + eps) * gamma + beta


# --------------------- attention kernel 1: LN + QKV projection ---------------------
def _qkv_proj_kernel(x_ref, g_ref, b_ref, wqkv_ref, bqkv_ref, q_ref, k_ref, v_ref, *,
                     scale):
    x = x_ref[0].astype(jnp.float32)                       # (tS, D)
    D = x.shape[-1]
    h = _layernorm(x, g_ref[...], b_ref[...]).astype(jnp.bfloat16)
    qkv = jnp.dot(h, wqkv_ref[...], preferred_element_type=jnp.float32) + bqkv_ref[...]
    q_ref[0] = (qkv[:, :D] * scale).astype(q_ref.dtype)    # scale folded into q
    k_ref[0] = qkv[:, D:2 * D].astype(k_ref.dtype)
    v_ref[0] = qkv[:, 2 * D:].astype(v_ref.dtype)


# --------- attention kernel 2: flash-style MHA + out-proj + residual (unmasked) ---------
def _flash_attn_kernel(x_ref, q_ref, k_ref, v_ref, wo_ref, bo_ref, o_ref,
                       m_sc, l_sc, acc_sc, *, n_heads):
    ki = pl.program_id(2)

    @pl.when(ki == 0)
    def _():
        m_sc[...] = jnp.full_like(m_sc, -1e30)
        l_sc[...] = jnp.zeros_like(l_sc)
        acc_sc[...] = jnp.zeros_like(acc_sc)

    tq, D = q_ref.shape[1], q_ref.shape[2]
    tk = k_ref.shape[1]
    dh = D // n_heads

    # Heads batched into a single dot_general per step (no per-head Python loop).
    q = jnp.transpose(q_ref[0].reshape(tq, n_heads, dh), (1, 0, 2))   # (H, tq, dh) bf16
    k = jnp.transpose(k_ref[0].reshape(tk, n_heads, dh), (1, 0, 2))   # (H, tk, dh)
    v = jnp.transpose(v_ref[0].reshape(tk, n_heads, dh), (1, 0, 2))   # (H, tk, dh)

    s = jnp.einsum('hqd,hkd->hqk', q, k, preferred_element_type=jnp.float32)

    m_prev = m_sc[...]
    m_new = jnp.maximum(m_prev, jnp.max(s, axis=-1, keepdims=True))
    alpha = jnp.exp(m_prev - m_new)
    p = jnp.exp(s - m_new)
    l_sc[...] = alpha * l_sc[...] + jnp.sum(p, axis=-1, keepdims=True)
    acc_sc[...] = alpha * acc_sc[...] + jnp.einsum(
        'hqk,hkd->hqd', p.astype(jnp.bfloat16), v, preferred_element_type=jnp.float32)
    m_sc[...] = m_new

    @pl.when(ki == pl.num_programs(2) - 1)
    def _():
        attn = (acc_sc[...] * pl.reciprocal(l_sc[...], approx=True)).astype(jnp.bfloat16)
        attn = jnp.transpose(attn, (1, 0, 2)).reshape(tq, D)          # (tq, D)
        out = jnp.dot(attn, wo_ref[...], preferred_element_type=jnp.float32) + bo_ref[...]
        o_ref[0] = (x_ref[0].astype(jnp.float32) + out).astype(o_ref.dtype)


def attn_layer(x, gamma, beta, wqkv_t, bqkv, wo_t, bo, n_heads):
    B, S, D = x.shape
    dh = D // n_heads
    scale = 1.0 / math.sqrt(dh)

    # (1) QKV projection, seq-tiled, both grid axes parallel (megacore friendly).
    tS = _pick_tile(S, 256, 16)
    nS = S // tS
    q, k, v = pl.pallas_call(
        partial(_qkv_proj_kernel, scale=scale),
        out_shape=(jax.ShapeDtypeStruct((B, S, D), jnp.bfloat16),
                   jax.ShapeDtypeStruct((B, S, D), jnp.bfloat16),
                   jax.ShapeDtypeStruct((B, S, D), jnp.bfloat16)),
        grid=(B, nS),
        in_specs=[
            pl.BlockSpec((1, tS, D), lambda b, s: (b, s, 0)),
            pl.BlockSpec((1, D), lambda b, s: (0, 0)),
            pl.BlockSpec((1, D), lambda b, s: (0, 0)),
            pl.BlockSpec((D, 3 * D), lambda b, s: (0, 0)),
            pl.BlockSpec((1, 3 * D), lambda b, s: (0, 0)),
        ],
        out_specs=(pl.BlockSpec((1, tS, D), lambda b, s: (b, s, 0)),
                   pl.BlockSpec((1, tS, D), lambda b, s: (b, s, 0)),
                   pl.BlockSpec((1, tS, D), lambda b, s: (b, s, 0))),
        compiler_params=pltpu.CompilerParams(
            dimension_semantics=("parallel", "parallel"),
            vmem_limit_bytes=VMEM_LIMIT),
    )(x, gamma, beta, wqkv_t, bqkv)

    # (2) Flash attention: q tiles parallel, kv tiles streamed (arbitrary / accumulator).
    tq = _pick_tile(S, 256, 16)
    tk = _pick_tile(S, 256, 128)
    nQ, nK = S // tq, S // tk
    cost = pl.CostEstimate(
        flops=int(4 * B * S * S * D + 2 * B * S * D * D),
        transcendentals=int(B * n_heads * S * S),
        bytes_accessed=int(2 * B * S * D * 4 + 3 * B * S * D * 2 + D * D * 2))
    out = pl.pallas_call(
        partial(_flash_attn_kernel, n_heads=n_heads),
        out_shape=jax.ShapeDtypeStruct((B, S, D), x.dtype),
        grid=(B, nQ, nK),
        in_specs=[
            pl.BlockSpec((1, tq, D), lambda b, qi, ki: (b, qi, 0)),   # x (residual)
            pl.BlockSpec((1, tq, D), lambda b, qi, ki: (b, qi, 0)),   # q
            pl.BlockSpec((1, tk, D), lambda b, qi, ki: (b, ki, 0)),   # k
            pl.BlockSpec((1, tk, D), lambda b, qi, ki: (b, ki, 0)),   # v
            pl.BlockSpec((D, D), lambda b, qi, ki: (0, 0)),           # wo
            pl.BlockSpec((1, D), lambda b, qi, ki: (0, 0)),           # bo
        ],
        out_specs=pl.BlockSpec((1, tq, D), lambda b, qi, ki: (b, qi, 0)),
        scratch_shapes=[pltpu.VMEM((n_heads, tq, 1), jnp.float32),    # running max
                        pltpu.VMEM((n_heads, tq, 1), jnp.float32),    # running denom
                        pltpu.VMEM((n_heads, tq, dh), jnp.float32)],  # output acc
        compiler_params=pltpu.CompilerParams(
            dimension_semantics=("parallel", "parallel", "arbitrary"),
            vmem_limit_bytes=VMEM_LIMIT),
        cost_estimate=cost,
    )(x, q, k, v, wo_t, bo)
    return out


# -------------- SigmaMoE gating kernel: LN + selector + sigmoid/top-k + counts --------------
def _moe_gate_kernel(x_ref, g_ref, b_ref, wsel_ref, gate_ref, cnt_ref, *, k_top):
    x = x_ref[0].astype(jnp.float32)                       # (tS, D)
    h = _layernorm(x, g_ref[...], b_ref[...]).astype(jnp.bfloat16)
    logits = jnp.dot(h, wsel_ref[...], preferred_element_type=jnp.float32)  # (tS, E)
    g = jax.nn.sigmoid(logits)
    tS, E = g.shape

    # top-k selection mask (iterative arg-max; exactly one pick per iteration)
    iota = jax.lax.broadcasted_iota(jnp.int32, (tS, E), 1)
    remaining = g
    mask = jnp.zeros((tS, E), jnp.bool_)
    for _ in range(k_top):
        mval = jnp.max(remaining, axis=-1, keepdims=True)
        cand = jnp.where(remaining == mval, iota, E)
        first = jnp.min(cand, axis=-1, keepdims=True)
        pick = iota == first
        mask = jnp.logical_or(mask, pick)
        remaining = jnp.where(pick, -1.0, remaining)       # sigmoid outputs are > 0

    gate_ref[0] = jnp.where(mask, g, 0.0).astype(gate_ref.dtype)      # bf16 gate

    # tokens-per-expert for this tile, broadcast to 8 rows so the output block keeps a
    # legal (8, E) trailing shape (read back as [:, :, 0, :] on the host side).
    cnt = jnp.sum(mask.astype(jnp.int32), axis=0, keepdims=True)      # (1, E)
    cnt_ref[0, 0] = jnp.broadcast_to(cnt, (8, E))


def moe_gate_layer(x, gamma, beta, wsel_t, k_top, tS):
    B, S, D = x.shape
    E = wsel_t.shape[1]
    nS = S // tS
    gate, cnt8 = pl.pallas_call(
        partial(_moe_gate_kernel, k_top=k_top),
        out_shape=(jax.ShapeDtypeStruct((B, S, E), jnp.bfloat16),
                   jax.ShapeDtypeStruct((B, nS, 8, E), jnp.int32)),
        grid=(B, nS),
        in_specs=[
            pl.BlockSpec((1, tS, D), lambda b, s: (b, s, 0)),
            pl.BlockSpec((1, D), lambda b, s: (0, 0)),
            pl.BlockSpec((1, D), lambda b, s: (0, 0)),
            pl.BlockSpec((D, E), lambda b, s: (0, 0)),
        ],
        out_specs=(pl.BlockSpec((1, tS, E), lambda b, s: (b, s, 0)),
                   pl.BlockSpec((1, 1, 8, E), lambda b, s: (b, s, 0, 0))),
        compiler_params=pltpu.CompilerParams(
            dimension_semantics=("parallel", "parallel"),
            vmem_limit_bytes=VMEM_LIMIT),
    )(x, gamma, beta, wsel_t)
    return gate, cnt8[:, :, 0, :]                          # counts (B, nS, E) int32


def _expert_dma_schedule(counts):
    """counts (B, nS, E) -> (counts2, fetch2), both (B*nS, E) int32.

    fetch2[t, e] is the expert whose weights should be resident at grid step
    (b, s, e) (grid iterates e innermost): it equals e whenever counts[t, e] > 0 and
    otherwise repeats the most recently fetched expert, so Pallas' same-block-index
    check elides the weight DMA for experts that received zero tokens in this tile.
    """
    B, nS, E = counts.shape
    flat = counts.reshape(-1)
    pos = jnp.arange(flat.shape[0], dtype=jnp.int32)
    val = jnp.where(flat > 0, pos, -1)
    run = jax.lax.cummax(val, axis=0)                      # most recent non-empty step
    fetch = jnp.where(run >= 0, run % E, 0).astype(jnp.int32)
    return counts.reshape(B * nS, E).astype(jnp.int32), fetch.reshape(B * nS, E)


# ------ SigmaMoE expert kernel: grid=(B, nS, E); skip compute AND weight DMA of empty experts ------
def _moe_expert_kernel(cnt_ref, fid_ref, x_ref, g_ref, b_ref, gate_ref,
                       w1_ref, b1_ref, w2_ref, b2_ref, o_ref, h_sc, acc_sc, *,
                       n_s_tiles):
    del fid_ref                                            # only used by the index_maps
    b = pl.program_id(0)
    s = pl.program_id(1)
    e = pl.program_id(2)

    @pl.when(e == 0)
    def _():
        x = x_ref[0].astype(jnp.float32)
        h_sc[...] = _layernorm(x, g_ref[...], b_ref[...]).astype(jnp.bfloat16)
        acc_sc[...] = jnp.zeros_like(acc_sc)

    # Skip experts with zero routed tokens in this tile (count from SMEM prefetch).
    @pl.when(cnt_ref[b * n_s_tiles + s, e] > 0)
    def _():
        h = h_sc[...]                                                      # (tS, D) bf16
        h1 = jnp.dot(h, w1_ref[0], preferred_element_type=jnp.float32) + b1_ref[0]
        h1 = jnp.maximum(h1, 0.0).astype(jnp.bfloat16)
        ye = jnp.dot(h1, w2_ref[0], preferred_element_type=jnp.float32) + b2_ref[0]
        gate = gate_ref[0].astype(jnp.float32)                             # (tS, E)
        lane = jax.lax.broadcasted_iota(jnp.int32, gate.shape, 1)
        gate_e = jnp.sum(jnp.where(lane == e, gate, 0.0), axis=-1, keepdims=True)
        acc_sc[...] += gate_e * ye

    @pl.when(e == pl.num_programs(2) - 1)
    def _():
        o_ref[0] = (x_ref[0].astype(jnp.float32) + acc_sc[...]).astype(o_ref.dtype)


def moe_expert_layer(x, gamma, beta, gate, counts2, fetch2, w1_t, b1, w2_t, b2, tS):
    B, S, D = x.shape
    E, _, dff = w1_t.shape
    nS = S // tS
    cost = pl.CostEstimate(
        flops=int(4 * B * S * D * dff * E),                # dense upper bound (advisory)
        transcendentals=0,
        bytes_accessed=int(2 * B * S * D * 4 + 2 * E * D * dff * 2 + B * S * E * 2))
    grid_spec = pltpu.PrefetchScalarGridSpec(
        num_scalar_prefetch=2,                             # counts2, fetch2 (SMEM)
        grid=(B, nS, E),
        in_specs=[
            pl.BlockSpec((1, tS, D), lambda b, s, e, cnt, fid: (b, s, 0)),   # x
            pl.BlockSpec((1, D), lambda b, s, e, cnt, fid: (0, 0)),          # ln gamma
            pl.BlockSpec((1, D), lambda b, s, e, cnt, fid: (0, 0)),          # ln beta
            pl.BlockSpec((1, tS, E), lambda b, s, e, cnt, fid: (b, s, 0)),   # gate (bf16)
            # Expert weights: index by the DMA schedule so empty experts reuse the
            # previously fetched block (same block index => Pallas skips the copy).
            pl.BlockSpec((1, D, dff), lambda b, s, e, cnt, fid: (fid[b * nS + s, e], 0, 0)),
            pl.BlockSpec((1, 1, dff), lambda b, s, e, cnt, fid: (fid[b * nS + s, e], 0, 0)),
            pl.BlockSpec((1, dff, D), lambda b, s, e, cnt, fid: (fid[b * nS + s, e], 0, 0)),
            pl.BlockSpec((1, 1, D), lambda b, s, e, cnt, fid: (fid[b * nS + s, e], 0, 0)),
        ],
        out_specs=pl.BlockSpec((1, tS, D), lambda b, s, e, cnt, fid: (b, s, 0)),
        scratch_shapes=[pltpu.VMEM((tS, D), jnp.bfloat16),   # LN(x), computed once per tile
                        pltpu.VMEM((tS, D), jnp.float32)],   # accumulator over experts
    )
    return pl.pallas_call(
        partial(_moe_expert_kernel, n_s_tiles=nS),
        out_shape=jax.ShapeDtypeStruct((B, S, D), x.dtype),
        grid_spec=grid_spec,
        compiler_params=pltpu.CompilerParams(
            dimension_semantics=("parallel", "parallel", "arbitrary"),
            vmem_limit_bytes=VMEM_LIMIT),
        cost_estimate=cost,
    )(counts2, fetch2, x, gamma, beta, gate, w1_t, b1, w2_t, b2)


# --------------------- LM head: out-norm once (bf16), weight-stationary matmul ---------------------
def _outnorm_kernel(x_ref, g_ref, b_ref, h_ref):
    h_ref[...] = _layernorm(x_ref[...].astype(jnp.float32),
                            g_ref[...], b_ref[...]).astype(h_ref.dtype)


def _head_kernel(h_ref, w_ref, bias_ref, o_ref):
    o_ref[...] = (jnp.dot(h_ref[...], w_ref[...], preferred_element_type=jnp.float32)
                  + bias_ref[...]).astype(o_ref.dtype)


def lm_head(x, gamma, beta, w_t, bias, n_tokens):
    B, S, D = x.shape
    Vp = w_t.shape[1]                                      # vocab padded to 128 at init
    T = B * S
    x2 = x.reshape(T, D)
    tT = _pick_tile(T, 512, 16)
    nT = T // tT

    # Final LayerNorm once (bf16) so it is not recomputed for every vocab tile.
    h = pl.pallas_call(
        _outnorm_kernel,
        out_shape=jax.ShapeDtypeStruct((T, D), jnp.bfloat16),
        grid=(nT,),
        in_specs=[pl.BlockSpec((tT, D), lambda t: (t, 0)),
                  pl.BlockSpec((1, D), lambda t: (0, 0)),
                  pl.BlockSpec((1, D), lambda t: (0, 0))],
        out_specs=pl.BlockSpec((tT, D), lambda t: (t, 0)),
        compiler_params=pltpu.CompilerParams(
            dimension_semantics=("parallel",), vmem_limit_bytes=VMEM_LIMIT),
    )(x2, gamma, beta)

    tV = _pick_tile(Vp, 2048, 128)
    nV = Vp // tV
    cost = pl.CostEstimate(
        flops=int(2 * T * D * Vp), transcendentals=0,
        bytes_accessed=int(T * D * 2 + D * Vp * 2 + T * Vp * 4))
    logits = pl.pallas_call(
        _head_kernel,
        out_shape=jax.ShapeDtypeStruct((T, Vp), jnp.float32),
        # Vocab OUTER / token INNER: each (D, tV) weight tile is fetched once and stays
        # resident across all token tiles (same block index => DMA elided).
        grid=(nV, nT),
        in_specs=[
            pl.BlockSpec((tT, D), lambda v, t: (t, 0)),
            pl.BlockSpec((D, tV), lambda v, t: (0, v)),
            pl.BlockSpec((1, tV), lambda v, t: (0, v)),
        ],
        out_specs=pl.BlockSpec((tT, tV), lambda v, t: (t, v)),
        compiler_params=pltpu.CompilerParams(
            dimension_semantics=("parallel", "parallel"),
            vmem_limit_bytes=VMEM_LIMIT),
        cost_estimate=cost,
    )(h, w_t, bias)
    return logits[:, :n_tokens].reshape(B, S, n_tokens)


# ------------------------------- plain-JAX glue -------------------------------
def _moe_reg_per_layer(n_experts, seq_len):
    # Reference: entropy_reg(stack(sel_hist, -2).flatten(-3, -2), dim=-2) with exactly
    # one history entry, i.e. sel has shape (B, S, E) and BOTH the log_softmax and the
    # log_mean reduce over the SAME axis (dim=-2, the sequence axis).  Since
    #   log_mean(log_softmax(x, d), d) = log(mean_d softmax_d(x)) = -log(S)   exactly,
    # the per-layer value is data independent:
    #   entropy_l(m) = -(m * exp(m)).sum(-1) = E * log(S) / S
    #   reg          = -entropy_l(m).mean()  = -E * log(S) / S
    if seq_len <= 1:
        return 0.0
    return -(n_experts * math.log(seq_len) / seq_len)


def moeut_lm_forward(params, tokens, *, n_heads, ff_k, n_layers, group_size, n_tokens):
    x = jnp.take(params["embedding"], tokens, axis=0)      # embedding gather (glue)
    B, S, D = x.shape
    E = params["layers"][0]["wsel_t"].shape[1]
    tS_moe = _pick_tile(S, 512, 16)                        # shared token tile for gate/expert

    reg_loss = jnp.float32(0.0)
    reg_per_layer = jnp.float32(_moe_reg_per_layer(E, S))
    n_repeats = n_layers // group_size
    for r in range(n_repeats):
        for li in range(group_size):
            p = params["layers"][r * group_size + li]
            x = attn_layer(x, p["ln_attn_g"], p["ln_attn_b"],
                           p["wqkv_t"], p["bqkv"], p["wo_t"], p["bo"], n_heads)
            gate, counts = moe_gate_layer(x, p["ln_moe_g"], p["ln_moe_b"],
                                          p["wsel_t"], ff_k, tS_moe)
            counts2, fetch2 = _expert_dma_schedule(counts)
            x = moe_expert_layer(x, p["ln_moe_g"], p["ln_moe_b"], gate, counts2, fetch2,
                                 p["w1_t"], p["b1"], p["w2_t"], p["b2"], tS_moe)
            reg_loss = reg_loss + reg_per_layer
    logits = lm_head(x, params["out_norm_g"], params["out_norm_b"],
                     params["lm_w_t"], params["lm_b"], n_tokens)
    return logits, reg_loss


def init_params(key, *, n_tokens, d_model, n_layers, ff_n_experts, ff_expert_size):
    D, E, dff = d_model, ff_n_experts, ff_expert_size
    Vp = ((n_tokens + 127) // 128) * 128                   # vocab padded to lane multiple
    keys = jax.random.split(key, 4 + n_layers)
    lm_w = jax.random.normal(keys[1], (D, n_tokens), jnp.float32) / math.sqrt(D)
    lm_w = jnp.pad(lm_w, ((0, 0), (0, Vp - n_tokens)))
    params = {
        "embedding": jax.random.normal(keys[0], (n_tokens, D), jnp.float32) / math.sqrt(D),
        "out_norm_g": jnp.ones((1, D), jnp.float32),
        "out_norm_b": jnp.zeros((1, D), jnp.float32),
        "lm_w_t": lm_w.astype(jnp.bfloat16),
        "lm_b": jnp.zeros((1, Vp), jnp.float32),
        "layers": [],
    }
    for li in range(n_layers):
        lk = jax.random.split(keys[4 + li], 5)
        params["layers"].append({
            "ln_attn_g": jnp.ones((1, D), jnp.float32),
            "ln_attn_b": jnp.zeros((1, D), jnp.float32),
            "wqkv_t": (jax.random.normal(lk[0], (D, 3 * D), jnp.float32)
                       / math.sqrt(D)).astype(jnp.bfloat16),
            "bqkv": jnp.zeros((1, 3 * D), jnp.float32),
            "wo_t": (jax.random.normal(lk[1], (D, D), jnp.float32)
                     / math.sqrt(D)).astype(jnp.bfloat16),
            "bo": jnp.zeros((1, D), jnp.float32),
            "ln_moe_g": jnp.ones((1, D), jnp.float32),
            "ln_moe_b": jnp.zeros((1, D), jnp.float32),
            "wsel_t": (jax.random.normal(lk[2], (D, E), jnp.float32)
                       / math.sqrt(D)).astype(jnp.bfloat16),
            "w1_t": (jax.random.normal(lk[3], (E, D, dff), jnp.float32)
                     * math.sqrt(2.0 / D)).astype(jnp.bfloat16),
            "b1": jnp.zeros((E, 1, dff), jnp.float32),
            "w2_t": (jax.random.normal(lk[4], (E, dff, D), jnp.float32)
                     / math.sqrt(dff)).astype(jnp.bfloat16),
            "b2": jnp.zeros((E, 1, D), jnp.float32),
        })
    return params


if __name__ == "__main__":
    # small config consistent with MoEUTLM(n_tokens, d_model, n_layers, n_heads, ...)
    n_tokens, d_model, n_layers, n_heads = 64, 32, 2, 4
    ff_expert_size, ff_n_experts, ff_k, group_size = 16, 4, 2, 2
    B, S = 2, 8

    key = jax.random.PRNGKey(0)
    pkey, tkey = jax.random.split(key)
    params = init_params(pkey, n_tokens=n_tokens, d_model=d_model, n_layers=n_layers,
                         ff_n_experts=ff_n_experts, ff_expert_size=ff_expert_size)
    tokens = jax.random.randint(tkey, (B, S), 0, n_tokens, dtype=jnp.int32)

    fwd = jax.jit(partial(moeut_lm_forward, n_heads=n_heads, ff_k=ff_k,
                          n_layers=n_layers, group_size=group_size, n_tokens=n_tokens))
    logits, reg = fwd(params, tokens)
    jax.block_until_ready((logits, reg))

    assert logits.shape == (B, S, n_tokens)
    assert reg.shape == ()
    assert bool(jnp.all(jnp.isfinite(logits))) and bool(jnp.isfinite(reg))
    print("KERNEL_OK")
</pallas_src>

<mosaic_0001>
module attributes {stable_mosaic.version = 11 : i64} {
  func.func @_qkv_proj_kernel(%arg0: i32, %arg1: i32, %arg2: memref<1x8x32xf32, #tpu.memory_space<vmem>>, %arg3: memref<1x32xf32, #tpu.memory_space<vmem>>, %arg4: memref<1x32xf32, #tpu.memory_space<vmem>>, %arg5: memref<32x96xbf16, #tpu.memory_space<vmem>>, %arg6: memref<1x96xf32, #tpu.memory_space<vmem>>, %arg7: memref<1x8x32xbf16, #tpu.memory_space<vmem>>, %arg8: memref<1x8x32xbf16, #tpu.memory_space<vmem>>, %arg9: memref<1x8x32xbf16, #tpu.memory_space<vmem>>) attributes {dimension_semantics = [#tpu.dimension_semantics<parallel>, #tpu.dimension_semantics<parallel>], iteration_bounds = array<i64: 2, 1>, scalar_prefetch = 0 : i64, scratch_operands = 0 : i64, tpu.core_type = #tpu.core_type<tc>, window_params = [{transform_indices = @transform_0, window_bounds = array<i64: 1, 8, 32>}, {pipeline_mode = #tpu.pipeline_mode<synchronous>, transform_indices = @transform_1, window_bounds = array<i64: 1, 32>}, {pipeline_mode = #tpu.pipeline_mode<synchronous>, transform_indices = @transform_2, window_bounds = array<i64: 1, 32>}, {pipeline_mode = #tpu.pipeline_mode<synchronous>, transform_indices = @transform_3, window_bounds = array<i64: 32, 96>}, {pipeline_mode = #tpu.pipeline_mode<synchronous>, transform_indices = @transform_4, window_bounds = array<i64: 1, 96>}, {transform_indices = @transform_5, window_bounds = array<i64: 1, 8, 32>}, {transform_indices = @transform_6, window_bounds = array<i64: 1, 8, 32>}, {transform_indices = @transform_7, window_bounds = array<i64: 1, 8, 32>}]} {
    %c0 = arith.constant 0 : index
    %c0_0 = arith.constant 0 : index
    %c0_1 = arith.constant 0 : index
    %0 = vector.load %arg2[%c0, %c0_0, %c0_1] : memref<1x8x32xf32, #tpu.memory_space<vmem>>, vector<1x8x32xf32>
    %1 = vector.shape_cast %0 : vector<1x8x32xf32> to vector<8x32xf32>
    %c0_2 = arith.constant 0 : index
    %c0_3 = arith.constant 0 : index
    %2 = vector.load %arg3[%c0_2, %c0_3] : memref<1x32xf32, #tpu.memory_space<vmem>>, vector<1x32xf32>
    %c0_4 = arith.constant 0 : index
    %c0_5 = arith.constant 0 : index
    %3 = vector.load %arg4[%c0_4, %c0_5] : memref<1x32xf32, #tpu.memory_space<vmem>>, vector<1x32xf32>
    %cst = arith.constant dense<0.000000e+00> : vector<8xf32>
    %4 = vector.multi_reduction <add>, %1, %cst [1] : vector<8x32xf32> to vector<8xf32>
    %5 = vector.shape_cast %4 : vector<8xf32> to vector<8x1xf32>
    %cst_6 = arith.constant 3.200000e+01 : f32
    %6 = vector.broadcast %cst_6 : f32 to vector<8x1xf32>
    %7 = arith.divf %5, %6 : vector<8x1xf32>
    %8 = vector.broadcast %7 : vector<8x1xf32> to vector<8x32xf32>
    %9 = arith.subf %1, %8 : vector<8x32xf32>
    %10 = arith.mulf %9, %9 : vector<8x32xf32>
    %cst_7 = arith.constant dense<0.000000e+00> : vector<8xf32>
    %11 = vector.multi_reduction <add>, %10, %cst_7 [1] : vector<8x32xf32> to vector<8xf32>
    %12 = vector.shape_cast %11 : vector<8xf32> to vector<8x1xf32>
    %cst_8 = arith.constant 3.200000e+01 : f32
    %13 = vector.broadcast %cst_8 : f32 to vector<8x1xf32>
    %14 = arith.divf %12, %13 : vector<8x1xf32>
    %15 = vector.broadcast %7 : vector<8x1xf32> to vector<8x32xf32>
    %16 = arith.subf %1, %15 : vector<8x32xf32>
    %cst_9 = arith.constant 9.99999974E-6 : f32
    %17 = vector.broadcast %cst_9 : f32 to vector<8x1xf32>
    %18 = arith.addf %14, %17 : vector<8x1xf32>
    %19 = math.rsqrt %18 : vector<8x1xf32>
    %20 = vector.broadcast %19 : vector<8x1xf32> to vector<8x32xf32>
    %21 = arith.mulf %16, %20 : vector<8x32xf32>
    %22 = vector.broadcast %2 : vector<1x32xf32> to vector<8x32xf32>
    %23 = arith.mulf %21, %22 : vector<8x32xf32>
    %24 = vector.broadcast %3 : vector<1x32xf32> to vector<8x32xf32>
    %25 = arith.addf %23, %24 : vector<8x32xf32>
    %26 = arith.truncf %25 : vector<8x32xf32> to vector<8x32xbf16>
    %c0_10 = arith.constant 0 : index
    %c0_11 = arith.constant 0 : index
    %27 = vector.load %arg5[%c0_10, %c0_11] : memref<32x96xbf16, #tpu.memory_space<vmem>>, vector<32x96xbf16>
    %cst_12 = arith.constant dense<0.000000e+00> : vector<8x96xf32>
    %28 = tpu.matmul %26, %27, %cst_12 {dimension_numbers = #tpu.dot_dimension_numbers<[1], [0], [0], [1], [0, 0, 1, 1], [], []>} : vector<8x32xbf16>, vector<32x96xbf16>, vector<8x96xf32> -> vector<8x96xf32>
    %c0_13 = arith.constant 0 : index
    %c0_14 = arith.constant 0 : index
    %29 = vector.load %arg6[%c0_13, %c0_14] : memref<1x96xf32, #tpu.memory_space<vmem>>, vector<1x96xf32>
    %30 = vector.broadcast %29 : vector<1x96xf32> to vector<8x96xf32>
    %31 = arith.addf %28, %30 : vector<8x96xf32>
    %32 = vector.extract_strided_slice %31 {offsets = [0, 0], sizes = [8, 32], strides = [1, 1]} : vector<8x96xf32> to vector<8x32xf32>
    %cst_15 = arith.constant 0.353553385 : f32
    %33 = vector.broadcast %cst_15 : f32 to vector<8x32xf32>
    %34 = arith.mulf %32, %33 : vector<8x32xf32>
    %35 = arith.truncf %34 : vector<8x32xf32> to vector<8x32xbf16>
    %c0_16 = arith.constant 0 : index
    %c0_17 = arith.constant 0 : index
    %c0_18 = arith.constant 0 : index
    %36 = vector.load %arg7[%c0_16, %c0_17, %c0_18] : memref<1x8x32xbf16, #tpu.memory_space<vmem>>, vector<1x8x32xbf16>
    %37 = vector.shape_cast %36 : vector<1x8x32xbf16> to vector<8x32xbf16>
    %38 = vector.shape_cast %35 : vector<8x32xbf16> to vector<1x8x32xbf16>
    tpu.vector_store %arg7[%c0_16, %c0_17, %c0_18], %38 {strides = array<i32>} : memref<1x8x32xbf16, #tpu.memory_space<vmem>>, vector<1x8x32xbf16>,
    %39 = vector.extract_strided_slice %31 {offsets = [0, 32], sizes = [8, 32], strides = [1, 1]} : vector<8x96xf32> to vector<8x32xf32>
    %40 = arith.truncf %39 : vector<8x32xf32> to vector<8x32xbf16>
    %c0_19 = arith.constant 0 : index
    %c0_20 = arith.constant 0 : index
    %c0_21 = arith.constant 0 : index
    %41 = vector.load %arg8[%c0_19, %c0_20, %c0_21] : memref<1x8x32xbf16, #tpu.memory_space<vmem>>, vector<1x8x32xbf16>
    %42 = vector.shape_cast %41 : vector<1x8x32xbf16> to vector<8x32xbf16>
    %43 = vector.shape_cast %40 : vector<8x32xbf16> to vector<1x8x32xbf16>
    tpu.vector_store %arg8[%c0_19, %c0_20, %c0_21], %43 {strides = array<i32>} : memref<1x8x32xbf16, #tpu.memory_space<vmem>>, vector<1x8x32xbf16>,
    %44 = vector.extract_strided_slice %31 {offsets = [0, 64], sizes = [8, 32], strides = [1, 1]} : vector<8x96xf32> to vector<8x32xf32>
    %45 = arith.truncf %44 : vector<8x32xf32> to vector<8x32xbf16>
    %c0_22 = arith.constant 0 : index
    %c0_23 = arith.constant 0 : index
    %c0_24 = arith.constant 0 : index
    %46 = vector.load %arg9[%c0_22, %c0_23, %c0_24] : memref<1x8x32xbf16, #tpu.memory_space<vmem>>, vector<1x8x32xbf16>
    %47 = vector.shape_cast %46 : vector<1x8x32xbf16> to vector<8x32xbf16>
    %48 = vector.shape_cast %45 : vector<8x32xbf16> to vector<1x8x32xbf16>
    tpu.vector_store %arg9[%c0_22, %c0_23, %c0_24], %48 {strides = array<i32>} : memref<1x8x32xbf16, #tpu.memory_space<vmem>>, vector<1x8x32xbf16>,
    return
  }
  func.func @transform_0(%arg0: i32, %arg1: i32) -> (i32, i32, i32) {
    %c0_i32 = arith.constant 0 : i32
    %c0_i32_0 = arith.constant 0 : i32
    return %arg0, %arg1, %c0_i32 : i32, i32, i32
  }
  func.func @transform_1(%arg0: i32, %arg1: i32) -> (i32, i32) {
    %c0_i32 = arith.constant 0 : i32
    %c0_i32_0 = arith.constant 0 : i32
    %c0_i32_1 = arith.constant 0 : i32
    return %c0_i32, %c0_i32_0 : i32, i32
  }
  func.func @transform_2(%arg0: i32, %arg1: i32) -> (i32, i32) {
    %c0_i32 = arith.constant 0 : i32
    %c0_i32_0 = arith.constant 0 : i32
    %c0_i32_1 = arith.constant 0 : i32
    return %c0_i32, %c0_i32_0 : i32, i32
  }
  func.func @transform_3(%arg0: i32, %arg1: i32) -> (i32, i32) {
    %c0_i32 = arith.constant 0 : i32
    %c0_i32_0 = arith.constant 0 : i32
    %c0_i32_1 = arith.constant 0 : i32
    return %c0_i32, %c0_i32_0 : i32, i32
  }
  func.func @transform_4(%arg0: i32, %arg1: i32) -> (i32, i32) {
    %c0_i32 = arith.constant 0 : i32
    %c0_i32_0 = arith.constant 0 : i32
    %c0_i32_1 = arith.constant 0 : i32
    return %c0_i32, %c0_i32_0 : i32, i32
  }
  func.func @transform_5(%arg0: i32, %arg1: i32) -> (i32, i32, i32) {
    %c0_i32 = arith.constant 0 : i32
    %c0_i32_0 = arith.constant 0 : i32
    return %arg0, %arg1, %c0_i32 : i32, i32, i32
  }
  func.func @transform_6(%arg0: i32, %arg1: i32) -> (i32, i32, i32) {
    %c0_i32 = arith.constant 0 : i32
    %c0_i32_0 = arith.constant 0 : i32
    return %arg0, %arg1, %c0_i32 : i32, i32, i32
  }
  func.func @transform_7(%arg0: i32, %arg1: i32) -> (i32, i32, i32) {
    %c0_i32 = arith.constant 0 : i32
    %c0_i32_0 = arith.constant 0 : i32
    return %arg0, %arg1, %c0_i32 : i32, i32, i32
  }
}

module attributes {stable_mosaic.version = 11 : i64} {
  func.func @_flash_attn_kernel(%arg0: i32, %arg1: i32, %arg2: i32, %arg3: memref<1x8x32xf32, #tpu.memory_space<vmem>>, %arg4: memref<1x8x32xbf16, #tpu.memory_space<vmem>>, %arg5: memref<1x8x32xbf16, #tpu.memory_space<vmem>>, %arg6: memref<1x8x32xbf16, #tpu.memory_space<vmem>>, %arg7: memref<32x32xbf16, #tpu.memory_space<vmem>>, %arg8: memref<1x32xf32, #tpu.memory_space<vmem>>, %arg9: memref<1x8x32xf32, #tpu.memory_space<vmem>>, %arg10: memref<4x8x1xf32, #tpu.memory_space<vmem>>, %arg11: memref<4x8x1xf32, #tpu.memory_space<vmem>>, %arg12: memref<4x8x8xf32, #tpu.memory_space<vmem>>) attributes {dimension_semantics = [#tpu.dimension_semantics<parallel>, #tpu.dimension_semantics<parallel>, #tpu.dimension_semantics<arbitrary>], iteration_bounds = array<i64: 2, 1, 1>, scalar_prefetch = 0 : i64, scratch_operands = 3 : i64, tpu.core_type = #tpu.core_type<tc>, window_params = [{transform_indices = @transform_0, window_bounds = array<i64: 1, 8, 32>}, {transform_indices = @transform_1, window_bounds = array<i64: 1, 8, 32>}, {transform_indices = @transform_2, window_bounds = array<i64: 1, 8, 32>}, {transform_indices = @transform_3, window_bounds = array<i64: 1, 8, 32>}, {pipeline_mode = #tpu.pipeline_mode<synchronous>, transform_indices = @transform_4, window_bounds = array<i64: 32, 32>}, {pipeline_mode = #tpu.pipeline_mode<synchronous>, transform_indices = @transform_5, window_bounds = array<i64: 1, 32>}, {transform_indices = @transform_6, window_bounds = array<i64: 1, 8, 32>}]} {
    %c0_i32 = arith.constant 0 : i32
    %0 = arith.cmpi eq, %arg2, %c0_i32 : i32
    %1 = arith.extui %0 : i1 to i32
    %c0_i32_0 = arith.constant 0 : i32
    %2 = arith.cmpi ne, %1, %c0_i32_0 : i32
    scf.if %2 {
      %cst_32 = arith.constant -1.000000e+30 : f32
      %42 = vector.broadcast %cst_32 : f32 to vector<4x8x1xf32>
      %c0_33 = arith.constant 0 : index
      %c0_34 = arith.constant 0 : index
      %c0_35 = arith.constant 0 : index
      %43 = vector.load %arg10[%c0_33, %c0_34, %c0_35] : memref<4x8x1xf32, #tpu.memory_space<vmem>>, vector<4x8x1xf32>
      tpu.vector_store %arg10[%c0_33, %c0_34, %c0_35], %42 {strides = array<i32>} : memref<4x8x1xf32, #tpu.memory_space<vmem>>, vector<4x8x1xf32>,
      %cst_36 = arith.constant 0.000000e+00 : f32
      %44 = vector.broadcast %cst_36 : f32 to vector<4x8x1xf32>
      %c0_37 = arith.constant 0 : index
      %c0_38 = arith.constant 0 : index
      %c0_39 = arith.constant 0 : index
      %45 = vector.load %arg11[%c0_37, %c0_38, %c0_39] : memref<4x8x1xf32, #tpu.memory_space<vmem>>, vector<4x8x1xf32>
      tpu.vector_store %arg11[%c0_37, %c0_38, %c0_39], %44 {strides = array<i32>} : memref<4x8x1xf32, #tpu.memory_space<vmem>>, vector<4x8x1xf32>,
      %cst_40 = arith.constant 0.000000e+00 : f32
      %46 = vector.broadcast %cst_40 : f32 to vector<4x8x8xf32>
      %c0_41 = arith.constant 0 : index
      %c0_42 = arith.constant 0 : index
      %c0_43 = arith.constant 0 : index
      %47 = vector.load %arg12[%c0_41, %c0_42, %c0_43] : memref<4x8x8xf32, #tpu.memory_space<vmem>>, vector<4x8x8xf32>
      tpu.vector_store %arg12[%c0_41, %c0_42, %c0_43], %46 {strides = array<i32>} : memref<4x8x8xf32, #tpu.memory_space<vmem>>, vector<4x8x8xf32>,
    } else {
    }
    %c0 = arith.constant 0 : index
    %c0_1 = arith.constant 0 : index
    %c0_2 = arith.constant 0 : index
    %3 = vector.load %arg4[%c0, %c0_1, %c0_2] : memref<1x8x32xbf16, #tpu.memory_space<vmem>>, vector<1x8x32xbf16>
    %4 = vector.shape_cast %3 : vector<1x8x32xbf16> to vector<8x32xbf16>
    %5 = vector.shape_cast %4 : vector<8x32xbf16> to vector<8x4x8xbf16>
    %6 = tpu.transpose %5, [1, 0, 2] : vector<8x4x8xbf16> -> vector<4x8x8xbf16>
    %c0_3 = arith.constant 0 : index
    %c0_4 = arith.constant 0 : index
    %c0_5 = arith.constant 0 : index
    %7 = vector.load %arg5[%c0_3, %c0_4, %c0_5] : memref<1x8x32xbf16, #tpu.memory_space<vmem>>, vector<1x8x32xbf16>
    %8 = vector.shape_cast %7 : vector<1x8x32xbf16> to vector<8x32xbf16>
    %9 = vector.shape_cast %8 : vector<8x32xbf16> to vector<8x4x8xbf16>
    %10 = tpu.transpose %9, [1, 0, 2] : vector<8x4x8xbf16> -> vector<4x8x8xbf16>
    %c0_6 = arith.constant 0 : index
    %c0_7 = arith.constant 0 : index
    %c0_8 = arith.constant 0 : index
    %11 = vector.load %arg6[%c0_6, %c0_7, %c0_8] : memref<1x8x32xbf16, #tpu.memory_space<vmem>>, vector<1x8x32xbf16>
    %12 = vector.shape_cast %11 : vector<1x8x32xbf16> to vector<8x32xbf16>
    %13 = vector.shape_cast %12 : vector<8x32xbf16> to vector<8x4x8xbf16>
    %14 = tpu.transpose %13, [1, 0, 2] : vector<8x4x8xbf16> -> vector<4x8x8xbf16>
    "tpu.trace_start"() <{level = 10 : i32, message = "hqd,hkd->hqk"}> : () -> ()
    %cst = arith.constant dense<0.000000e+00> : vector<4x8x8xf32>
    %15 = tpu.matmul %6, %10, %cst {dimension_numbers = #tpu.dot_dimension_numbers<[2], [2], [1], [1], [0, 0, 0, 1, 1, 1], [0], [0]>} : vector<4x8x8xbf16>, vector<4x8x8xbf16>, vector<4x8x8xf32> -> vector<4x8x8xf32>
    "tpu.trace_stop"() : () -> ()
    %c0_9 = arith.constant 0 : index
    %c0_10 = arith.constant 0 : index
    %c0_11 = arith.constant 0 : index
    %16 = vector.load %arg10[%c0_9, %c0_10, %c0_11] : memref<4x8x1xf32, #tpu.memory_space<vmem>>, vector<4x8x1xf32>
    %cst_12 = arith.constant dense<0xFF800000> : vector<4x8xf32>
    %17 = vector.multi_reduction <maximumf>, %15, %cst_12 [2] : vector<4x8x8xf32> to vector<4x8xf32>
    %18 = vector.shape_cast %17 : vector<4x8xf32> to vector<4x8x1xf32>
    %19 = arith.maximumf %16, %18 : vector<4x8x1xf32>
    %20 = arith.subf %16, %19 : vector<4x8x1xf32>
    %21 = math.exp %20 : vector<4x8x1xf32>
    %22 = vector.broadcast %19 : vector<4x8x1xf32> to vector<4x8x8xf32>
    %23 = arith.subf %15, %22 : vector<4x8x8xf32>
    %24 = math.exp %23 : vector<4x8x8xf32>
    %c0_13 = arith.constant 0 : index
    %c0_14 = arith.constant 0 : index
    %c0_15 = arith.constant 0 : index
    %25 = vector.load %arg11[%c0_13, %c0_14, %c0_15] : memref<4x8x1xf32, #tpu.memory_space<vmem>>, vector<4x8x1xf32>
    %26 = arith.mulf %21, %25 : vector<4x8x1xf32>
    %cst_16 = arith.constant dense<0.000000e+00> : vector<4x8xf32>
    %27 = vector.multi_reduction <add>, %24, %cst_16 [2] : vector<4x8x8xf32> to vector<4x8xf32>
    %28 = vector.shape_cast %27 : vector<4x8xf32> to vector<4x8x1xf32>
    %29 = arith.addf %26, %28 : vector<4x8x1xf32>
    %c0_17 = arith.constant 0 : index
    %c0_18 = arith.constant 0 : index
    %c0_19 = arith.constant 0 : index
    %30 = vector.load %arg11[%c0_17, %c0_18, %c0_19] : memref<4x8x1xf32, #tpu.memory_space<vmem>>, vector<4x8x1xf32>
    tpu.vector_store %arg11[%c0_17, %c0_18, %c0_19], %29 {strides = array<i32>} : memref<4x8x1xf32, #tpu.memory_space<vmem>>, vector<4x8x1xf32>,
    %c0_20 = arith.constant 0 : index
    %c0_21 = arith.constant 0 : index
    %c0_22 = arith.constant 0 : index
    %31 = vector.load %arg12[%c0_20, %c0_21, %c0_22] : memref<4x8x8xf32, #tpu.memory_space<vmem>>, vector<4x8x8xf32>
    %32 = vector.broadcast %21 : vector<4x8x1xf32> to vector<4x8x8xf32>
    %33 = arith.mulf %32, %31 : vector<4x8x8xf32>
    %34 = arith.truncf %24 : vector<4x8x8xf32> to vector<4x8x8xbf16>
    "tpu.trace_start"() <{level = 10 : i32, message = "hqk,hkd->hqd"}> : () -> ()
    %cst_23 = arith.constant dense<0.000000e+00> : vector<4x8x8xf32>
    %35 = tpu.matmul %34, %14, %cst_23 {dimension_numbers = #tpu.dot_dimension_numbers<[2], [1], [1], [2], [0, 0, 0, 1, 1, 2], [0], [0]>} : vector<4x8x8xbf16>, vector<4x8x8xbf16>, vector<4x8x8xf32> -> vector<4x8x8xf32>
    "tpu.trace_stop"() : () -> ()
    %36 = arith.addf %33, %35 : vector<4x8x8xf32>
    %c0_24 = arith.constant 0 : index
    %c0_25 = arith.constant 0 : index
    %c0_26 = arith.constant 0 : index
    %37 = vector.load %arg12[%c0_24, %c0_25, %c0_26] : memref<4x8x8xf32, #tpu.memory_space<vmem>>, vector<4x8x8xf32>
    tpu.vector_store %arg12[%c0_24, %c0_25, %c0_26], %36 {strides = array<i32>} : memref<4x8x8xf32, #tpu.memory_space<vmem>>, vector<4x8x8xf32>,
    %c0_27 = arith.constant 0 : index
    %c0_28 = arith.constant 0 : index
    %c0_29 = arith.constant 0 : index
    %38 = vector.load %arg10[%c0_27, %c0_28, %c0_29] : memref<4x8x1xf32, #tpu.memory_space<vmem>>, vector<4x8x1xf32>
    tpu.vector_store %arg10[%c0_27, %c0_28, %c0_29], %19 {strides = array<i32>} : memref<4x8x1xf32, #tpu.memory_space<vmem>>, vector<4x8x1xf32>,
    %c0_i32_30 = arith.constant 0 : i32
    %39 = arith.cmpi eq, %arg2, %c0_i32_30 : i32
    %40 = arith.extui %39 : i1 to i32
    %c0_i32_31 = arith.constant 0 : i32
    %41 = arith.cmpi ne, %40, %c0_i32_31 : i32
    scf.if %41 {
      %c0_32 = arith.constant 0 : index
      %c0_33 = arith.constant 0 : index
      %c0_34 = arith.constant 0 : index
      %42 = vector.load %arg12[%c0_32, %c0_33, %c0_34] : memref<4x8x8xf32, #tpu.memory_space<vmem>>, vector<4x8x8xf32>
      %c0_35 = arith.constant 0 : index
      %c0_36 = arith.constant 0 : index
      %c0_37 = arith.constant 0 : index
      %43 = vector.load %arg11[%c0_35, %c0_36, %c0_37] : memref<4x8x1xf32, #tpu.memory_space<vmem>>, vector<4x8x1xf32>
      %44 = tpu.reciprocal %43 {approx = true} : vector<4x8x1xf32> -> vector<4x8x1xf32>
      %45 = vector.broadcast %44 : vector<4x8x1xf32> to vector<4x8x8xf32>
      %46 = arith.mulf %42, %45 : vector<4x8x8xf32>
      %47 = arith.truncf %46 : vector<4x8x8xf32> to vector<4x8x8xbf16>
      %48 = tpu.transpose %47, [1, 0, 2] : vector<4x8x8xbf16> -> vector<8x4x8xbf16>
      %49 = vector.shape_cast %48 : vector<8x4x8xbf16> to vector<8x32xbf16>
      %c0_38 = arith.constant 0 : index
      %c0_39 = arith.constant 0 : index
      %50 = vector.load %arg7[%c0_38, %c0_39] : memref<32x32xbf16, #tpu.memory_space<vmem>>, vector<32x32xbf16>
      %cst_40 = arith.constant dense<0.000000e+00> : vector<8x32xf32>
      %51 = tpu.matmul %49, %50, %cst_40 {dimension_numbers = #tpu.dot_dimension_numbers<[1], [0], [0], [1], [0, 0, 1, 1], [], []>} : vector<8x32xbf16>, vector<32x32xbf16>, vector<8x32xf32> -> vector<8x32xf32>
      %c0_41 = arith.constant 0 : index
      %c0_42 = arith.constant 0 : index
      %52 = vector.load %arg8[%c0_41, %c0_42] : memref<1x32xf32, #tpu.memory_space<vmem>>, vector<1x32xf32>
      %53 = vector.broadcast %52 : vector<1x32xf32> to vector<8x32xf32>
      %54 = arith.addf %51, %53 : vector<8x32xf32>
      %c0_43 = arith.constant 0 : index
      %c0_44 = arith.constant 0 : index
      %c0_45 = arith.constant 0 : index
      %55 = vector.load %arg3[%c0_43, %c0_44, %c0_45] : memref<1x8x32xf32, #tpu.memory_space<vmem>>, vector<1x8x32xf32>
      %56 = vector.shape_cast %55 : vector<1x8x32xf32> to vector<8x32xf32>
      %57 = arith.addf %56, %54 : vector<8x32xf32>
      %c0_46 = arith.constant 0 : index
      %c0_47 = arith.constant 0 : index
      %c0_48 = arith.constant 0 : index
      %58 = vector.load %arg9[%c0_46, %c0_47, %c0_48] : memref<1x8x32xf32, #tpu.memory_space<vmem>>, vector<1x8x32xf32>
      %59 = vector.shape_cast %58 : vector<1x8x32xf32> to vector<8x32xf32>
      %60 = vector.shape_cast %57 : vector<8x32xf32> to vector<1x8x32xf32>
      tpu.vector_store %arg9[%c0_46, %c0_47, %c0_48], %60 {strides = array<i32>} : memref<1x8x32xf32, #tpu.memory_space<vmem>>, vector<1x8x32xf32>,
    } else {
    }
    return
  }
  func.func @transform_0(%arg0: i32, %arg1: i32, %arg2: i32) -> (i32, i32, i32) {
    %c0_i32 = arith.constant 0 : i32
    %c0_i32_0 = arith.constant 0 : i32
    return %arg0, %arg1, %c0_i32 : i32, i32, i32
  }
  func.func @transform_1(%arg0: i32, %arg1: i32, %arg2: i32) -> (i32, i32, i32) {
    %c0_i32 = arith.constant 0 : i32
    %c0_i32_0 = arith.constant 0 : i32
    return %arg0, %arg1, %c0_i32 : i32, i32, i32
  }
  func.func @transform_2(%arg0: i32, %arg1: i32, %arg2: i32) -> (i32, i32, i32) {
    %c0_i32 = arith.constant 0 : i32
    %c0_i32_0 = arith.constant 0 : i32
    return %arg0, %arg2, %c0_i32 : i32, i32, i32
  }
  func.func @transform_3(%arg0: i32, %arg1: i32, %arg2: i32) -> (i32, i32, i32) {
    %c0_i32 = arith.constant 0 : i32
    %c0_i32_0 = arith.constant 0 : i32
    return %arg0, %arg2, %c0_i32 : i32, i32, i32
  }
  func.func @transform_4(%arg0: i32, %arg1: i32, %arg2: i32) -> (i32, i32) {
    %c0_i32 = arith.constant 0 : i32
    %c0_i32_0 = arith.constant 0 : i32
    %c0_i32_1 = arith.constant 0 : i32
    return %c0_i32, %c0_i32_0 : i32, i32
  }
  func.func @transform_5(%arg0: i32, %arg1: i32, %arg2: i32) -> (i32, i32) {
    %c0_i32 = arith.constant 0 : i32
    %c0_i32_0 = arith.constant 0 : i32
    %c0_i32_1 = arith.constant 0 : i32
    return %c0_i32, %c0_i32_0 : i32, i32
  }
  func.func @transform_6(%arg0: i32, %arg1: i32, %arg2: i32) -> (i32, i32, i32) {
    %c0_i32 = arith.constant 0 : i32
    %c0_i32_0 = arith.constant 0 : i32
    return %arg0, %arg1, %c0_i32 : i32, i32, i32
  }
}

module attributes {stable_mosaic.version = 11 : i64} {
  func.func @_moe_gate_kernel(%arg0: i32, %arg1: i32, %arg2: memref<1x8x32xf32, #tpu.memory_space<vmem>>, %arg3: memref<1x32xf32, #tpu.memory_space<vmem>>, %arg4: memref<1x32xf32, #tpu.memory_space<vmem>>, %arg5: memref<32x4xbf16, #tpu.memory_space<vmem>>, %arg6: memref<1x8x4xbf16, #tpu.memory_space<vmem>>, %arg7: memref<1x1x8x4xi32, #tpu.memory_space<vmem>>) attributes {dimension_semantics = [#tpu.dimension_semantics<parallel>, #tpu.dimension_semantics<parallel>], iteration_bounds = array<i64: 2, 1>, scalar_prefetch = 0 : i64, scratch_operands = 0 : i64, tpu.core_type = #tpu.core_type<tc>, window_params = [{transform_indices = @transform_0, window_bounds = array<i64: 1, 8, 32>}, {pipeline_mode = #tpu.pipeline_mode<synchronous>, transform_indices = @transform_1, window_bounds = array<i64: 1, 32>}, {pipeline_mode = #tpu.pipeline_mode<synchronous>, transform_indices = @transform_2, window_bounds = array<i64: 1, 32>}, {pipeline_mode = #tpu.pipeline_mode<synchronous>, transform_indices = @transform_3, window_bounds = array<i64: 32, 4>}, {transform_indices = @transform_4, window_bounds = array<i64: 1, 8, 4>}, {transform_indices = @transform_5, window_bounds = array<i64: 1, 1, 8, 4>}]} {
    %c0 = arith.constant 0 : index
    %c0_0 = arith.constant 0 : index
    %c0_1 = arith.constant 0 : index
    %0 = vector.load %arg2[%c0, %c0_0, %c0_1] : memref<1x8x32xf32, #tpu.memory_space<vmem>>, vector<1x8x32xf32>
    %1 = vector.shape_cast %0 : vector<1x8x32xf32> to vector<8x32xf32>
    %c0_2 = arith.constant 0 : index
    %c0_3 = arith.constant 0 : index
    %2 = vector.load %arg3[%c0_2, %c0_3] : memref<1x32xf32, #tpu.memory_space<vmem>>, vector<1x32xf32>
    %c0_4 = arith.constant 0 : index
    %c0_5 = arith.constant 0 : index
    %3 = vector.load %arg4[%c0_4, %c0_5] : memref<1x32xf32, #tpu.memory_space<vmem>>, vector<1x32xf32>
    %cst = arith.constant dense<0.000000e+00> : vector<8xf32>
    %4 = vector.multi_reduction <add>, %1, %cst [1] : vector<8x32xf32> to vector<8xf32>
    %5 = vector.shape_cast %4 : vector<8xf32> to vector<8x1xf32>
    %cst_6 = arith.constant 3.200000e+01 : f32
    %6 = vector.broadcast %cst_6 : f32 to vector<8x1xf32>
    %7 = arith.divf %5, %6 : vector<8x1xf32>
    %8 = vector.broadcast %7 : vector<8x1xf32> to vector<8x32xf32>
    %9 = arith.subf %1, %8 : vector<8x32xf32>
    %10 = arith.mulf %9, %9 : vector<8x32xf32>
    %cst_7 = arith.constant dense<0.000000e+00> : vector<8xf32>
    %11 = vector.multi_reduction <add>, %10, %cst_7 [1] : vector<8x32xf32> to vector<8xf32>
    %12 = vector.shape_cast %11 : vector<8xf32> to vector<8x1xf32>
    %cst_8 = arith.constant 3.200000e+01 : f32
    %13 = vector.broadcast %cst_8 : f32 to vector<8x1xf32>
    %14 = arith.divf %12, %13 : vector<8x1xf32>
    %15 = vector.broadcast %7 : vector<8x1xf32> to vector<8x32xf32>
    %16 = arith.subf %1, %15 : vector<8x32xf32>
    %cst_9 = arith.constant 9.99999974E-6 : f32
    %17 = vector.broadcast %cst_9 : f32 to vector<8x1xf32>
    %18 = arith.addf %14, %17 : vector<8x1xf32>
    %19 = math.rsqrt %18 : vector<8x1xf32>
    %20 = vector.broadcast %19 : vector<8x1xf32> to vector<8x32xf32>
    %21 = arith.mulf %16, %20 : vector<8x32xf32>
    %22 = vector.broadcast %2 : vector<1x32xf32> to vector<8x32xf32>
    %23 = arith.mulf %21, %22 : vector<8x32xf32>
    %24 = vector.broadcast %3 : vector<1x32xf32> to vector<8x32xf32>
    %25 = arith.addf %23, %24 : vector<8x32xf32>
    %26 = arith.truncf %25 : vector<8x32xf32> to vector<8x32xbf16>
    %c0_10 = arith.constant 0 : index
    %c0_11 = arith.constant 0 : index
    %27 = vector.load %arg5[%c0_10, %c0_11] : memref<32x4xbf16, #tpu.memory_space<vmem>>, vector<32x4xbf16>
    %cst_12 = arith.constant dense<0.000000e+00> : vector<8x4xf32>
    %28 = tpu.matmul %26, %27, %cst_12 {dimension_numbers = #tpu.dot_dimension_numbers<[1], [0], [0], [1], [0, 0, 1, 1], [], []>} : vector<8x32xbf16>, vector<32x4xbf16>, vector<8x4xf32> -> vector<8x4xf32>
    %29 = arith.negf %28 : vector<8x4xf32>
    %30 = math.exp %29 : vector<8x4xf32>
    %cst_13 = arith.constant 1.000000e+00 : f32
    %31 = vector.broadcast %cst_13 : f32 to vector<8x4xf32>
    %32 = arith.addf %31, %30 : vector<8x4xf32>
    %33 = arith.divf %31, %32 : vector<8x4xf32>
    %34 = tpu.iota {dimensions = array<i32: 1>} : vector<8x4xi32>
    %false = arith.constant false
    %35 = vector.broadcast %false : i1 to vector<8x4xi1>
    %cst_14 = arith.constant dense<0xFF800000> : vector<8xf32>
    %36 = vector.multi_reduction <maximumf>, %33, %cst_14 [1] : vector<8x4xf32> to vector<8xf32>
    %37 = vector.shape_cast %36 : vector<8xf32> to vector<8x1xf32>
    %38 = vector.broadcast %37 : vector<8x1xf32> to vector<8x4xf32>
    %39 = arith.cmpf oeq, %33, %38 : vector<8x4xf32>
    %c4_i32 = arith.constant 4 : i32
    %40 = vector.broadcast %c4_i32 : i32 to vector<8x4xi32>
    %41 = arith.select %39, %34, %40 : vector<8x4xi1>, vector<8x4xi32>
    %cst_15 = arith.constant dense<2147483647> : vector<8xi32>
    %42 = vector.multi_reduction <minsi>, %41, %cst_15 [1] : vector<8x4xi32> to vector<8xi32>
    %43 = vector.shape_cast %42 : vector<8xi32> to vector<8x1xi32>
    %44 = vector.broadcast %43 : vector<8x1xi32> to vector<8x4xi32>
    %45 = arith.cmpi eq, %34, %44 : vector<8x4xi32>
    %46 = arith.ori %35, %45 : vector<8x4xi1>
    %cst_16 = arith.constant -1.000000e+00 : f32
    %47 = vector.broadcast %cst_16 : f32 to vector<8x4xf32>
    %48 = arith.select %45, %47, %33 : vector<8x4xi1>, vector<8x4xf32>
    %cst_17 = arith.constant dense<0xFF800000> : vector<8xf32>
    %49 = vector.multi_reduction <maximumf>, %48, %cst_17 [1] : vector<8x4xf32> to vector<8xf32>
    %50 = vector.shape_cast %49 : vector<8xf32> to vector<8x1xf32>
    %51 = vector.broadcast %50 : vector<8x1xf32> to vector<8x4xf32>
    %52 = arith.cmpf oeq, %48, %51 : vector<8x4xf32>
    %c4_i32_18 = arith.constant 4 : i32
    %53 = vector.broadcast %c4_i32_18 : i32 to vector<8x4xi32>
    %54 = arith.select %52, %34, %53 : vector<8x4xi1>, vector<8x4xi32>
    %cst_19 = arith.constant dense<2147483647> : vector<8xi32>
    %55 = vector.multi_reduction <minsi>, %54, %cst_19 [1] : vector<8x4xi32> to vector<8xi32>
    %56 = vector.shape_cast %55 : vector<8xi32> to vector<8x1xi32>
    %57 = vector.broadcast %56 : vector<8x1xi32> to vector<8x4xi32>
    %58 = arith.cmpi eq, %34, %57 : vector<8x4xi32>
    %59 = arith.ori %46, %58 : vector<8x4xi1>
    %cst_20 = arith.constant 0.000000e+00 : f32
    %60 = vector.broadcast %cst_20 : f32 to vector<8x4xf32>
    %61 = arith.select %59, %33, %60 : vector<8x4xi1>, vector<8x4xf32>
    %62 = arith.truncf %61 : vector<8x4xf32> to vector<8x4xbf16>
    %c0_21 = arith.constant 0 : index
    %c0_22 = arith.constant 0 : index
    %c0_23 = arith.constant 0 : index
    %63 = vector.load %arg6[%c0_21, %c0_22, %c0_23] : memref<1x8x4xbf16, #tpu.memory_space<vmem>>, vector<1x8x4xbf16>
    %64 = vector.shape_cast %63 : vector<1x8x4xbf16> to vector<8x4xbf16>
    %65 = vector.shape_cast %62 : vector<8x4xbf16> to vector<1x8x4xbf16>
    tpu.vector_store %arg6[%c0_21, %c0_22, %c0_23], %65 {strides = array<i32>} : memref<1x8x4xbf16, #tpu.memory_space<vmem>>, vector<1x8x4xbf16>,
    %66 = arith.extui %59 : vector<8x4xi1> to vector<8x4xi32>
    %cst_24 = arith.constant dense<0> : vector<4xi32>
    %67 = vector.multi_reduction <add>, %66, %cst_24 [0] : vector<8x4xi32> to vector<4xi32>
    %68 = vector.shape_cast %67 : vector<4xi32> to vector<1x4xi32>
    %69 = vector.shape_cast %68 : vector<1x4xi32> to vector<1x4xi32>
    %70 = vector.broadcast %69 : vector<1x4xi32> to vector<8x4xi32>
    %c0_25 = arith.constant 0 : index
    %c0_26 = arith.constant 0 : index
    %c0_27 = arith.constant 0 : index
    %c0_28 = arith.constant 0 : index
    %71 = vector.load %arg7[%c0_25, %c0_26, %c0_27, %c0_28] : memref<1x1x8x4xi32, #tpu.memory_space<vmem>>, vector<1x1x8x4xi32>
    %72 = vector.shape_cast %71 : vector<1x1x8x4xi32> to vector<8x4xi32>
    %73 = vector.shape_cast %70 : vector<8x4xi32> to vector<1x1x8x4xi32>
    tpu.vector_store %arg7[%c0_25, %c0_26, %c0_27, %c0_28], %73 {strides = array<i32>} : memref<1x1x8x4xi32, #tpu.memory_space<vmem>>, vector<1x1x8x4xi32>,
    return
  }
  func.func @transform_0(%arg0: i32, %arg1: i32) -> (i32, i32, i32) {
    %c0_i32 = arith.constant 0 : i32
    %c0_i32_0 = arith.constant 0 : i32
    return %arg0, %arg1, %c0_i32 : i32, i32, i32
  }
  func.func @transform_1(%arg0: i32, %arg1: i32) -> (i32, i32) {
    %c0_i32 = arith.constant 0 : i32
    %c0_i32_0 = arith.constant 0 : i32
    %c0_i32_1 = arith.constant 0 : i32
    return %c0_i32, %c0_i32_0 : i32, i32
  }
  func.func @transform_2(%arg0: i32, %arg1: i32) -> (i32, i32) {
    %c0_i32 = arith.constant 0 : i32
    %c0_i32_0 = arith.constant 0 : i32
    %c0_i32_1 = arith.constant 0 : i32
    return %c0_i32, %c0_i32_0 : i32, i32
  }
  func.func @transform_3(%arg0: i32, %arg1: i32) -> (i32, i32) {
    %c0_i32 = arith.constant 0 : i32
    %c0_i32_0 = arith.constant 0 : i32
    %c0_i32_1 = arith.constant 0 : i32
    return %c0_i32, %c0_i32_0 : i32, i32
  }
  func.func @transform_4(%arg0: i32, %arg1: i32) -> (i32, i32, i32) {
    %c0_i32 = arith.constant 0 : i32
    %c0_i32_0 = arith.constant 0 : i32
    return %arg0, %arg1, %c0_i32 : i32, i32, i32
  }
  func.func @transform_5(%arg0: i32, %arg1: i32) -> (i32, i32, i32, i32) {
    %c0_i32 = arith.constant 0 : i32
    %c0_i32_0 = arith.constant 0 : i32
    %c0_i32_1 = arith.constant 0 : i32
    return %arg0, %arg1, %c0_i32, %c0_i32_0 : i32, i32, i32, i32
  }
}

module attributes {stable_mosaic.version = 11 : i64} {
  func.func @_moe_expert_kernel(%arg0: i32, %arg1: i32, %arg2: i32, %arg3: memref<2x4xi32, #tpu.memory_space<smem>>, %arg4: memref<2x4xi32, #tpu.memory_space<smem>>, %arg5: memref<1x8x32xf32, #tpu.memory_space<vmem>>, %arg6: memref<1x32xf32, #tpu.memory_space<vmem>>, %arg7: memref<1x32xf32, #tpu.memory_space<vmem>>, %arg8: memref<1x8x4xbf16, #tpu.memory_space<vmem>>, %arg9: memref<1x32x16xbf16, #tpu.memory_space<vmem>>, %arg10: memref<1x1x16xf32, #tpu.memory_space<vmem>>, %arg11: memref<1x16x32xbf16, #tpu.memory_space<vmem>>, %arg12: memref<1x1x32xf32, #tpu.memory_space<vmem>>, %arg13: memref<1x8x32xf32, #tpu.memory_space<vmem>>, %arg14: memref<8x32xbf16, #tpu.memory_space<vmem>>, %arg15: memref<8x32xf32, #tpu.memory_space<vmem>>) attributes {dimension_semantics = [#tpu.dimension_semantics<parallel>, #tpu.dimension_semantics<parallel>, #tpu.dimension_semantics<arbitrary>], iteration_bounds = array<i64: 2, 1, 4>, scalar_prefetch = 2 : i64, scratch_operands = 2 : i64, tpu.core_type = #tpu.core_type<tc>, window_params = [{transform_indices = @transform_0, window_bounds = array<i64: 1, 8, 32>}, {pipeline_mode = #tpu.pipeline_mode<synchronous>, transform_indices = @transform_1, window_bounds = array<i64: 1, 32>}, {pipeline_mode = #tpu.pipeline_mode<synchronous>, transform_indices = @transform_2, window_bounds = array<i64: 1, 32>}, {transform_indices = @transform_3, window_bounds = array<i64: 1, 8, 4>}, {transform_indices = @transform_4, window_bounds = array<i64: 1, 32, 16>}, {transform_indices = @transform_5, window_bounds = array<i64: 1, 1, 16>}, {transform_indices = @transform_6, window_bounds = array<i64: 1, 16, 32>}, {transform_indices = @transform_7, window_bounds = array<i64: 1, 1, 32>}, {transform_indices = @transform_8, window_bounds = array<i64: 1, 8, 32>}]} {
    %c0_i32 = arith.constant 0 : i32
    %0 = arith.cmpi eq, %arg2, %c0_i32 : i32
    %1 = arith.extui %0 : i1 to i32
    %c0_i32_0 = arith.constant 0 : i32
    %2 = arith.cmpi ne, %1, %c0_i32_0 : i32
    scf.if %2 {
      %c0 = arith.constant 0 : index
      %c0_4 = arith.constant 0 : index
      %c0_5 = arith.constant 0 : index
      %14 = vector.load %arg5[%c0, %c0_4, %c0_5] : memref<1x8x32xf32, #tpu.memory_space<vmem>>, vector<1x8x32xf32>
      %15 = vector.shape_cast %14 : vector<1x8x32xf32> to vector<8x32xf32>
      %c0_6 = arith.constant 0 : index
      %c0_7 = arith.constant 0 : index
      %16 = vector.load %arg6[%c0_6, %c0_7] : memref<1x32xf32, #tpu.memory_space<vmem>>, vector<1x32xf32>
      %c0_8 = arith.constant 0 : index
      %c0_9 = arith.constant 0 : index
      %17 = vector.load %arg7[%c0_8, %c0_9] : memref<1x32xf32, #tpu.memory_space<vmem>>, vector<1x32xf32>
      %cst = arith.constant dense<0.000000e+00> : vector<8xf32>
      %18 = vector.multi_reduction <add>, %15, %cst [1] : vector<8x32xf32> to vector<8xf32>
      %19 = vector.shape_cast %18 : vector<8xf32> to vector<8x1xf32>
      %cst_10 = arith.constant 3.200000e+01 : f32
      %20 = vector.broadcast %cst_10 : f32 to vector<8x1xf32>
      %21 = arith.divf %19, %20 : vector<8x1xf32>
      %22 = vector.broadcast %21 : vector<8x1xf32> to vector<8x32xf32>
      %23 = arith.subf %15, %22 : vector<8x32xf32>
      %24 = arith.mulf %23, %23 : vector<8x32xf32>
      %cst_11 = arith.constant dense<0.000000e+00> : vector<8xf32>
      %25 = vector.multi_reduction <add>, %24, %cst_11 [1] : vector<8x32xf32> to vector<8xf32>
      %26 = vector.shape_cast %25 : vector<8xf32> to vector<8x1xf32>
      %cst_12 = arith.constant 3.200000e+01 : f32
      %27 = vector.broadcast %cst_12 : f32 to vector<8x1xf32>
      %28 = arith.divf %26, %27 : vector<8x1xf32>
      %29 = vector.broadcast %21 : vector<8x1xf32> to vector<8x32xf32>
      %30 = arith.subf %15, %29 : vector<8x32xf32>
      %cst_13 = arith.constant 9.99999974E-6 : f32
      %31 = vector.broadcast %cst_13 : f32 to vector<8x1xf32>
      %32 = arith.addf %28, %31 : vector<8x1xf32>
      %33 = math.rsqrt %32 : vector<8x1xf32>
      %34 = vector.broadcast %33 : vector<8x1xf32> to vector<8x32xf32>
      %35 = arith.mulf %30, %34 : vector<8x32xf32>
      %36 = vector.broadcast %16 : vector<1x32xf32> to vector<8x32xf32>
      %37 = arith.mulf %35, %36 : vector<8x32xf32>
      %38 = vector.broadcast %17 : vector<1x32xf32> to vector<8x32xf32>
      %39 = arith.addf %37, %38 : vector<8x32xf32>
      %40 = arith.truncf %39 : vector<8x32xf32> to vector<8x32xbf16>
      %c0_14 = arith.constant 0 : index
      %c0_15 = arith.constant 0 : index
      %41 = vector.load %arg14[%c0_14, %c0_15] : memref<8x32xbf16, #tpu.memory_space<vmem>>, vector<8x32xbf16>
      tpu.vector_store %arg14[%c0_14, %c0_15], %40 {strides = array<i32>} : memref<8x32xbf16, #tpu.memory_space<vmem>>, vector<8x32xbf16>,
      %cst_16 = arith.constant 0.000000e+00 : f32
      %42 = vector.broadcast %cst_16 : f32 to vector<8x32xf32>
      %c0_17 = arith.constant 0 : index
      %c0_18 = arith.constant 0 : index
      %43 = vector.load %arg15[%c0_17, %c0_18] : memref<8x32xf32, #tpu.memory_space<vmem>>, vector<8x32xf32>
      tpu.vector_store %arg15[%c0_17, %c0_18], %42 {strides = array<i32>} : memref<8x32xf32, #tpu.memory_space<vmem>>, vector<8x32xf32>,
    } else {
    }
    %c1_i32 = arith.constant 1 : i32
    %3 = arith.muli %arg0, %c1_i32 : i32
    %4 = arith.addi %3, %arg1 : i32
    %5 = arith.index_cast %4 : i32 to index
    %6 = arith.index_cast %arg2 : i32 to index
    %7 = memref.load %arg3[%5, %6] : memref<2x4xi32, #tpu.memory_space<smem>>
    %c0_i32_1 = arith.constant 0 : i32
    %8 = arith.cmpi sgt, %7, %c0_i32_1 : i32
    %9 = arith.extui %8 : i1 to i32
    %c0_i32_2 = arith.constant 0 : i32
    %10 = arith.cmpi ne, %9, %c0_i32_2 : i32
    scf.if %10 {
      %c0 = arith.constant 0 : index
      %c0_4 = arith.constant 0 : index
      %14 = vector.load %arg14[%c0, %c0_4] : memref<8x32xbf16, #tpu.memory_space<vmem>>, vector<8x32xbf16>
      %c0_5 = arith.constant 0 : index
      %c0_6 = arith.constant 0 : index
      %c0_7 = arith.constant 0 : index
      %15 = vector.load %arg9[%c0_5, %c0_6, %c0_7] : memref<1x32x16xbf16, #tpu.memory_space<vmem>>, vector<1x32x16xbf16>
      %16 = vector.shape_cast %15 : vector<1x32x16xbf16> to vector<32x16xbf16>
      %cst = arith.constant dense<0.000000e+00> : vector<8x16xf32>
      %17 = tpu.matmul %14, %16, %cst {dimension_numbers = #tpu.dot_dimension_numbers<[1], [0], [0], [1], [0, 0, 1, 1], [], []>} : vector<8x32xbf16>, vector<32x16xbf16>, vector<8x16xf32> -> vector<8x16xf32>
      %c0_8 = arith.constant 0 : index
      %c0_9 = arith.constant 0 : index
      %c0_10 = arith.constant 0 : index
      %18 = vector.load %arg10[%c0_8, %c0_9, %c0_10] : memref<1x1x16xf32, #tpu.memory_space<vmem>>, vector<1x1x16xf32>
      %19 = vector.shape_cast %18 : vector<1x1x16xf32> to vector<1x16xf32>
      %20 = vector.broadcast %19 : vector<1x16xf32> to vector<8x16xf32>
      %21 = arith.addf %17, %20 : vector<8x16xf32>
      %cst_11 = arith.constant 0.000000e+00 : f32
      %22 = vector.broadcast %cst_11 : f32 to vector<8x16xf32>
      %23 = arith.maximumf %21, %22 : vector<8x16xf32>
      %24 = arith.truncf %23 : vector<8x16xf32> to vector<8x16xbf16>
      %c0_12 = arith.constant 0 : index
      %c0_13 = arith.constant 0 : index
      %c0_14 = arith.constant 0 : index
      %25 = vector.load %arg11[%c0_12, %c0_13, %c0_14] : memref<1x16x32xbf16, #tpu.memory_space<vmem>>, vector<1x16x32xbf16>
      %26 = vector.shape_cast %25 : vector<1x16x32xbf16> to vector<16x32xbf16>
      %cst_15 = arith.constant dense<0.000000e+00> : vector<8x32xf32>
      %27 = tpu.matmul %24, %26, %cst_15 {dimension_numbers = #tpu.dot_dimension_numbers<[1], [0], [0], [1], [0, 0, 1, 1], [], []>} : vector<8x16xbf16>, vector<16x32xbf16>, vector<8x32xf32> -> vector<8x32xf32>
      %c0_16 = arith.constant 0 : index
      %c0_17 = arith.constant 0 : index
      %c0_18 = arith.constant 0 : index
      %28 = vector.load %arg12[%c0_16, %c0_17, %c0_18] : memref<1x1x32xf32, #tpu.memory_space<vmem>>, vector<1x1x32xf32>
      %29 = vector.shape_cast %28 : vector<1x1x32xf32> to vector<1x32xf32>
      %30 = vector.broadcast %29 : vector<1x32xf32> to vector<8x32xf32>
      %31 = arith.addf %27, %30 : vector<8x32xf32>
      %c0_19 = arith.constant 0 : index
      %c0_20 = arith.constant 0 : index
      %c0_21 = arith.constant 0 : index
      %32 = vector.load %arg8[%c0_19, %c0_20, %c0_21] : memref<1x8x4xbf16, #tpu.memory_space<vmem>>, vector<1x8x4xbf16>
      %33 = vector.shape_cast %32 : vector<1x8x4xbf16> to vector<8x4xbf16>
      %34 = arith.extf %33 : vector<8x4xbf16> to vector<8x4xf32>
      %35 = tpu.iota {dimensions = array<i32: 1>} : vector<8x4xi32>
      %36 = vector.broadcast %arg2 : i32 to vector<8x4xi32>
      %37 = arith.cmpi eq, %35, %36 : vector<8x4xi32>
      %cst_22 = arith.constant 0.000000e+00 : f32
      %38 = vector.broadcast %cst_22 : f32 to vector<8x4xf32>
      %39 = arith.select %37, %34, %38 : vector<8x4xi1>, vector<8x4xf32>
      %cst_23 = arith.constant dense<0.000000e+00> : vector<8xf32>
      %40 = vector.multi_reduction <add>, %39, %cst_23 [1] : vector<8x4xf32> to vector<8xf32>
      %41 = vector.shape_cast %40 : vector<8xf32> to vector<8x1xf32>
      %c0_24 = arith.constant 0 : index
      %c0_25 = arith.constant 0 : index
      %42 = vector.load %arg15[%c0_24, %c0_25] : memref<8x32xf32, #tpu.memory_space<vmem>>, vector<8x32xf32>
      %43 = vector.broadcast %41 : vector<8x1xf32> to vector<8x32xf32>
      %44 = arith.mulf %43, %31 : vector<8x32xf32>
      %45 = arith.addf %42, %44 : vector<8x32xf32>
      %c0_26 = arith.constant 0 : index
      %c0_27 = arith.constant 0 : index
      %46 = vector.load %arg15[%c0_26, %c0_27] : memref<8x32xf32, #tpu.memory_space<vmem>>, vector<8x32xf32>
      tpu.vector_store %arg15[%c0_26, %c0_27], %45 {strides = array<i32>} : memref<8x32xf32, #tpu.memory_space<vmem>>, vector<8x32xf32>,
    } else {
    }
    %c3_i32 = arith.constant 3 : i32
    %11 = arith.cmpi eq, %arg2, %c3_i32 : i32
    %12 = arith.extui %11 : i1 to i32
    %c0_i32_3 = arith.constant 0 : i32
    %13 = arith.cmpi ne, %12, %c0_i32_3 : i32
    scf.if %13 {
      %c0 = arith.constant 0 : index
      %c0_4 = arith.constant 0 : index
      %c0_5 = arith.constant 0 : index
      %14 = vector.load %arg5[%c0, %c0_4, %c0_5] : memref<1x8x32xf32, #tpu.memory_space<vmem>>, vector<1x8x32xf32>
      %15 = vector.shape_cast %14 : vector<1x8x32xf32> to vector<8x32xf32>
      %c0_6 = arith.constant 0 : index
      %c0_7 = arith.constant 0 : index
      %16 = vector.load %arg15[%c0_6, %c0_7] : memref<8x32xf32, #tpu.memory_space<vmem>>, vector<8x32xf32>
      %17 = arith.addf %15, %16 : vector<8x32xf32>
      %c0_8 = arith.constant 0 : index
      %c0_9 = arith.constant 0 : index
      %c0_10 = arith.constant 0 : index
      %18 = vector.load %arg13[%c0_8, %c0_9, %c0_10] : memref<1x8x32xf32, #tpu.memory_space<vmem>>, vector<1x8x32xf32>
      %19 = vector.shape_cast %18 : vector<1x8x32xf32> to vector<8x32xf32>
      %20 = vector.shape_cast %17 : vector<8x32xf32> to vector<1x8x32xf32>
      tpu.vector_store %arg13[%c0_8, %c0_9, %c0_10], %20 {strides = array<i32>} : memref<1x8x32xf32, #tpu.memory_space<vmem>>, vector<1x8x32xf32>,
    } else {
    }
    return
  }
  func.func @transform_0(%arg0: i32, %arg1: i32, %arg2: i32, %arg3: memref<2x4xi32, #tpu.memory_space<smem>>, %arg4: memref<2x4xi32, #tpu.memory_space<smem>>) -> (i32, i32, i32) {
    %c0_i32 = arith.constant 0 : i32
    %c0_i32_0 = arith.constant 0 : i32
    return %arg0, %arg1, %c0_i32 : i32, i32, i32
  }
  func.func @transform_1(%arg0: i32, %arg1: i32, %arg2: i32, %arg3: memref<2x4xi32, #tpu.memory_space<smem>>, %arg4: memref<2x4xi32, #tpu.memory_space<smem>>) -> (i32, i32) {
    %c0_i32 = arith.constant 0 : i32
    %c0_i32_0 = arith.constant 0 : i32
    %c0_i32_1 = arith.constant 0 : i32
    return %c0_i32, %c0_i32_0 : i32, i32
  }
  func.func @transform_2(%arg0: i32, %arg1: i32, %arg2: i32, %arg3: memref<2x4xi32, #tpu.memory_space<smem>>, %arg4: memref<2x4xi32, #tpu.memory_space<smem>>) -> (i32, i32) {
    %c0_i32 = arith.constant 0 : i32
    %c0_i32_0 = arith.constant 0 : i32
    %c0_i32_1 = arith.constant 0 : i32
    return %c0_i32, %c0_i32_0 : i32, i32
  }
  func.func @transform_3(%arg0: i32, %arg1: i32, %arg2: i32, %arg3: memref<2x4xi32, #tpu.memory_space<smem>>, %arg4: memref<2x4xi32, #tpu.memory_space<smem>>) -> (i32, i32, i32) {
    %c0_i32 = arith.constant 0 : i32
    %c0_i32_0 = arith.constant 0 : i32
    return %arg0, %arg1, %c0_i32 : i32, i32, i32
  }
  func.func @transform_4(%arg0: i32, %arg1: i32, %arg2: i32, %arg3: memref<2x4xi32, #tpu.memory_space<smem>>, %arg4: memref<2x4xi32, #tpu.memory_space<smem>>) -> (i32, i32, i32) {
    %c1_i32 = arith.constant 1 : i32
    %0 = arith.muli %arg0, %c1_i32 : i32
    %1 = arith.addi %0, %arg1 : i32
    %2 = arith.index_cast %1 : i32 to index
    %3 = arith.index_cast %arg2 : i32 to index
    %4 = memref.load %arg4[%2, %3] : memref<2x4xi32, #tpu.memory_space<smem>>
    %c0_i32 = arith.constant 0 : i32
    %c0_i32_0 = arith.constant 0 : i32
    %c0_i32_1 = arith.constant 0 : i32
    return %4, %c0_i32, %c0_i32_0 : i32, i32, i32
  }
  func.func @transform_5(%arg0: i32, %arg1: i32, %arg2: i32, %arg3: memref<2x4xi32, #tpu.memory_space<smem>>, %arg4: memref<2x4xi32, #tpu.memory_space<smem>>) -> (i32, i32, i32) {
    %c1_i32 = arith.constant 1 : i32
    %0 = arith.muli %arg0, %c1_i32 : i32
    %1 = arith.addi %0, %arg1 : i32
    %2 = arith.index_cast %1 : i32 to index
    %3 = arith.index_cast %arg2 : i32 to index
    %4 = memref.load %arg4[%2, %3] : memref<2x4xi32, #tpu.memory_space<smem>>
    %c0_i32 = arith.constant 0 : i32
    %c0_i32_0 = arith.constant 0 : i32
    %c0_i32_1 = arith.constant 0 : i32
    return %4, %c0_i32, %c0_i32_0 : i32, i32, i32
  }
  func.func @transform_6(%arg0: i32, %arg1: i32, %arg2: i32, %arg3: memref<2x4xi32, #tpu.memory_space<smem>>, %arg4: memref<2x4xi32, #tpu.memory_space<smem>>) -> (i32, i32, i32) {
    %c1_i32 = arith.constant 1 : i32
    %0 = arith.muli %arg0, %c1_i32 : i32
    %1 = arith.addi %0, %arg1 : i32
    %2 = arith.index_cast %1 : i32 to index
    %3 = arith.index_cast %arg2 : i32 to index
    %4 = memref.load %arg4[%2, %3] : memref<2x4xi32, #tpu.memory_space<smem>>
    %c0_i32 = arith.constant 0 : i32
    %c0_i32_0 = arith.constant 0 : i32
    %c0_i32_1 = arith.constant 0 : i32
    return %4, %c0_i32, %c0_i32_0 : i32, i32, i32
  }
  func.func @transform_7(%arg0: i32, %arg1: i32, %arg2: i32, %arg3: memref<2x4xi32, #tpu.memory_space<smem>>, %arg4: memref<2x4xi32, #tpu.memory_space<smem>>) -> (i32, i32, i32) {
    %c1_i32 = arith.constant 1 : i32
    %0 = arith.muli %arg0, %c1_i32 : i32
    %1 = arith.addi %0, %arg1 : i32
    %2 = arith.index_cast %1 : i32 to index
    %3 = arith.index_cast %arg2 : i32 to index
    %4 = memref.load %arg4[%2, %3] : memref<2x4xi32, #tpu.memory_space<smem>>
    %c0_i32 = arith.constant 0 : i32
    %c0_i32_0 = arith.constant 0 : i32
    %c0_i32_1 = arith.constant 0 : i32
    return %4, %c0_i32, %c0_i32_0 : i32, i32, i32
  }
  func.func @transform_8(%arg0: i32, %arg1: i32, %arg2: i32, %arg3: memref<2x4xi32, #tpu.memory_space<smem>>, %arg4: memref<2x4xi32, #tpu.memory_space<smem>>) -> (i32, i32, i32) {
    %c0_i32 = arith.constant 0 : i32
    %c0_i32_0 = arith.constant 0 : i32
    return %arg0, %arg1, %c0_i32 : i32, i32, i32
  }
}

module attributes {stable_mosaic.version = 11 : i64} {
  func.func @_outnorm_kernel(%arg0: i32, %arg1: memref<16x32xf32, #tpu.memory_space<vmem>>, %arg2: memref<1x32xf32, #tpu.memory_space<vmem>>, %arg3: memref<1x32xf32, #tpu.memory_space<vmem>>, %arg4: memref<16x32xbf16, #tpu.memory_space<vmem>>) attributes {dimension_semantics = [#tpu.dimension_semantics<parallel>], iteration_bounds = array<i64: 1>, scalar_prefetch = 0 : i64, scratch_operands = 0 : i64, tpu.core_type = #tpu.core_type<tc>, window_params = [{transform_indices = @transform_0, window_bounds = array<i64: 16, 32>}, {pipeline_mode = #tpu.pipeline_mode<synchronous>, transform_indices = @transform_1, window_bounds = array<i64: 1, 32>}, {pipeline_mode = #tpu.pipeline_mode<synchronous>, transform_indices = @transform_2, window_bounds = array<i64: 1, 32>}, {transform_indices = @transform_3, window_bounds = array<i64: 16, 32>}]} {
    %c0 = arith.constant 0 : index
    %c0_0 = arith.constant 0 : index
    %0 = vector.load %arg1[%c0, %c0_0] : memref<16x32xf32, #tpu.memory_space<vmem>>, vector<16x32xf32>
    %c0_1 = arith.constant 0 : index
    %c0_2 = arith.constant 0 : index
    %1 = vector.load %arg2[%c0_1, %c0_2] : memref<1x32xf32, #tpu.memory_space<vmem>>, vector<1x32xf32>
    %c0_3 = arith.constant 0 : index
    %c0_4 = arith.constant 0 : index
    %2 = vector.load %arg3[%c0_3, %c0_4] : memref<1x32xf32, #tpu.memory_space<vmem>>, vector<1x32xf32>
    %cst = arith.constant dense<0.000000e+00> : vector<16xf32>
    %3 = vector.multi_reduction <add>, %0, %cst [1] : vector<16x32xf32> to vector<16xf32>
    %4 = vector.shape_cast %3 : vector<16xf32> to vector<16x1xf32>
    %cst_5 = arith.constant 3.200000e+01 : f32
    %5 = vector.broadcast %cst_5 : f32 to vector<16x1xf32>
    %6 = arith.divf %4, %5 : vector<16x1xf32>
    %7 = vector.broadcast %6 : vector<16x1xf32> to vector<16x32xf32>
    %8 = arith.subf %0, %7 : vector<16x32xf32>
    %9 = arith.mulf %8, %8 : vector<16x32xf32>
    %cst_6 = arith.constant dense<0.000000e+00> : vector<16xf32>
    %10 = vector.multi_reduction <add>, %9, %cst_6 [1] : vector<16x32xf32> to vector<16xf32>
    %11 = vector.shape_cast %10 : vector<16xf32> to vector<16x1xf32>
    %cst_7 = arith.constant 3.200000e+01 : f32
    %12 = vector.broadcast %cst_7 : f32 to vector<16x1xf32>
    %13 = arith.divf %11, %12 : vector<16x1xf32>
    %14 = vector.broadcast %6 : vector<16x1xf32> to vector<16x32xf32>
    %15 = arith.subf %0, %14 : vector<16x32xf32>
    %cst_8 = arith.constant 9.99999974E-6 : f32
    %16 = vector.broadcast %cst_8 : f32 to vector<16x1xf32>
    %17 = arith.addf %13, %16 : vector<16x1xf32>
    %18 = math.rsqrt %17 : vector<16x1xf32>
    %19 = vector.broadcast %18 : vector<16x1xf32> to vector<16x32xf32>
    %20 = arith.mulf %15, %19 : vector<16x32xf32>
    %21 = vector.broadcast %1 : vector<1x32xf32> to vector<16x32xf32>
    %22 = arith.mulf %20, %21 : vector<16x32xf32>
    %23 = vector.broadcast %2 : vector<1x32xf32> to vector<16x32xf32>
    %24 = arith.addf %22, %23 : vector<16x32xf32>
    %25 = arith.truncf %24 : vector<16x32xf32> to vector<16x32xbf16>
    %c0_9 = arith.constant 0 : index
    %c0_10 = arith.constant 0 : index
    %26 = vector.load %arg4[%c0_9, %c0_10] : memref<16x32xbf16, #tpu.memory_space<vmem>>, vector<16x32xbf16>
    tpu.vector_store %arg4[%c0_9, %c0_10], %25 {strides = array<i32>} : memref<16x32xbf16, #tpu.memory_space<vmem>>, vector<16x32xbf16>,
    return
  }
  func.func @transform_0(%arg0: i32) -> (i32, i32) {
    %c0_i32 = arith.constant 0 : i32
    %c0_i32_0 = arith.constant 0 : i32
    return %arg0, %c0_i32 : i32, i32
  }
  func.func @transform_1(%arg0: i32) -> (i32, i32) {
    %c0_i32 = arith.constant 0 : i32
    %c0_i32_0 = arith.constant 0 : i32
    %c0_i32_1 = arith.constant 0 : i32
    return %c0_i32, %c0_i32_0 : i32, i32
  }
  func.func @transform_2(%arg0: i32) -> (i32, i32) {
    %c0_i32 = arith.constant 0 : i32
    %c0_i32_0 = arith.constant 0 : i32
    %c0_i32_1 = arith.constant 0 : i32
    return %c0_i32, %c0_i32_0 : i32, i32
  }
  func.func @transform_3(%arg0: i32) -> (i32, i32) {
    %c0_i32 = arith.constant 0 : i32
    %c0_i32_0 = arith.constant 0 : i32
    return %arg0, %c0_i32 : i32, i32
  }
}

module attributes {stable_mosaic.version = 11 : i64} {
  func.func @_head_kernel(%arg0: i32, %arg1: i32, %arg2: memref<16x32xbf16, #tpu.memory_space<vmem>>, %arg3: memref<32x128xbf16, #tpu.memory_space<vmem>>, %arg4: memref<1x128xf32, #tpu.memory_space<vmem>>, %arg5: memref<16x128xf32, #tpu.memory_space<vmem>>) attributes {dimension_semantics = [#tpu.dimension_semantics<parallel>, #tpu.dimension_semantics<parallel>], iteration_bounds = array<i64: 1, 1>, scalar_prefetch = 0 : i64, scratch_operands = 0 : i64, tpu.core_type = #tpu.core_type<tc>, window_params = [{transform_indices = @transform_0, window_bounds = array<i64: 16, 32>}, {transform_indices = @transform_1, window_bounds = array<i64: 32, 128>}, {transform_indices = @transform_2, window_bounds = array<i64: 1, 128>}, {transform_indices = @transform_3, window_bounds = array<i64: 16, 128>}]} {
    %c0 = arith.constant 0 : index
    %c0_0 = arith.constant 0 : index
    %0 = vector.load %arg2[%c0, %c0_0] : memref<16x32xbf16, #tpu.memory_space<vmem>>, vector<16x32xbf16>
    %c0_1 = arith.constant 0 : index
    %c0_2 = arith.constant 0 : index
    %1 = vector.load %arg3[%c0_1, %c0_2] : memref<32x128xbf16, #tpu.memory_space<vmem>>, vector<32x128xbf16>
    %cst = arith.constant dense<0.000000e+00> : vector<16x128xf32>
    %2 = tpu.matmul %0, %1, %cst {dimension_numbers = #tpu.dot_dimension_numbers<[1], [0], [0], [1], [0, 0, 1, 1], [], []>} : vector<16x32xbf16>, vector<32x128xbf16>, vector<16x128xf32> -> vector<16x128xf32>
    %c0_3 = arith.constant 0 : index
    %c0_4 = arith.constant 0 : index
    %3 = vector.load %arg4[%c0_3, %c0_4] : memref<1x128xf32, #tpu.memory_space<vmem>>, vector<1x128xf32>
    %4 = vector.broadcast %3 : vector<1x128xf32> to vector<16x128xf32>
    %5 = arith.addf %2, %4 : vector<16x128xf32>
    %c0_5 = arith.constant 0 : index
    %c0_6 = arith.constant 0 : index
    %6 = vector.load %arg5[%c0_5, %c0_6] : memref<16x128xf32, #tpu.memory_space<vmem>>, vector<16x128xf32>
    tpu.vector_store %arg5[%c0_5, %c0_6], %5 {strides = array<i32>} : memref<16x128xf32, #tpu.memory_space<vmem>>, vector<16x128xf32>,
    return
  }
  func.func @transform_0(%arg0: i32, %arg1: i32) -> (i32, i32) {
    %c0_i32 = arith.constant 0 : i32
    %c0_i32_0 = arith.constant 0 : i32
    return %arg1, %c0_i32 : i32, i32
  }
  func.func @transform_1(%arg0: i32, %arg1: i32) -> (i32, i32) {
    %c0_i32 = arith.constant 0 : i32
    %c0_i32_0 = arith.constant 0 : i32
    return %c0_i32, %arg0 : i32, i32
  }
  func.func @transform_2(%arg0: i32, %arg1: i32) -> (i32, i32) {
    %c0_i32 = arith.constant 0 : i32
    %c0_i32_0 = arith.constant 0 : i32
    return %c0_i32, %arg0 : i32, i32
  }
  func.func @transform_3(%arg0: i32, %arg1: i32) -> (i32, i32) {
    %c0_i32 = arith.constant 0 : i32
    return %arg1, %arg0 : i32, i32
  }
}

</mosaic_0001>

<llo_original>
// kernel: moeut_lm_forward.12
$region0: #{moeut_lm_forward.12}
  #allocation0 [shape = 'u32[]', space=smem, size = 0x4, offset = 0x4, fixed_abs, tag = 'smem constant byte address 0x4 - core index']
  #allocation1 [shape = 'u32[144,128]{1,0:T(1,128)}', space=vmem, size = 0x12000, scoped, tag = 'internal scratch']
  %s0 = inlined_call_operand.vmem [shape: f32[2,8,32], index: 0, kind: input, shape index: {}]
  %s1 = inlined_call_operand.vmem [shape: f32[1,32], index: 1, kind: input, shape index: {}]
  %s2 = inlined_call_operand.vmem [shape: f32[1,32], index: 2, kind: input, shape index: {}]
  %s3 = inlined_call_operand.vmem [shape: bf16[32,4], index: 3, kind: input, shape index: {}]
  %s4 = inlined_call_operand.vmem [shape: bf16[2,8,4], index: 4, kind: output, shape index: {0}]
  %s5 = inlined_call_operand.vmem [shape: s32[2,1,8,4], index: 5, kind: output, shape index: {1}]
  %6 = xla_tuple %s4, %s5
  %s7 = sld [smem:[#allocation0]]
  $region57: #{moeut_lm_forward.12} parent=0
    _
  %s9 = ssub.s32 1, %s7
  %s10 = scalar_select 0, %s9, %s7
  loop: start=0, step=1, limit=4
  $region2: #{moeut_lm_forward.12} parent=0 // loop_pre_header
    _
  $region3: #{moeut_lm_forward.12} parent=0 // loop_header
    %s12 = sphi 0, %s16
    %p13 = scmp.ge.s32.totalorder %s12, 4
    %s19 = sphi 0, %s31
    %s20 = sphi 0, %s27
    %s21 = sphi 0, %s19
    %s22 = sphi 0, %s20
    %s23 = sphi 0, %s21
    %s24 = sphi 0, %s22
    %s36 = sphi 0, %s38
    %s39 = sphi 0, %s36
    %s40 = sphi 0, %s39
    %s56 = sphi 0, %s40
    %s60 = sphi 0, %s60
    %s62 = sphi 0, %s60
    %s63 = sphi 0, %s62
    %s77 = sphi 0, %s63
    %s81 = sphi 0, %s81
    %s83 = sphi 0, %s81
    %s84 = sphi 0, %s83
    %s98 = sphi 0, %s84
    %s102 = sphi 0, %s102
    %s104 = sphi 0, %s102
    %s105 = sphi 0, %s104
    %s119 = sphi 0, %s105
    %s127 = sphi 0, %s129
    %s130 = sphi 0, %s127
    %s131 = sphi 0, %s130
    %s147 = sphi 0, %s131
    %s155 = sphi 0, %s157
    %s158 = sphi 0, %s155
    %s159 = sphi 0, %s158
    %s175 = sphi 0, %s159
  $region4: #{moeut_lm_forward.12} parent=0 // loop_header_branch
    %15 = sbr.rel (%p13) target = $region8
  $region5: #{moeut_lm_forward.12} parent=0 // loop_body
    %s17 = ssub.s32 %s12, 1
    %s18 = ssub.s32 %s12, 2
    %s25 = sadd.s32 1, %s20
    %p26 = scmp.ge.s32.totalorder %s25, 1
    %s27 = scalar_select %p26, 0, %s25
    %s28 = sadd.s32 1, %s19
    %s29 = scalar_select %p26, %s28, %s19
    %p30 = scmp.ge.s32.totalorder %s29, 2
    %s31 = scalar_select %p30, 0, %s29
    %s32 = ssub.s32 %s19, %s31
    %s33 = ssub.s32 %s20, %s27
    %s34 = sor.u32 %s32, %s33
    %p35 = scmp.eq.s32.totalorder %s34, 0
    %s37 = sadd.s32 %s36, 1
    %s38 = scalar_select %p35, %s36, %s37
    %p41 = pneg %p35
    %p42 = scmp.eq.s32.totalorder %s12, 1
    %p43 = por %p41, %p42
    %p44 = scmp.ne.s32.totalorder %s36, %s39
    %p45 = scmp.eq.s32.totalorder %s12, 0
    %p46 = por %p44, %p45
    %p47 = scmp.ne.s32.totalorder %s36, %s39
    %p48 = scmp.eq.s32.totalorder %s17, 1
    %p49 = por %p47, %p48
    %p50 = scmp.ne.s32.totalorder %s39, %s40
    %p51 = scmp.eq.s32.totalorder %s17, 0
    %p52 = por %p50, %p51
    %p53 = scmp.ne.s32.totalorder %s39, %s40
    %p54 = scmp.eq.s32.totalorder %s18, 1
    %p55 = por %p53, %p54
    %p57 = scmp.ne.s32.totalorder %s40, %s56
    %p58 = scmp.eq.s32.totalorder %s18, 0
    %p59 = por %p57, %p58
    %s61 = sadd.s32 %s60, 1
    %p64 = scmp.eq.s32.totalorder %s12, 1
    %p65 = scmp.ne.s32.totalorder %s60, %s62
    %p66 = scmp.eq.s32.totalorder %s12, 0
    %p67 = por %p65, %p66
    %p68 = scmp.ne.s32.totalorder %s60, %s62
    %p69 = scmp.eq.s32.totalorder %s17, 1
    %p70 = por %p68, %p69
    %p71 = scmp.ne.s32.totalorder %s62, %s63
    %p72 = scmp.eq.s32.totalorder %s17, 0
    %p73 = por %p71, %p72
    %p74 = scmp.ne.s32.totalorder %s62, %s63
    %p75 = scmp.eq.s32.totalorder %s18, 1
    %p76 = por %p74, %p75
    %p78 = scmp.ne.s32.totalorder %s63, %s77
    %p79 = scmp.eq.s32.totalorder %s18, 0
    %p80 = por %p78, %p79
    %s82 = sadd.s32 %s81, 1
    %p85 = scmp.eq.s32.totalorder %s12, 1
    %p86 = scmp.ne.s32.totalorder %s81, %s83
    %p87 = scmp.eq.s32.totalorder %s12, 0
    %p88 = por %p86, %p87
    %p89 = scmp.ne.s32.totalorder %s81, %s83
    %p90 = scmp.eq.s32.totalorder %s17, 1
    %p91 = por %p89, %p90
    %p92 = scmp.ne.s32.totalorder %s83, %s84
    %p93 = scmp.eq.s32.totalorder %s17, 0
    %p94 = por %p92, %p93
    %p95 = scmp.ne.s32.totalorder %s83, %s84
    %p96 = scmp.eq.s32.totalorder %s18, 1
    %p97 = por %p95, %p96
    %p99 = scmp.ne.s32.totalorder %s84, %s98
    %p100 = scmp.eq.s32.totalorder %s18, 0
    %p101 = por %p99, %p100
    %s103 = sadd.s32 %s102, 1
    %p106 = scmp.eq.s32.totalorder %s12, 1
    %p107 = scmp.ne.s32.totalorder %s102, %s104
    %p108 = scmp.eq.s32.totalorder %s12, 0
    %p109 = por %p107, %p108
    %p110 = scmp.ne.s32.totalorder %s102, %s104
    %p111 = scmp.eq.s32.totalorder %s17, 1
    %p112 = por %p110, %p111
    %p113 = scmp.ne.s32.totalorder %s104, %s105
    %p114 = scmp.eq.s32.totalorder %s17, 0
    %p115 = por %p113, %p114
    %p116 = scmp.ne.s32.totalorder %s104, %s105
    %p117 = scmp.eq.s32.totalorder %s18, 1
    %p118 = por %p116, %p117
    %p120 = scmp.ne.s32.totalorder %s105, %s119
    %p121 = scmp.eq.s32.totalorder %s18, 0
    %p122 = por %p120, %p121
    %s123 = ssub.s32 %s19, %s31
    %s124 = ssub.s32 %s20, %s27
    %s125 = sor.u32 %s123, %s124
    %p126 = scmp.eq.s32.totalorder %s125, 0
    %s128 = sadd.s32 %s127, 1
    %s129 = scalar_select %p126, %s127, %s128
    %p132 = pneg %p126
    %p133 = scmp.eq.s32.totalorder %s12, 1
    %p134 = por %p132, %p133
    %p135 = scmp.ne.s32.totalorder %s127, %s130
    %p136 = scmp.eq.s32.totalorder %s12, 0
    %p137 = por %p135, %p136
    %p138 = scmp.ne.s32.totalorder %s127, %s130
    %p139 = scmp.eq.s32.totalorder %s17, 1
    %p140 = por %p138, %p139
    %p141 = scmp.ne.s32.totalorder %s130, %s131
    %p142 = scmp.eq.s32.totalorder %s17, 0
    %p143 = por %p141, %p142
    %p144 = scmp.ne.s32.totalorder %s130, %s131
    %p145 = scmp.eq.s32.totalorder %s18, 1
    %p146 = por %p144, %p145
    %p148 = scmp.ne.s32.totalorder %s131, %s147
    %p149 = scmp.eq.s32.totalorder %s18, 0
    %p150 = por %p148, %p149
    %s151 = ssub.s32 %s19, %s31
    %s152 = ssub.s32 %s20, %s27
    %s153 = sor.u32 %s151, %s152
    %p154 = scmp.eq.s32.totalorder %s153, 0
    %s156 = sadd.s32 %s155, 1
    %s157 = scalar_select %p154, %s155, %s156
    %p160 = pneg %p154
    %p161 = scmp.eq.s32.totalorder %s12, 1
    %p162 = por %p160, %p161
    %p163 = scmp.ne.s32.totalorder %s155, %s158
    %p164 = scmp.eq.s32.totalorder %s12, 0
    %p165 = por %p163, %p164
    %p166 = scmp.ne.s32.totalorder %s155, %s158
    %p167 = scmp.eq.s32.totalorder %s17, 1
    %p168 = por %p166, %p167
    %p169 = scmp.ne.s32.totalorder %s158, %s159
    %p170 = scmp.eq.s32.totalorder %s17, 0
    %p171 = por %p169, %p170
    %p172 = scmp.ne.s32.totalorder %s158, %s159
    %p173 = scmp.eq.s32.totalorder %s18, 1
    %p174 = por %p172, %p173
    %p176 = scmp.ne.s32.totalorder %s159, %s175
    %p177 = scmp.eq.s32.totalorder %s18, 0
    %p178 = por %p176, %p177
    %p179 = scmp.le.s32.totalorder 1, %s12
    %p180 = scmp.lt.s32.totalorder %s12, 3
    %p181 = pnand %p179, %p180
    %p182 = pneg %p181
    // Predicated region
    $region9: #{moeut_lm_forward.12} parent=5 // pred_check
      _
    $region10: #{moeut_lm_forward.12} parent=5 // pred_check_branch
      %184 = sbr.rel (%p181) target = $region12
    $region11: #{moeut_lm_forward.12} parent=5 // pred_region
      %s185 = ssub.s32 %s12, 1
      // Predicated region
      $region13: #{moeut_lm_forward.12} parent=11 // pred_check
        %p186 = pneg %p73
      $region14: #{moeut_lm_forward.12} parent=11 // pred_check_branch
        %188 = sbr.rel (%p186) target = $region16
      $region15: #{moeut_lm_forward.12} parent=11 // pred_region
        _
      $region16: #{moeut_lm_forward.12} parent=11 // pred_fallthru
        _
      // Predicated region
      $region17: #{moeut_lm_forward.12} parent=11 // pred_check
        %p189 = pneg %p94
      $region18: #{moeut_lm_forward.12} parent=11 // pred_check_branch
        %191 = sbr.rel (%p189) target = $region20
      $region19: #{moeut_lm_forward.12} parent=11 // pred_region
        _
      $region20: #{moeut_lm_forward.12} parent=11 // pred_fallthru
        _
      // Predicated region
      $region21: #{moeut_lm_forward.12} parent=11 // pred_check
        %p192 = pneg %p115
      $region22: #{moeut_lm_forward.12} parent=11 // pred_check_branch
        %194 = sbr.rel (%p192) target = $region24
      $region23: #{moeut_lm_forward.12} parent=11 // pred_region
        _
      $region24: #{moeut_lm_forward.12} parent=11 // pred_fallthru
        _
    $region12: #{moeut_lm_forward.12} parent=5 // pred_fallthru
      _
    %p195 = scmp.lt.s32.totalorder %s12, 2
    // Predicated region
    $region25: #{moeut_lm_forward.12} parent=5 // pred_check
      %p196 = pneg %p195
    $region26: #{moeut_lm_forward.12} parent=5 // pred_check_branch
      %198 = sbr.rel (%p196) target = $region28
    $region27: #{moeut_lm_forward.12} parent=5 // pred_region
      // Predicated region
      $region29: #{moeut_lm_forward.12} parent=27 // pred_check
        %p199 = pneg %p46
      $region30: #{moeut_lm_forward.12} parent=27 // pred_check_branch
        %201 = sbr.rel (%p199) target = $region32
      $region31: #{moeut_lm_forward.12} parent=27 // pred_region
        %p202 = scmp.lt.s32.totalorder %s19, 1
        %s203 = scalar_select %p202, %s19, 1
        %p204 = scmp.lt.s32.totalorder %s20, 0
        %s205 = scalar_select %p204, %s20, 0
        %s206 = sadd.s32 %s205, %s203
        %s207 = smul.addr %s206, 8
        %s208 = scalar_lea.vmem %s0, %s207
      $region32: #{moeut_lm_forward.12} parent=27 // pred_fallthru
        _
    $region28: #{moeut_lm_forward.12} parent=5 // pred_fallthru
      _
    %p209 = scmp.le.s32.totalorder 1, %s12
    %p210 = scmp.lt.s32.totalorder %s12, 3
    %p211 = pnand %p209, %p210
    %p212 = pneg %p211
    // Predicated region
    $region33: #{moeut_lm_forward.12} parent=5 // pred_check
      _
    $region34: #{moeut_lm_forward.12} parent=5 // pred_check_branch
      %214 = sbr.rel (%p211) target = $region36
    $region35: #{moeut_lm_forward.12} parent=5 // pred_region
      %s215 = ssub.s32 %s12, 1
      %p216 = scmp.lt.s32.totalorder %s21, 1
      %s217 = scalar_select %p216, %s21, 1
      %p218 = scmp.lt.s32.totalorder %s22, 0
      %s219 = scalar_select %p218, %s22, 0
      %s220 = sadd.s32 %s219, %s217
      %s221 = smul.addr %s220, 8
      %s222 = scalar_lea.vmem %s0, %s221
      %p223 = pneg %p52
      %p224 = pneg %p49
      %p225 = pneg %p73
      %p226 = pneg %p70
      %p227 = pneg %p94
      %p228 = pneg %p91
      %p229 = pneg %p115
      %p230 = pneg %p112
      %p231 = pneg %p143
      %p232 = pneg %p140
      %p233 = scmp.lt.s32.totalorder %s21, 1
      %s234 = scalar_select %p233, %s21, 1
      %p235 = scmp.lt.s32.totalorder %s22, 0
      %s236 = scalar_select %p235, %s22, 0
      %s237 = sadd.s32 %s236, %s234
      %s238 = smul.addr %s237, 4
      %s239 = scalar_lea.vmem %s4, %s238
      %p240 = pneg %p171
      %p241 = pneg %p168
      %p242 = scmp.lt.s32.totalorder %s21, 1
      %s243 = scalar_select %p242, %s21, 1
      %p244 = scmp.lt.s32.totalorder %s22, 0
      %s245 = scalar_select %p244, %s22, 0
      %s246 = sadd.s32 %s245, %s243
      %s247 = smul.addr %s246, 8
      %s248 = scalar_lea.vmem %s5, %s247
      %p249 = scmp.lt.s32.totalorder %s21, 1
      %s250 = scalar_select %p249, %s21, 1
      %p251 = scmp.lt.s32.totalorder %s22, 0
      %s252 = scalar_select %p251, %s22, 0
      %s253 = sadd.s32 %s252, %s250
      %s254 = smul.addr %s253, 8
      %s255 = scalar_lea.vmem %s0, %s254
      %p256 = scmp.lt.s32.totalorder %s21, 1
      %s257 = scalar_select %p256, %s21, 1
      %p258 = scmp.lt.s32.totalorder %s22, 0
      %s259 = scalar_select %p258, %s22, 0
      %s260 = sadd.s32 %s259, %s257
      %s261 = smul.addr %s260, 4
      %s262 = scalar_lea.vmem %s4, %s261
      %p263 = scmp.lt.s32.totalorder %s21, 1
      %s264 = scalar_select %p263, %s21, 1
      %p265 = scmp.lt.s32.totalorder %s22, 0
      %s266 = scalar_select %p265, %s22, 0
      %s267 = sadd.s32 %s266, %s264
      %s268 = smul.addr %s267, 8
      %s269 = scalar_lea.vmem %s5, %s268
      %v271 = vld [vmem:[%s255] sm:$0xff]
      %v272 = vld [vmem:[%s1] sm:$0x1]
      %v273 = vld [vmem:[%s2] sm:$0x1]
      %vm274 = vcmask 261120
      %v275 = vsel %vm274, %v271, 0.0
      %276 = vadd.xlane.f32.xlu0 %v275
      %v277 = vpop.xlane.xlu0 %276
      %v278 = vrcp.pop 32.0
      %v279 = vmul.f32 %v277, %v278
      %v280 = vsub.f32 %v271, %v279
      %v281 = vmul.f32 %v280, %v280
      %v282 = vsel %vm274, %v281, 0.0
      %283 = vadd.xlane.f32.xlu0 %v282
      %v284 = vpop.xlane.xlu0 %283
      %v285 = vmul.f32 %v284, %v278
      %v286 = vadd.f32 %v285, 1e-05
      %v287 = vrsqrt.pop %v286
      %v288 = vmul.f32 %v280, %v287
      %v290 = vlaneseq
      %v291 = vshrl.u32 %v290, 7
      %v292 = vsub.s32 0, %v291
      %v293 = vrot.slane %v272, %v292
      %v295 = vmul.f32 %v288, %v293
      %v297 = vlaneseq
      %v298 = vshrl.u32 %v297, 7
      %v299 = vsub.s32 0, %v298
      %v300 = vrot.slane %v273, %v299
      %v302 = vadd.f32 %v295, %v300
      %v303 = vpack.c.bf16 %v302, %v302
      %v304 = vld [vmem:[%s3] sm:$0xf]
      %v305 = vld [vmem:[%s3 + $0x4] sm:$0xf]
      %v306 = vld [vmem:[%s3 + $0x8] sm:$0xf]
      %v307 = vld [vmem:[%s3 + $0xc] sm:$0xf]
      %v312 = vunpack.c.l.b16 %v304
      %v313 = vunpack.c.l.b16 %v305
      %v314 = vunpack.c.l.b16 %v306
      %v315 = vunpack.c.l.b16 %v307
      %v316 = vpack.c.b16 %v313, %v312
      %v317 = vpack.c.b16 %v315, %v314
      %v321 = vsel %vm274, %v303, 0
      %323 = vmatprep.subr.bf16.mxu0 0
      %324 = vmatpush1.bf16.msra.mxu0 %v316
      %325 = vmatprep.subr.bf16.mxu0 0
      %326 = vmatpush1.bf16.msra.mxu0 %v317
      %327 = vmatprep.subr.bf16.mxu0 0
      %328 = vmatpush1.bf16.msra.mxu0 0
      %329 = vmatprep.subr.bf16.mxu0 0
      %330 = vmatpush1.bf16.msra.mxu0 0
      %331 = vmatprep.subr.bf16.mxu0 0
      %332 = vmatpush1.bf16.msra.mxu0 0
      %333 = vmatprep.subr.bf16.mxu0 0
      %334 = vmatpush1.bf16.msra.mxu0 0
      %335 = vmatprep.subr.bf16.mxu0 0
      %336 = vmatpush1.bf16.msra.mxu0 0
      %337 = vmatprep.subr.bf16.mxu0 0
      %338 = vmatpush1.bf16.msra.mxu0 0
      %339 = vmatprep.subr.bf16.mxu0 0
      %340 = vmatpush1.bf16.msra.mxu0 0
      %341 = vmatprep.subr.bf16.mxu0 0
      %342 = vmatpush1.bf16.msra.mxu0 0
      %343 = vmatprep.subr.bf16.mxu0 0
      %344 = vmatpush1.bf16.msra.mxu0 0
      %345 = vmatprep.subr.bf16.mxu0 0
      %346 = vmatpush1.bf16.msra.mxu0 0
      %347 = vmatprep.subr.bf16.mxu0 0
      %348 = vmatpush1.bf16.msra.mxu0 0
      %349 = vmatprep.subr.bf16.mxu0 0
      %350 = vmatpush1.bf16.msra.mxu0 0
      %351 = vmatprep.subr.bf16.mxu0 0
      %352 = vmatpush1.bf16.msra.mxu0 0
      %353 = vmatprep.subr.bf16.mxu0 0
      %354 = vmatpush1.bf16.msra.mxu0 0
      %355 = vmatprep.mubr.bf16.mxu0 0
      %356 = vmatmul.mubr.bf16.gmra.mrb[0].mxu0 %v321
      %v357 = vpop.f32.mrb[0].mxu0
      %v358 = vadd.f32 0.0, %v357
      %v359 = vpop.f32.mrb[0].mxu0
      %v360 = vpop.f32.mrb[0].mxu0
      %v361 = vpop.f32.mrb[0].mxu0
      %362 = vdwg.mxu0
      %v363 = vxor.u32 %v358, 2147483648
      %v364 = vmul.f32 %v363, 1.442695
      %v365 = vpow.pop %v364
      %v366 = vadd.f32 %v365, 1.0
      %v367 = vrcp.pop %v366
      %v368 = vmul.f32 1.0, %v367
      %v369 = vlaneseq
      %v370 = vand.u32 %v369, 127
      %vm371 = vcmask 31744
      %v372 = vsel %vm371, %v368, -inf
      %373 = vmax.xlane.f32.xlu0 %v372
      %v374 = vpop.xlane.xlu0 %373
      %vm375 = vcmp.eq.f32.partialorder %v368, %v374
      %v376 = vsel %vm375, %v370, 4
      %v377 = vsel %vm371, %v376, 2147483647
      %v378 = vand.u32 %v377, 65535
      %v379 = vshra.s32 %v377, 16
      %v380 = vcvt.s32.f32 %v378
      %v381 = vcvt.s32.f32 %v379
      %382 = vmin.xlane.f32.xlu0 %v381
      %v383 = vpop.xlane.xlu0 %382
      %vm384 = vcmp.eq.f32.partialorder %v381, %v383
      %v385 = vsel %vm384, %v380, inf
      %386 = vmin.xlane.f32.xlu0 %v385
      %v387 = vpop.xlane.xlu0 %386
      %v388 = vcvt.f32.s32 %v387
      %v389 = vcvt.f32.s32 %v383
      %v390 = vshll.u32 %v389, 16
      %v391 = vadd.s32 %v390, %v388
      %vm392 = vcmp.eq.s32.totalorder %v370, %v391
      %v393 = vsel %vm392, -1.0, %v368
      %v394 = vsel %vm371, %v393, -inf
      %395 = vmax.xlane.f32.xlu0 %v394
      %v396 = vpop.xlane.xlu0 %395
      %vm397 = vcmp.eq.f32.partialorder %v393, %v396
      %v398 = vsel %vm397, %v370, 4
      %v399 = vsel %vm371, %v398, 2147483647
      %v400 = vand.u32 %v399, 65535
      %v401 = vshra.s32 %v399, 16
      %v402 = vcvt.s32.f32 %v400
      %v403 = vcvt.s32.f32 %v401
      %404 = vmin.xlane.f32.xlu0 %v403
      %v405 = vpop.xlane.xlu0 %404
      %vm406 = vcmp.eq.f32.partialorder %v403, %v405
      %v407 = vsel %vm406, %v402, inf
      %408 = vmin.xlane.f32.xlu0 %v407
      %v409 = vpop.xlane.xlu0 %408
      %v410 = vcvt.f32.s32 %v409
      %v411 = vcvt.f32.s32 %v405
      %v412 = vshll.u32 %v411, 16
      %v413 = vadd.s32 %v412, %v410
      %vm414 = vcmp.eq.s32.totalorder %v370, %v413
      %vm415 = vmor %vm392, %vm414
      %v416 = vsel %vm415, %v368, 0.0
      %v417 = vpack.c.bf16 %v416, %v416
      %vm418 = vcmask 27648
      %419 = vst.msk [vmem:[%s262] sm:$0xf] %vm418, %v417
      %v420 = vsel %vm415, 1, 0
      %v421 = vsel %vm371, %v420, 0
      %v422 = vrot.slane %v421, 4
      %v423 = vadd.s32 %v421, %v422
      %v424 = vrot.slane %v423, 2
      %v425 = vadd.s32 %v423, %v424
      %v426 = vrot.slane %v425, 1
      %v427 = vadd.s32 %v425, %v426
      %428 = vst.msk [vmem:[%s269] sm:$0xff] %vm371, %v427
      %p429 = scmp.lt.s32.totalorder %s21, 1
      %s430 = scalar_select %p429, %s21, 1
      %p431 = scmp.lt.s32.totalorder %s22, 0
      %s432 = scalar_select %p431, %s22, 0
      %s433 = sadd.s32 %s432, %s430
      %s434 = smul.addr %s433, 4
      %s435 = scalar_lea.vmem %s4, %s434
      %p436 = scmp.lt.s32.totalorder %s21, 1
      %s437 = scalar_select %p436, %s21, 1
      %p438 = scmp.lt.s32.totalorder %s22, 0
      %s439 = scalar_select %p438, %s22, 0
      %s440 = sadd.s32 %s439, %s437
      %s441 = smul.addr %s440, 8
      %s442 = scalar_lea.vmem %s5, %s441
      // Predicated region
      $region37: #{moeut_lm_forward.12} parent=35 // pred_check
        %p443 = pneg %p140
      $region38: #{moeut_lm_forward.12} parent=35 // pred_check_branch
        %445 = sbr.rel (%p443) target = $region40
      $region39: #{moeut_lm_forward.12} parent=35 // pred_region
        _
      $region40: #{moeut_lm_forward.12} parent=35 // pred_fallthru
        _
      // Predicated region
      $region41: #{moeut_lm_forward.12} parent=35 // pred_check
        %p446 = pneg %p168
      $region42: #{moeut_lm_forward.12} parent=35 // pred_check_branch
        %448 = sbr.rel (%p446) target = $region44
      $region43: #{moeut_lm_forward.12} parent=35 // pred_region
        _
      $region44: #{moeut_lm_forward.12} parent=35 // pred_fallthru
        _
    $region36: #{moeut_lm_forward.12} parent=5 // pred_fallthru
      _
    %p449 = scmp.le.s32.totalorder 2, %s12
    // Predicated region
    $region45: #{moeut_lm_forward.12} parent=5 // pred_check
      %p450 = pneg %p449
    $region46: #{moeut_lm_forward.12} parent=5 // pred_check_branch
      %452 = sbr.rel (%p450) target = $region48
    $region47: #{moeut_lm_forward.12} parent=5 // pred_region
      %s453 = ssub.s32 %s12, 2
      // Predicated region
      $region49: #{moeut_lm_forward.12} parent=47 // pred_check
        %p454 = pneg %p146
      $region50: #{moeut_lm_forward.12} parent=47 // pred_check_branch
        %456 = sbr.rel (%p454) target = $region52
      $region51: #{moeut_lm_forward.12} parent=47 // pred_region
        %p457 = scmp.lt.s32.totalorder %s23, 1
        %s458 = scalar_select %p457, %s23, 1
        %p459 = scmp.lt.s32.totalorder %s24, 0
        %s460 = scalar_select %p459, %s24, 0
        %s461 = sadd.s32 %s460, %s458
        %s462 = smul.addr %s461, 4
        %s463 = scalar_lea.vmem %s4, %s462
      $region52: #{moeut_lm_forward.12} parent=47 // pred_fallthru
        _
      // Predicated region
      $region53: #{moeut_lm_forward.12} parent=47 // pred_check
        %p464 = pneg %p174
      $region54: #{moeut_lm_forward.12} parent=47 // pred_check_branch
        %466 = sbr.rel (%p464) target = $region56
      $region55: #{moeut_lm_forward.12} parent=47 // pred_region
        %p467 = scmp.lt.s32.totalorder %s23, 1
        %s468 = scalar_select %p467, %s23, 1
        %p469 = scmp.lt.s32.totalorder %s24, 0
        %s470 = scalar_select %p469, %s24, 0
        %s471 = sadd.s32 %s470, %s468
        %s472 = smul.addr %s471, 8
        %s473 = scalar_lea.vmem %s5, %s472
      $region56: #{moeut_lm_forward.12} parent=47 // pred_fallthru
        _
    $region48: #{moeut_lm_forward.12} parent=5 // pred_fallthru
      _
  $region6: #{moeut_lm_forward.12} parent=0 // loop_footer
    %s16 = sadd.s32 1, %s12
  $region7: #{moeut_lm_forward.12} parent=0 // loop_footer_branch
    %11 = sbr.rel target = $region3
  $region8: #{moeut_lm_forward.12} parent=0 // loop_exit
    _

// kernel: moeut_lm_forward.10
$region0: #{moeut_lm_forward.10}
  #allocation0 [shape = 'u32[]', space=smem, size = 0x4, offset = 0x4, fixed_abs, tag = 'smem constant byte address 0x4 - core index']
  #allocation1 [shape = 'u32[144,128]{1,0:T(1,128)}', space=vmem, size = 0x12000, scoped, tag = 'internal scratch']
  %s0 = inlined_call_operand.vmem [shape: f32[2,8,32], index: 0, kind: input, shape index: {}]
  %s1 = inlined_call_operand.vmem [shape: f32[1,32], index: 1, kind: input, shape index: {}]
  %s2 = inlined_call_operand.vmem [shape: f32[1,32], index: 2, kind: input, shape index: {}]
  %s3 = inlined_call_operand.vmem [shape: bf16[32,96], index: 3, kind: input, shape index: {}]
  %s4 = inlined_call_operand.vmem [shape: f32[1,96], index: 4, kind: input, shape index: {}]
  %s5 = inlined_call_operand.vmem [shape: bf16[2,8,32], index: 5, kind: output, shape index: {0}]
  %s6 = inlined_call_operand.vmem [shape: bf16[2,8,32], index: 6, kind: output, shape index: {1}]
  %s7 = inlined_call_operand.vmem [shape: bf16[2,8,32], index: 7, kind: output, shape index: {2}]
  %8 = xla_tuple %s5, %s6, %s7
  %s9 = sld [smem:[#allocation0]]
  $region69: #{moeut_lm_forward.10} parent=0
    _
  %s11 = ssub.s32 1, %s9
  %s12 = scalar_select 0, %s11, %s9
  loop: start=0, step=1, limit=4
  $region2: #{moeut_lm_forward.10} parent=0 // loop_pre_header
    _
  $region3: #{moeut_lm_forward.10} parent=0 // loop_header
    %s14 = sphi 0, %s18
    %p15 = scmp.ge.s32.totalorder %s14, 4
    %s21 = sphi 0, %s33
    %s22 = sphi 0, %s29
    %s23 = sphi 0, %s21
    %s24 = sphi 0, %s22
    %s25 = sphi 0, %s23
    %s26 = sphi 0, %s24
    %s38 = sphi 0, %s40
    %s41 = sphi 0, %s38
    %s42 = sphi 0, %s41
    %s58 = sphi 0, %s42
    %s62 = sphi 0, %s62
    %s64 = sphi 0, %s62
    %s65 = sphi 0, %s64
    %s79 = sphi 0, %s65
    %s83 = sphi 0, %s83
    %s85 = sphi 0, %s83
    %s86 = sphi 0, %s85
    %s100 = sphi 0, %s86
    %s104 = sphi 0, %s104
    %s106 = sphi 0, %s104
    %s107 = sphi 0, %s106
    %s121 = sphi 0, %s107
    %s125 = sphi 0, %s125
    %s127 = sphi 0, %s125
    %s128 = sphi 0, %s127
    %s142 = sphi 0, %s128
    %s150 = sphi 0, %s152
    %s153 = sphi 0, %s150
    %s154 = sphi 0, %s153
    %s170 = sphi 0, %s154
    %s178 = sphi 0, %s180
    %s181 = sphi 0, %s178
    %s182 = sphi 0, %s181
    %s198 = sphi 0, %s182
    %s206 = sphi 0, %s208
    %s209 = sphi 0, %s206
    %s210 = sphi 0, %s209
    %s226 = sphi 0, %s210
  $region4: #{moeut_lm_forward.10} parent=0 // loop_header_branch
    %17 = sbr.rel (%p15) target = $region8
  $region5: #{moeut_lm_forward.10} parent=0 // loop_body
    %s19 = ssub.s32 %s14, 1
    %s20 = ssub.s32 %s14, 2
    %s27 = sadd.s32 1, %s22
    %p28 = scmp.ge.s32.totalorder %s27, 1
    %s29 = scalar_select %p28, 0, %s27
    %s30 = sadd.s32 1, %s21
    %s31 = scalar_select %p28, %s30, %s21
    %p32 = scmp.ge.s32.totalorder %s31, 2
    %s33 = scalar_select %p32, 0, %s31
    %s34 = ssub.s32 %s21, %s33
    %s35 = ssub.s32 %s22, %s29
    %s36 = sor.u32 %s34, %s35
    %p37 = scmp.eq.s32.totalorder %s36, 0
    %s39 = sadd.s32 %s38, 1
    %s40 = scalar_select %p37, %s38, %s39
    %p43 = pneg %p37
    %p44 = scmp.eq.s32.totalorder %s14, 1
    %p45 = por %p43, %p44
    %p46 = scmp.ne.s32.totalorder %s38, %s41
    %p47 = scmp.eq.s32.totalorder %s14, 0
    %p48 = por %p46, %p47
    %p49 = scmp.ne.s32.totalorder %s38, %s41
    %p50 = scmp.eq.s32.totalorder %s19, 1
    %p51 = por %p49, %p50
    %p52 = scmp.ne.s32.totalorder %s41, %s42
    %p53 = scmp.eq.s32.totalorder %s19, 0
    %p54 = por %p52, %p53
    %p55 = scmp.ne.s32.totalorder %s41, %s42
    %p56 = scmp.eq.s32.totalorder %s20, 1
    %p57 = por %p55, %p56
    %p59 = scmp.ne.s32.totalorder %s42, %s58
    %p60 = scmp.eq.s32.totalorder %s20, 0
    %p61 = por %p59, %p60
    %s63 = sadd.s32 %s62, 1
    %p66 = scmp.eq.s32.totalorder %s14, 1
    %p67 = scmp.ne.s32.totalorder %s62, %s64
    %p68 = scmp.eq.s32.totalorder %s14, 0
    %p69 = por %p67, %p68
    %p70 = scmp.ne.s32.totalorder %s62, %s64
    %p71 = scmp.eq.s32.totalorder %s19, 1
    %p72 = por %p70, %p71
    %p73 = scmp.ne.s32.totalorder %s64, %s65
    %p74 = scmp.eq.s32.totalorder %s19, 0
    %p75 = por %p73, %p74
    %p76 = scmp.ne.s32.totalorder %s64, %s65
    %p77 = scmp.eq.s32.totalorder %s20, 1
    %p78 = por %p76, %p77
    %p80 = scmp.ne.s32.totalorder %s65, %s79
    %p81 = scmp.eq.s32.totalorder %s20, 0
    %p82 = por %p80, %p81
    %s84 = sadd.s32 %s83, 1
    %p87 = scmp.eq.s32.totalorder %s14, 1
    %p88 = scmp.ne.s32.totalorder %s83, %s85
    %p89 = scmp.eq.s32.totalorder %s14, 0
    %p90 = por %p88, %p89
    %p91 = scmp.ne.s32.totalorder %s83, %s85
    %p92 = scmp.eq.s32.totalorder %s19, 1
    %p93 = por %p91, %p92
    %p94 = scmp.ne.s32.totalorder %s85, %s86
    %p95 = scmp.eq.s32.totalorder %s19, 0
    %p96 = por %p94, %p95
    %p97 = scmp.ne.s32.totalorder %s85, %s86
    %p98 = scmp.eq.s32.totalorder %s20, 1
    %p99 = por %p97, %p98
    %p101 = scmp.ne.s32.totalorder %s86, %s100
    %p102 = scmp.eq.s32.totalorder %s20, 0
    %p103 = por %p101, %p102
    %s105 = sadd.s32 %s104, 1
    %p108 = scmp.eq.s32.totalorder %s14, 1
    %p109 = scmp.ne.s32.totalorder %s104, %s106
    %p110 = scmp.eq.s32.totalorder %s14, 0
    %p111 = por %p109, %p110
    %p112 = scmp.ne.s32.totalorder %s104, %s106
    %p113 = scmp.eq.s32.totalorder %s19, 1
    %p114 = por %p112, %p113
    %p115 = scmp.ne.s32.totalorder %s106, %s107
    %p116 = scmp.eq.s32.totalorder %s19, 0
    %p117 = por %p115, %p116
    %p118 = scmp.ne.s32.totalorder %s106, %s107
    %p119 = scmp.eq.s32.totalorder %s20, 1
    %p120 = por %p118, %p119
    %p122 = scmp.ne.s32.totalorder %s107, %s121
    %p123 = scmp.eq.s32.totalorder %s20, 0
    %p124 = por %p122, %p123
    %s126 = sadd.s32 %s125, 1
    %p129 = scmp.eq.s32.totalorder %s14, 1
    %p130 = scmp.ne.s32.totalorder %s125, %s127
    %p131 = scmp.eq.s32.totalorder %s14, 0
    %p132 = por %p130, %p131
    %p133 = scmp.ne.s32.totalorder %s125, %s127
    %p134 = scmp.eq.s32.totalorder %s19, 1
    %p135 = por %p133, %p134
    %p136 = scmp.ne.s32.totalorder %s127, %s128
    %p137 = scmp.eq.s32.totalorder %s19, 0
    %p138 = por %p136, %p137
    %p139 = scmp.ne.s32.totalorder %s127, %s128
    %p140 = scmp.eq.s32.totalorder %s20, 1
    %p141 = por %p139, %p140
    %p143 = scmp.ne.s32.totalorder %s128, %s142
    %p144 = scmp.eq.s32.totalorder %s20, 0
    %p145 = por %p143, %p144
    %s146 = ssub.s32 %s21, %s33
    %s147 = ssub.s32 %s22, %s29
    %s148 = sor.u32 %s146, %s147
    %p149 = scmp.eq.s32.totalorder %s148, 0
    %s151 = sadd.s32 %s150, 1
    %s152 = scalar_select %p149, %s150, %s151
    %p155 = pneg %p149
    %p156 = scmp.eq.s32.totalorder %s14, 1
    %p157 = por %p155, %p156
    %p158 = scmp.ne.s32.totalorder %s150, %s153
    %p159 = scmp.eq.s32.totalorder %s14, 0
    %p160 = por %p158, %p159
    %p161 = scmp.ne.s32.totalorder %s150, %s153
    %p162 = scmp.eq.s32.totalorder %s19, 1
    %p163 = por %p161, %p162
    %p164 = scmp.ne.s32.totalorder %s153, %s154
    %p165 = scmp.eq.s32.totalorder %s19, 0
    %p166 = por %p164, %p165
    %p167 = scmp.ne.s32.totalorder %s153, %s154
    %p168 = scmp.eq.s32.totalorder %s20, 1
    %p169 = por %p167, %p168
    %p171 = scmp.ne.s32.totalorder %s154, %s170
    %p172 = scmp.eq.s32.totalorder %s20, 0
    %p173 = por %p171, %p172
    %s174 = ssub.s32 %s21, %s33
    %s175 = ssub.s32 %s22, %s29
    %s176 = sor.u32 %s174, %s175
    %p177 = scmp.eq.s32.totalorder %s176, 0
    %s179 = sadd.s32 %s178, 1
    %s180 = scalar_select %p177, %s178, %s179
    %p183 = pneg %p177
    %p184 = scmp.eq.s32.totalorder %s14, 1
    %p185 = por %p183, %p184
    %p186 = scmp.ne.s32.totalorder %s178, %s181
    %p187 = scmp.eq.s32.totalorder %s14, 0
    %p188 = por %p186, %p187
    %p189 = scmp.ne.s32.totalorder %s178, %s181
    %p190 = scmp.eq.s32.totalorder %s19, 1
    %p191 = por %p189, %p190
    %p192 = scmp.ne.s32.totalorder %s181, %s182
    %p193 = scmp.eq.s32.totalorder %s19, 0
    %p194 = por %p192, %p193
    %p195 = scmp.ne.s32.totalorder %s181, %s182
    %p196 = scmp.eq.s32.totalorder %s20, 1
    %p197 = por %p195, %p196
    %p199 = scmp.ne.s32.totalorder %s182, %s198
    %p200 = scmp.eq.s32.totalorder %s20, 0
    %p201 = por %p199, %p200
    %s202 = ssub.s32 %s21, %s33
    %s203 = ssub.s32 %s22, %s29
    %s204 = sor.u32 %s202, %s203
    %p205 = scmp.eq.s32.totalorder %s204, 0
    %s207 = sadd.s32 %s206, 1
    %s208 = scalar_select %p205, %s206, %s207
    %p211 = pneg %p205
    %p212 = scmp.eq.s32.totalorder %s14, 1
    %p213 = por %p211, %p212
    %p214 = scmp.ne.s32.totalorder %s206, %s209
    %p215 = scmp.eq.s32.totalorder %s14, 0
    %p216 = por %p214, %p215
    %p217 = scmp.ne.s32.totalorder %s206, %s209
    %p218 = scmp.eq.s32.totalorder %s19, 1
    %p219 = por %p217, %p218
    %p220 = scmp.ne.s32.totalorder %s209, %s210
    %p221 = scmp.eq.s32.totalorder %s19, 0
    %p222 = por %p220, %p221
    %p223 = scmp.ne.s32.totalorder %s209, %s210
    %p224 = scmp.eq.s32.totalorder %s20, 1
    %p225 = por %p223, %p224
    %p227 = scmp.ne.s32.totalorder %s210, %s226
    %p228 = scmp.eq.s32.totalorder %s20, 0
    %p229 = por %p227, %p228
    %p230 = scmp.le.s32.totalorder 1, %s14
    %p231 = scmp.lt.s32.totalorder %s14, 3
    %p232 = pnand %p230, %p231
    %p233 = pneg %p232
    // Predicated region
    $region9: #{moeut_lm_forward.10} parent=5 // pred_check
      _
    $region10: #{moeut_lm_forward.10} parent=5 // pred_check_branch
      %235 = sbr.rel (%p232) target = $region12
    $region11: #{moeut_lm_forward.10} parent=5 // pred_region
      %s236 = ssub.s32 %s14, 1
      // Predicated region
      $region13: #{moeut_lm_forward.10} parent=11 // pred_check
        %p237 = pneg %p75
      $region14: #{moeut_lm_forward.10} parent=11 // pred_check_branch
        %239 = sbr.rel (%p237) target = $region16
      $region15: #{moeut_lm_forward.10} parent=11 // pred_region
        _
      $region16: #{moeut_lm_forward.10} parent=11 // pred_fallthru
        _
      // Predicated region
      $region17: #{moeut_lm_forward.10} parent=11 // pred_check
        %p240 = pneg %p96
      $region18: #{moeut_lm_forward.10} parent=11 // pred_check_branch
        %242 = sbr.rel (%p240) target = $region20
      $region19: #{moeut_lm_forward.10} parent=11 // pred_region
        _
      $region20: #{moeut_lm_forward.10} parent=11 // pred_fallthru
        _
      // Predicated region
      $region21: #{moeut_lm_forward.10} parent=11 // pred_check
        %p243 = pneg %p117
      $region22: #{moeut_lm_forward.10} parent=11 // pred_check_branch
        %245 = sbr.rel (%p243) target = $region24
      $region23: #{moeut_lm_forward.10} parent=11 // pred_region
        _
      $region24: #{moeut_lm_forward.10} parent=11 // pred_fallthru
        _
      // Predicated region
      $region25: #{moeut_lm_forward.10} parent=11 // pred_check
        %p246 = pneg %p138
      $region26: #{moeut_lm_forward.10} parent=11 // pred_check_branch
        %248 = sbr.rel (%p246) target = $region28
      $region27: #{moeut_lm_forward.10} parent=11 // pred_region
        _
      $region28: #{moeut_lm_forward.10} parent=11 // pred_fallthru
        _
    $region12: #{moeut_lm_forward.10} parent=5 // pred_fallthru
      _
    %p249 = scmp.lt.s32.totalorder %s14, 2
    // Predicated region
    $region29: #{moeut_lm_forward.10} parent=5 // pred_check
      %p250 = pneg %p249
    $region30: #{moeut_lm_forward.10} parent=5 // pred_check_branch
      %252 = sbr.rel (%p250) target = $region32
    $region31: #{moeut_lm_forward.10} parent=5 // pred_region
      // Predicated region
      $region33: #{moeut_lm_forward.10} parent=31 // pred_check
        %p253 = pneg %p48
      $region34: #{moeut_lm_forward.10} parent=31 // pred_check_branch
        %255 = sbr.rel (%p253) target = $region36
      $region35: #{moeut_lm_forward.10} parent=31 // pred_region
        %p256 = scmp.lt.s32.totalorder %s21, 1
        %s257 = scalar_select %p256, %s21, 1
        %p258 = scmp.lt.s32.totalorder %s22, 0
        %s259 = scalar_select %p258, %s22, 0
        %s260 = sadd.s32 %s259, %s257
        %s261 = smul.addr %s260, 8
        %s262 = scalar_lea.vmem %s0, %s261
      $region36: #{moeut_lm_forward.10} parent=31 // pred_fallthru
        _
    $region32: #{moeut_lm_forward.10} parent=5 // pred_fallthru
      _
    %p263 = scmp.le.s32.totalorder 1, %s14
    %p264 = scmp.lt.s32.totalorder %s14, 3
    %p265 = pnand %p263, %p264
    %p266 = pneg %p265
    // Predicated region
    $region37: #{moeut_lm_forward.10} parent=5 // pred_check
      _
    $region38: #{moeut_lm_forward.10} parent=5 // pred_check_branch
      %268 = sbr.rel (%p265) target = $region40
    $region39: #{moeut_lm_forward.10} parent=5 // pred_region
      %s269 = ssub.s32 %s14, 1
      %p270 = scmp.lt.s32.totalorder %s23, 1
      %s271 = scalar_select %p270, %s23, 1
      %p272 = scmp.lt.s32.totalorder %s24, 0
      %s273 = scalar_select %p272, %s24, 0
      %s274 = sadd.s32 %s273, %s271
      %s275 = smul.addr %s274, 8
      %s276 = scalar_lea.vmem %s0, %s275
      %p277 = pneg %p54
      %p278 = pneg %p51
      %p279 = pneg %p75
      %p280 = pneg %p72
      %p281 = pneg %p96
      %p282 = pneg %p93
      %p283 = pneg %p117
      %p284 = pneg %p114
      %p285 = pneg %p138
      %p286 = pneg %p135
      %p287 = pneg %p166
      %p288 = pneg %p163
      %p289 = scmp.lt.s32.totalorder %s23, 1
      %s290 = scalar_select %p289, %s23, 1
      %p291 = scmp.lt.s32.totalorder %s24, 0
      %s292 = scalar_select %p291, %s24, 0
      %s293 = sadd.s32 %s292, %s290
      %s294 = smul.addr %s293, 4
      %s295 = scalar_lea.vmem %s5, %s294
      %p296 = pneg %p194
      %p297 = pneg %p191
      %p298 = scmp.lt.s32.totalorder %s23, 1
      %s299 = scalar_select %p298, %s23, 1
      %p300 = scmp.lt.s32.totalorder %s24, 0
      %s301 = scalar_select %p300, %s24, 0
      %s302 = sadd.s32 %s301, %s299
      %s303 = smul.addr %s302, 4
      %s304 = scalar_lea.vmem %s6, %s303
      %p305 = pneg %p222
      %p306 = pneg %p219
      %p307 = scmp.lt.s32.totalorder %s23, 1
      %s308 = scalar_select %p307, %s23, 1
      %p309 = scmp.lt.s32.totalorder %s24, 0
      %s310 = scalar_select %p309, %s24, 0
      %s311 = sadd.s32 %s310, %s308
      %s312 = smul.addr %s311, 4
      %s313 = scalar_lea.vmem %s7, %s312
      %p314 = scmp.lt.s32.totalorder %s23, 1
      %s315 = scalar_select %p314, %s23, 1
      %p316 = scmp.lt.s32.totalorder %s24, 0
      %s317 = scalar_select %p316, %s24, 0
      %s318 = sadd.s32 %s317, %s315
      %s319 = smul.addr %s318, 8
      %s320 = scalar_lea.vmem %s0, %s319
      %p321 = scmp.lt.s32.totalorder %s23, 1
      %s322 = scalar_select %p321, %s23, 1
      %p323 = scmp.lt.s32.totalorder %s24, 0
      %s324 = scalar_select %p323, %s24, 0
      %s325 = sadd.s32 %s324, %s322
      %s326 = smul.addr %s325, 4
      %s327 = scalar_lea.vmem %s5, %s326
      %p328 = scmp.lt.s32.totalorder %s23, 1
      %s329 = scalar_select %p328, %s23, 1
      %p330 = scmp.lt.s32.totalorder %s24, 0
      %s331 = scalar_select %p330, %s24, 0
      %s332 = sadd.s32 %s331, %s329
      %s333 = smul.addr %s332, 4
      %s334 = scalar_lea.vmem %s6, %s333
      %p335 = scmp.lt.s32.totalorder %s23, 1
      %s336 = scalar_select %p335, %s23, 1
      %p337 = scmp.lt.s32.totalorder %s24, 0
      %s338 = scalar_select %p337, %s24, 0
      %s339 = sadd.s32 %s338, %s336
      %s340 = smul.addr %s339, 4
      %s341 = scalar_lea.vmem %s7, %s340
      %v343 = vld [vmem:[%s320] sm:$0xff]
      %v344 = vld [vmem:[%s1] sm:$0x1]
      %v345 = vld [vmem:[%s2] sm:$0x1]
      %vm346 = vcmask 261120
      %v347 = vsel %vm346, %v343, 0.0
      %348 = vadd.xlane.f32.xlu0 %v347
      %v349 = vpop.xlane.xlu0 %348
      %v350 = vrcp.pop 32.0
      %v351 = vmul.f32 %v349, %v350
      %v352 = vsub.f32 %v343, %v351
      %v353 = vmul.f32 %v352, %v352
      %v354 = vsel %vm346, %v353, 0.0
      %355 = vadd.xlane.f32.xlu0 %v354
      %v356 = vpop.xlane.xlu0 %355
      %v357 = vmul.f32 %v356, %v350
      %v358 = vadd.f32 %v357, 1e-05
      %v359 = vrsqrt.pop %v358
      %v360 = vmul.f32 %v352, %v359
      %v362 = vlaneseq
      %v363 = vshrl.u32 %v362, 7
      %v364 = vsub.s32 0, %v363
      %v365 = vrot.slane %v344, %v364
      %v367 = vmul.f32 %v360, %v365
      %v369 = vlaneseq
      %v370 = vshrl.u32 %v369, 7
      %v371 = vsub.s32 0, %v370
      %v372 = vrot.slane %v345, %v371
      %v374 = vadd.f32 %v367, %v372
      %v375 = vpack.c.bf16 %v374, %v374
      %v376 = vld [vmem:[%s3] sm:$0xf]
      %v377 = vld [vmem:[%s3 + $0x4] sm:$0xf]
      %v378 = vld [vmem:[%s3 + $0x8] sm:$0xf]
      %v379 = vld [vmem:[%s3 + $0xc] sm:$0xf]
      %v380 = vld [vmem:[%s4] sm:$0x1]
      %v382 = vlaneseq
      %v383 = vshrl.u32 %v382, 7
      %v384 = vsub.s32 0, %v383
      %v385 = vrot.slane %v380, %v384
      %v391 = vunpack.c.l.b16 %v376
      %v392 = vunpack.c.l.b16 %v377
      %v393 = vunpack.c.l.b16 %v378
      %v394 = vunpack.c.l.b16 %v379
      %v395 = vpack.c.b16 %v392, %v391
      %v396 = vpack.c.b16 %v394, %v393
      %v400 = vsel %vm346, %v375, 0
      %402 = vmatprep.subr.bf16.mxu0 0
      %403 = vmatpush1.bf16.msra.mxu0 %v395
      %404 = vmatprep.subr.bf16.mxu0 0
      %405 = vmatpush1.bf16.msra.mxu0 %v396
      %406 = vmatprep.subr.bf16.mxu0 0
      %407 = vmatpush1.bf16.msra.mxu0 0
      %408 = vmatprep.subr.bf16.mxu0 0
      %409 = vmatpush1.bf16.msra.mxu0 0
      %410 = vmatprep.subr.bf16.mxu0 0
      %411 = vmatpush1.bf16.msra.mxu0 0
      %412 = vmatprep.subr.bf16.mxu0 0
      %413 = vmatpush1.bf16.msra.mxu0 0
      %414 = vmatprep.subr.bf16.mxu0 0
      %415 = vmatpush1.bf16.msra.mxu0 0
      %416 = vmatprep.subr.bf16.mxu0 0
      %417 = vmatpush1.bf16.msra.mxu0 0
      %418 = vmatprep.subr.bf16.mxu0 0
      %419 = vmatpush1.bf16.msra.mxu0 0
      %420 = vmatprep.subr.bf16.mxu0 0
      %421 = vmatpush1.bf16.msra.mxu0 0
      %422 = vmatprep.subr.bf16.mxu0 0
      %423 = vmatpush1.bf16.msra.mxu0 0
      %424 = vmatprep.subr.bf16.mxu0 0
      %425 = vmatpush1.bf16.msra.mxu0 0
      %426 = vmatprep.subr.bf16.mxu0 0
      %427 = vmatpush1.bf16.msra.mxu0 0
      %428 = vmatprep.subr.bf16.mxu0 0
      %429 = vmatpush1.bf16.msra.mxu0 0
      %430 = vmatprep.subr.bf16.mxu0 0
      %431 = vmatpush1.bf16.msra.mxu0 0
      %432 = vmatprep.subr.bf16.mxu0 0
      %433 = vmatpush1.bf16.msra.mxu0 0
      %434 = vmatprep.mubr.bf16.mxu0 0
      %435 = vmatmul.mubr.bf16.gmra.mrb[0].mxu0 %v400
      %v436 = vpop.f32.mrb[0].mxu0
      %v437 = vadd.f32 %v385, %v436
      %v438 = vpop.f32.mrb[0].mxu0
      %v439 = vpop.f32.mrb[0].mxu0
      %v440 = vpop.f32.mrb[0].mxu0
      %441 = vdwg.mxu0
      %v442 = vmul.f32 %v437, 0.35355338
      %v443 = vpack.c.bf16 %v442, %v442
      %vm444 = vcmask 257024
      %445 = vst.msk [vmem:[%s327] sm:$0xf] %vm444, %v443
      %v446 = vpack.c.bf16 %v437, %v437
      %v448 = vunpack.c.l.b16 %v446
      %v449 = vpack.c.b16 %v448, %v448
      %450 = vrot.lane.b32.xlu0 %v449, 96
      %v451 = vpop.permute.xlu0 %450
      %453 = vst.msk [vmem:[%s334] sm:$0xf] %vm444, %v451
      %454 = vrot.lane.b32.xlu0 %v449, 64
      %v455 = vpop.permute.xlu0 %454
      %457 = vst.msk [vmem:[%s341] sm:$0xf] %vm444, %v455
      %p458 = scmp.lt.s32.totalorder %s23, 1
      %s459 = scalar_select %p458, %s23, 1
      %p460 = scmp.lt.s32.totalorder %s24, 0
      %s461 = scalar_select %p460, %s24, 0
      %s462 = sadd.s32 %s461, %s459
      %s463 = smul.addr %s462, 4
      %s464 = scalar_lea.vmem %s5, %s463
      %p465 = scmp.lt.s32.totalorder %s23, 1
      %s466 = scalar_select %p465, %s23, 1
      %p467 = scmp.lt.s32.totalorder %s24, 0
      %s468 = scalar_select %p467, %s24, 0
      %s469 = sadd.s32 %s468, %s466
      %s470 = smul.addr %s469, 4
      %s471 = scalar_lea.vmem %s6, %s470
      %p472 = scmp.lt.s32.totalorder %s23, 1
      %s473 = scalar_select %p472, %s23, 1
      %p474 = scmp.lt.s32.totalorder %s24, 0
      %s475 = scalar_select %p474, %s24, 0
      %s476 = sadd.s32 %s475, %s473
      %s477 = smul.addr %s476, 4
      %s478 = scalar_lea.vmem %s7, %s477
      // Predicated region
      $region41: #{moeut_lm_forward.10} parent=39 // pred_check
        %p479 = pneg %p163
      $region42: #{moeut_lm_forward.10} parent=39 // pred_check_branch
        %481 = sbr.rel (%p479) target = $region44
      $region43: #{moeut_lm_forward.10} parent=39 // pred_region
        _
      $region44: #{moeut_lm_forward.10} parent=39 // pred_fallthru
        _
      // Predicated region
      $region45: #{moeut_lm_forward.10} parent=39 // pred_check
        %p482 = pneg %p191
      $region46: #{moeut_lm_forward.10} parent=39 // pred_check_branch
        %484 = sbr.rel (%p482) target = $region48
      $region47: #{moeut_lm_forward.10} parent=39 // pred_region
        _
      $region48: #{moeut_lm_forward.10} parent=39 // pred_fallthru
        _
      // Predicated region
      $region49: #{moeut_lm_forward.10} parent=39 // pred_check
        %p485 = pneg %p219
      $region50: #{moeut_lm_forward.10} parent=39 // pred_check_branch
        %487 = sbr.rel (%p485) target = $region52
      $region51: #{moeut_lm_forward.10} parent=39 // pred_region
        _
      $region52: #{moeut_lm_forward.10} parent=39 // pred_fallthru
        _
    $region40: #{moeut_lm_forward.10} parent=5 // pred_fallthru
      _
    %p488 = scmp.le.s32.totalorder 2, %s14
    // Predicated region
    $region53: #{moeut_lm_forward.10} parent=5 // pred_check
      %p489 = pneg %p488
    $region54: #{moeut_lm_forward.10} parent=5 // pred_check_branch
      %491 = sbr.rel (%p489) target = $region56
    $region55: #{moeut_lm_forward.10} parent=5 // pred_region
      %s492 = ssub.s32 %s14, 2
      // Predicated region
      $region57: #{moeut_lm_forward.10} parent=55 // pred_check
        %p493 = pneg %p169
      $region58: #{moeut_lm_forward.10} parent=55 // pred_check_branch
        %495 = sbr.rel (%p493) target = $region60
      $region59: #{moeut_lm_forward.10} parent=55 // pred_region
        %p496 = scmp.lt.s32.totalorder %s25, 1
        %s497 = scalar_select %p496, %s25, 1
        %p498 = scmp.lt.s32.totalorder %s26, 0
        %s499 = scalar_select %p498, %s26, 0
        %s500 = sadd.s32 %s499, %s497
        %s501 = smul.addr %s500, 4
        %s502 = scalar_lea.vmem %s5, %s501
      $region60: #{moeut_lm_forward.10} parent=55 // pred_fallthru
        _
      // Predicated region
      $region61: #{moeut_lm_forward.10} parent=55 // pred_check
        %p503 = pneg %p197
      $region62: #{moeut_lm_forward.10} parent=55 // pred_check_branch
        %505 = sbr.rel (%p503) target = $region64
      $region63: #{moeut_lm_forward.10} parent=55 // pred_region
        %p506 = scmp.lt.s32.totalorder %s25, 1
        %s507 = scalar_select %p506, %s25, 1
        %p508 = scmp.lt.s32.totalorder %s26, 0
        %s509 = scalar_select %p508, %s26, 0
        %s510 = sadd.s32 %s509, %s507
        %s511 = smul.addr %s510, 4
        %s512 = scalar_lea.vmem %s6, %s511
      $region64: #{moeut_lm_forward.10} parent=55 // pred_fallthru
        _
      // Predicated region
      $region65: #{moeut_lm_forward.10} parent=55 // pred_check
        %p513 = pneg %p225
      $region66: #{moeut_lm_forward.10} parent=55 // pred_check_branch
        %515 = sbr.rel (%p513) target = $region68
      $region67: #{moeut_lm_forward.10} parent=55 // pred_region
        %p516 = scmp.lt.s32.totalorder %s25, 1
        %s517 = scalar_select %p516, %s25, 1
        %p518 = scmp.lt.s32.totalorder %s26, 0
        %s519 = scalar_select %p518, %s26, 0
        %s520 = sadd.s32 %s519, %s517
        %s521 = smul.addr %s520, 4
        %s522 = scalar_lea.vmem %s7, %s521
      $region68: #{moeut_lm_forward.10} parent=55 // pred_fallthru
        _
    $region56: #{moeut_lm_forward.10} parent=5 // pred_fallthru
      _
  $region6: #{moeut_lm_forward.10} parent=0 // loop_footer
    %s18 = sadd.s32 1, %s14
  $region7: #{moeut_lm_forward.10} parent=0 // loop_footer_branch
    %13 = sbr.rel target = $region3
  $region8: #{moeut_lm_forward.10} parent=0 // loop_exit
    _

// kernel: moeut_lm_forward.11
$region0: #{moeut_lm_forward.11}
  #allocation0 [shape = 'u32[]', space=smem, size = 0x4, offset = 0x4, fixed_abs, tag = 'smem constant byte address 0x4 - core index']
  #allocation1 [shape = 'u32[144,128]{1,0:T(1,128)}', space=vmem, size = 0x12000, scoped, tag = 'internal scratch']
  #allocation2 [shape = 'f32[4,8,1]{2,1,0:T(8,128)}', space=vmem, size = 0x4000, scoped, tag = 'scratch operand']
  #allocation3 [shape = 'f32[4,8,1]{2,1,0:T(8,128)}', space=vmem, size = 0x4000, scoped, tag = 'scratch operand']
  #allocation4 [shape = 'f32[4,8,8]{2,1,0:T(8,128)}', space=vmem, size = 0x4000, scoped, tag = 'scratch operand']
  %s0 = inlined_call_operand.vmem [shape: f32[2,8,32], index: 0, kind: input, shape index: {}]
  %s1 = inlined_call_operand.vmem [shape: bf16[2,8,32], index: 1, kind: input, shape index: {}]
  %s2 = inlined_call_operand.vmem [shape: bf16[2,8,32], index: 2, kind: input, shape index: {}]
  %s3 = inlined_call_operand.vmem [shape: bf16[2,8,32], index: 3, kind: input, shape index: {}]
  %s4 = inlined_call_operand.vmem [shape: bf16[32,32], index: 4, kind: input, shape index: {}]
  %s5 = inlined_call_operand.vmem [shape: f32[1,32], index: 5, kind: input, shape index: {}]
  %s6 = inlined_call_operand.vmem [shape: f32[2,8,32], index: 6, kind: output, shape index: {}]
  %s7 = sld [smem:[#allocation0]]
  $region65: #{moeut_lm_forward.11} parent=0
    _
  %s9 = ssub.s32 1, %s7
  %s10 = scalar_select 0, %s9, %s7
  loop: start=0, step=1, limit=4
  $region2: #{moeut_lm_forward.11} parent=0 // loop_pre_header
    _
  $region3: #{moeut_lm_forward.11} parent=0 // loop_header
    %s12 = sphi 0, %s16
    %p13 = scmp.ge.s32.totalorder %s12, 4
    %s19 = sphi 0, %s38
    %s20 = sphi 0, %s34
    %s21 = sphi 0, %s30
    %s22 = sphi 0, %s19
    %s23 = sphi 0, %s20
    %s24 = sphi 0, %s21
    %s25 = sphi 0, %s22
    %s26 = sphi 0, %s23
    %s27 = sphi 0, %s24
    %s43 = sphi 0, %s45
    %s46 = sphi 0, %s43
    %s47 = sphi 0, %s46
    %s63 = sphi 0, %s47
    %s71 = sphi 0, %s73
    %s74 = sphi 0, %s71
    %s75 = sphi 0, %s74
    %s91 = sphi 0, %s75
    %s99 = sphi 0, %s101
    %s102 = sphi 0, %s99
    %s103 = sphi 0, %s102
    %s119 = sphi 0, %s103
    %s127 = sphi 0, %s129
    %s130 = sphi 0, %s127
    %s131 = sphi 0, %s130
    %s147 = sphi 0, %s131
    %s151 = sphi 0, %s151
    %s153 = sphi 0, %s151
    %s154 = sphi 0, %s153
    %s168 = sphi 0, %s154
    %s172 = sphi 0, %s172
    %s174 = sphi 0, %s172
    %s175 = sphi 0, %s174
    %s189 = sphi 0, %s175
    %s197 = sphi 0, %s199
    %s200 = sphi 0, %s197
    %s201 = sphi 0, %s200
    %s217 = sphi 0, %s201
  $region4: #{moeut_lm_forward.11} parent=0 // loop_header_branch
    %15 = sbr.rel (%p13) target = $region8
  $region5: #{moeut_lm_forward.11} parent=0 // loop_body
    %s17 = ssub.s32 %s12, 1
    %s18 = ssub.s32 %s12, 2
    %s28 = sadd.s32 1, %s21
    %p29 = scmp.ge.s32.totalorder %s28, 1
    %s30 = scalar_select %p29, 0, %s28
    %s31 = sadd.s32 1, %s20
    %s32 = scalar_select %p29, %s31, %s20
    %p33 = scmp.ge.s32.totalorder %s32, 1
    %s34 = scalar_select %p33, 0, %s32
    %s35 = sadd.s32 1, %s19
    %s36 = scalar_select %p33, %s35, %s19
    %p37 = scmp.ge.s32.totalorder %s36, 2
    %s38 = scalar_select %p37, 0, %s36
    %s39 = ssub.s32 %s19, %s38
    %s40 = ssub.s32 %s20, %s34
    %s41 = sor.u32 %s39, %s40
    %p42 = scmp.eq.s32.totalorder %s41, 0
    %s44 = sadd.s32 %s43, 1
    %s45 = scalar_select %p42, %s43, %s44
    %p48 = pneg %p42
    %p49 = scmp.eq.s32.totalorder %s12, 1
    %p50 = por %p48, %p49
    %p51 = scmp.ne.s32.totalorder %s43, %s46
    %p52 = scmp.eq.s32.totalorder %s12, 0
    %p53 = por %p51, %p52
    %p54 = scmp.ne.s32.totalorder %s43, %s46
    %p55 = scmp.eq.s32.totalorder %s17, 1
    %p56 = por %p54, %p55
    %p57 = scmp.ne.s32.totalorder %s46, %s47
    %p58 = scmp.eq.s32.totalorder %s17, 0
    %p59 = por %p57, %p58
    %p60 = scmp.ne.s32.totalorder %s46, %s47
    %p61 = scmp.eq.s32.totalorder %s18, 1
    %p62 = por %p60, %p61
    %p64 = scmp.ne.s32.totalorder %s47, %s63
    %p65 = scmp.eq.s32.totalorder %s18, 0
    %p66 = por %p64, %p65
    %s67 = ssub.s32 %s19, %s38
    %s68 = ssub.s32 %s20, %s34
    %s69 = sor.u32 %s67, %s68
    %p70 = scmp.eq.s32.totalorder %s69, 0
    %s72 = sadd.s32 %s71, 1
    %s73 = scalar_select %p70, %s71, %s72
    %p76 = pneg %p70
    %p77 = scmp.eq.s32.totalorder %s12, 1
    %p78 = por %p76, %p77
    %p79 = scmp.ne.s32.totalorder %s71, %s74
    %p80 = scmp.eq.s32.totalorder %s12, 0
    %p81 = por %p79, %p80
    %p82 = scmp.ne.s32.totalorder %s71, %s74
    %p83 = scmp.eq.s32.totalorder %s17, 1
    %p84 = por %p82, %p83
    %p85 = scmp.ne.s32.totalorder %s74, %s75
    %p86 = scmp.eq.s32.totalorder %s17, 0
    %p87 = por %p85, %p86
    %p88 = scmp.ne.s32.totalorder %s74, %s75
    %p89 = scmp.eq.s32.totalorder %s18, 1
    %p90 = por %p88, %p89
    %p92 = scmp.ne.s32.totalorder %s75, %s91
    %p93 = scmp.eq.s32.totalorder %s18, 0
    %p94 = por %p92, %p93
    %s95 = ssub.s32 %s19, %s38
    %s96 = ssub.s32 %s21, %s30
    %s97 = sor.u32 %s95, %s96
    %p98 = scmp.eq.s32.totalorder %s97, 0
    %s100 = sadd.s32 %s99, 1
    %s101 = scalar_select %p98, %s99, %s100
    %p104 = pneg %p98
    %p105 = scmp.eq.s32.totalorder %s12, 1
    %p106 = por %p104, %p105
    %p107 = scmp.ne.s32.totalorder %s99, %s102
    %p108 = scmp.eq.s32.totalorder %s12, 0
    %p109 = por %p107, %p108
    %p110 = scmp.ne.s32.totalorder %s99, %s102
    %p111 = scmp.eq.s32.totalorder %s17, 1
    %p112 = por %p110, %p111
    %p113 = scmp.ne.s32.totalorder %s102, %s103
    %p114 = scmp.eq.s32.totalorder %s17, 0
    %p115 = por %p113, %p114
    %p116 = scmp.ne.s32.totalorder %s102, %s103
    %p117 = scmp.eq.s32.totalorder %s18, 1
    %p118 = por %p116, %p117
    %p120 = scmp.ne.s32.totalorder %s103, %s119
    %p121 = scmp.eq.s32.totalorder %s18, 0
    %p122 = por %p120, %p121
    %s123 = ssub.s32 %s19, %s38
    %s124 = ssub.s32 %s21, %s30
    %s125 = sor.u32 %s123, %s124
    %p126 = scmp.eq.s32.totalorder %s125, 0
    %s128 = sadd.s32 %s127, 1
    %s129 = scalar_select %p126, %s127, %s128
    %p132 = pneg %p126
    %p133 = scmp.eq.s32.totalorder %s12, 1
    %p134 = por %p132, %p133
    %p135 = scmp.ne.s32.totalorder %s127, %s130
    %p136 = scmp.eq.s32.totalorder %s12, 0
    %p137 = por %p135, %p136
    %p138 = scmp.ne.s32.totalorder %s127, %s130
    %p139 = scmp.eq.s32.totalorder %s17, 1
    %p140 = por %p138, %p139
    %p141 = scmp.ne.s32.totalorder %s130, %s131
    %p142 = scmp.eq.s32.totalorder %s17, 0
    %p143 = por %p141, %p142
    %p144 = scmp.ne.s32.totalorder %s130, %s131
    %p145 = scmp.eq.s32.totalorder %s18, 1
    %p146 = por %p144, %p145
    %p148 = scmp.ne.s32.totalorder %s131, %s147
    %p149 = scmp.eq.s32.totalorder %s18, 0
    %p150 = por %p148, %p149
    %s152 = sadd.s32 %s151, 1
    %p155 = scmp.eq.s32.totalorder %s12, 1
    %p156 = scmp.ne.s32.totalorder %s151, %s153
    %p157 = scmp.eq.s32.totalorder %s12, 0
    %p158 = por %p156, %p157
    %p159 = scmp.ne.s32.totalorder %s151, %s153
    %p160 = scmp.eq.s32.totalorder %s17, 1
    %p161 = por %p159, %p160
    %p162 = scmp.ne.s32.totalorder %s153, %s154
    %p163 = scmp.eq.s32.totalorder %s17, 0
    %p164 = por %p162, %p163
    %p165 = scmp.ne.s32.totalorder %s153, %s154
    %p166 = scmp.eq.s32.totalorder %s18, 1
    %p167 = por %p165, %p166
    %p169 = scmp.ne.s32.totalorder %s154, %s168
    %p170 = scmp.eq.s32.totalorder %s18, 0
    %p171 = por %p169, %p170
    %s173 = sadd.s32 %s172, 1
    %p176 = scmp.eq.s32.totalorder %s12, 1
    %p177 = scmp.ne.s32.totalorder %s172, %s174
    %p178 = scmp.eq.s32.totalorder %s12, 0
    %p179 = por %p177, %p178
    %p180 = scmp.ne.s32.totalorder %s172, %s174
    %p181 = scmp.eq.s32.totalorder %s17, 1
    %p182 = por %p180, %p181
    %p183 = scmp.ne.s32.totalorder %s174, %s175
    %p184 = scmp.eq.s32.totalorder %s17, 0
    %p185 = por %p183, %p184
    %p186 = scmp.ne.s32.totalorder %s174, %s175
    %p187 = scmp.eq.s32.totalorder %s18, 1
    %p188 = por %p186, %p187
    %p190 = scmp.ne.s32.totalorder %s175, %s189
    %p191 = scmp.eq.s32.totalorder %s18, 0
    %p192 = por %p190, %p191
    %s193 = ssub.s32 %s19, %s38
    %s194 = ssub.s32 %s20, %s34
    %s195 = sor.u32 %s193, %s194
    %p196 = scmp.eq.s32.totalorder %s195, 0
    %s198 = sadd.s32 %s197, 1
    %s199 = scalar_select %p196, %s197, %s198
    %p202 = pneg %p196
    %p203 = scmp.eq.s32.totalorder %s12, 1
    %p204 = por %p202, %p203
    %p205 = scmp.ne.s32.totalorder %s197, %s200
    %p206 = scmp.eq.s32.totalorder %s12, 0
    %p207 = por %p205, %p206
    %p208 = scmp.ne.s32.totalorder %s197, %s200
    %p209 = scmp.eq.s32.totalorder %s17, 1
    %p210 = por %p208, %p209
    %p211 = scmp.ne.s32.totalorder %s200, %s201
    %p212 = scmp.eq.s32.totalorder %s17, 0
    %p213 = por %p211, %p212
    %p214 = scmp.ne.s32.totalorder %s200, %s201
    %p215 = scmp.eq.s32.totalorder %s18, 1
    %p216 = por %p214, %p215
    %p218 = scmp.ne.s32.totalorder %s201, %s217
    %p219 = scmp.eq.s32.totalorder %s18, 0
    %p220 = por %p218, %p219
    %p221 = scmp.le.s32.totalorder 1, %s12
    %p222 = scmp.lt.s32.totalorder %s12, 3
    %p223 = pnand %p221, %p222
    %p224 = pneg %p223
    // Predicated region
    $region9: #{moeut_lm_forward.11} parent=5 // pred_check
      _
    $region10: #{moeut_lm_forward.11} parent=5 // pred_check_branch
      %226 = sbr.rel (%p223) target = $region12
    $region11: #{moeut_lm_forward.11} parent=5 // pred_region
      %s227 = ssub.s32 %s12, 1
      // Predicated region
      $region13: #{moeut_lm_forward.11} parent=11 // pred_check
        %p228 = pneg %p164
      $region14: #{moeut_lm_forward.11} parent=11 // pred_check_branch
        %230 = sbr.rel (%p228) target = $region16
      $region15: #{moeut_lm_forward.11} parent=11 // pred_region
        _
      $region16: #{moeut_lm_forward.11} parent=11 // pred_fallthru
        _
      // Predicated region
      $region17: #{moeut_lm_forward.11} parent=11 // pred_check
        %p231 = pneg %p185
      $region18: #{moeut_lm_forward.11} parent=11 // pred_check_branch
        %233 = sbr.rel (%p231) target = $region20
      $region19: #{moeut_lm_forward.11} parent=11 // pred_region
        _
      $region20: #{moeut_lm_forward.11} parent=11 // pred_fallthru
        _
    $region12: #{moeut_lm_forward.11} parent=5 // pred_fallthru
      _
    %p234 = scmp.lt.s32.totalorder %s12, 2
    // Predicated region
    $region21: #{moeut_lm_forward.11} parent=5 // pred_check
      %p235 = pneg %p234
    $region22: #{moeut_lm_forward.11} parent=5 // pred_check_branch
      %237 = sbr.rel (%p235) target = $region24
    $region23: #{moeut_lm_forward.11} parent=5 // pred_region
      // Predicated region
      $region25: #{moeut_lm_forward.11} parent=23 // pred_check
        %p238 = pneg %p53
      $region26: #{moeut_lm_forward.11} parent=23 // pred_check_branch
        %240 = sbr.rel (%p238) target = $region28
      $region27: #{moeut_lm_forward.11} parent=23 // pred_region
        %p241 = scmp.lt.s32.totalorder %s19, 1
        %s242 = scalar_select %p241, %s19, 1
        %p243 = scmp.lt.s32.totalorder %s20, 0
        %s244 = scalar_select %p243, %s20, 0
        %s245 = sadd.s32 %s244, %s242
        %s246 = smul.addr %s245, 8
        %s247 = scalar_lea.vmem %s0, %s246
      $region28: #{moeut_lm_forward.11} parent=23 // pred_fallthru
        _
      // Predicated region
      $region29: #{moeut_lm_forward.11} parent=23 // pred_check
        %p248 = pneg %p81
      $region30: #{moeut_lm_forward.11} parent=23 // pred_check_branch
        %250 = sbr.rel (%p248) target = $region32
      $region31: #{moeut_lm_forward.11} parent=23 // pred_region
        %p251 = scmp.lt.s32.totalorder %s19, 1
        %s252 = scalar_select %p251, %s19, 1
        %p253 = scmp.lt.s32.totalorder %s20, 0
        %s254 = scalar_select %p253, %s20, 0
        %s255 = sadd.s32 %s254, %s252
        %s256 = smul.addr %s255, 4
        %s257 = scalar_lea.vmem %s1, %s256
      $region32: #{moeut_lm_forward.11} parent=23 // pred_fallthru
        _
      // Predicated region
      $region33: #{moeut_lm_forward.11} parent=23 // pred_check
        %p258 = pneg %p109
      $region34: #{moeut_lm_forward.11} parent=23 // pred_check_branch
        %260 = sbr.rel (%p258) target = $region36
      $region35: #{moeut_lm_forward.11} parent=23 // pred_region
        %p261 = scmp.lt.s32.totalorder %s19, 1
        %s262 = scalar_select %p261, %s19, 1
        %p263 = scmp.lt.s32.totalorder %s21, 0
        %s264 = scalar_select %p263, %s21, 0
        %s265 = sadd.s32 %s264, %s262
        %s266 = smul.addr %s265, 4
        %s267 = scalar_lea.vmem %s2, %s266
      $region36: #{moeut_lm_forward.11} parent=23 // pred_fallthru
        _
      // Predicated region
      $region37: #{moeut_lm_forward.11} parent=23 // pred_check
        %p268 = pneg %p137
      $region38: #{moeut_lm_forward.11} parent=23 // pred_check_branch
        %270 = sbr.rel (%p268) target = $region40
      $region39: #{moeut_lm_forward.11} parent=23 // pred_region
        %p271 = scmp.lt.s32.totalorder %s19, 1
        %s272 = scalar_select %p271, %s19, 1
        %p273 = scmp.lt.s32.totalorder %s21, 0
        %s274 = scalar_select %p273, %s21, 0
        %s275 = sadd.s32 %s274, %s272
        %s276 = smul.addr %s275, 4
        %s277 = scalar_lea.vmem %s3, %s276
      $region40: #{moeut_lm_forward.11} parent=23 // pred_fallthru
        _
    $region24: #{moeut_lm_forward.11} parent=5 // pred_fallthru
      _
    %p278 = scmp.le.s32.totalorder 1, %s12
    %p279 = scmp.lt.s32.totalorder %s12, 3
    %p280 = pnand %p278, %p279
    %p281 = pneg %p280
    // Predicated region
    $region41: #{moeut_lm_forward.11} parent=5 // pred_check
      _
    $region42: #{moeut_lm_forward.11} parent=5 // pred_check_branch
      %283 = sbr.rel (%p280) target = $region44
    $region43: #{moeut_lm_forward.11} parent=5 // pred_region
      %s284 = ssub.s32 %s12, 1
      %p285 = scmp.lt.s32.totalorder %s22, 1
      %s286 = scalar_select %p285, %s22, 1
      %p287 = scmp.lt.s32.totalorder %s23, 0
      %s288 = scalar_select %p287, %s23, 0
      %s289 = sadd.s32 %s288, %s286
      %s290 = smul.addr %s289, 8
      %s291 = scalar_lea.vmem %s0, %s290
      %p292 = pneg %p59
      %p293 = pneg %p56
      %p294 = scmp.lt.s32.totalorder %s22, 1
      %s295 = scalar_select %p294, %s22, 1
      %p296 = scmp.lt.s32.totalorder %s23, 0
      %s297 = scalar_select %p296, %s23, 0
      %s298 = sadd.s32 %s297, %s295
      %s299 = smul.addr %s298, 4
      %s300 = scalar_lea.vmem %s1, %s299
      %p301 = pneg %p87
      %p302 = pneg %p84
      %p303 = scmp.lt.s32.totalorder %s22, 1
      %s304 = scalar_select %p303, %s22, 1
      %p305 = scmp.lt.s32.totalorder %s24, 0
      %s306 = scalar_select %p305, %s24, 0
      %s307 = sadd.s32 %s306, %s304
      %s308 = smul.addr %s307, 4
      %s309 = scalar_lea.vmem %s2, %s308
      %p310 = pneg %p115
      %p311 = pneg %p112
      %p312 = scmp.lt.s32.totalorder %s22, 1
      %s313 = scalar_select %p312, %s22, 1
      %p314 = scmp.lt.s32.totalorder %s24, 0
      %s315 = scalar_select %p314, %s24, 0
      %s316 = sadd.s32 %s315, %s313
      %s317 = smul.addr %s316, 4
      %s318 = scalar_lea.vmem %s3, %s317
      %p319 = pneg %p143
      %p320 = pneg %p140
      %p321 = pneg %p164
      %p322 = pneg %p161
      %p323 = pneg %p185
      %p324 = pneg %p182
      %p325 = pneg %p213
      %p326 = pneg %p210
      %p327 = scmp.lt.s32.totalorder %s22, 1
      %s328 = scalar_select %p327, %s22, 1
      %p329 = scmp.lt.s32.totalorder %s23, 0
      %s330 = scalar_select %p329, %s23, 0
      %s331 = sadd.s32 %s330, %s328
      %s332 = smul.addr %s331, 8
      %s333 = scalar_lea.vmem %s6, %s332
      %p334 = scmp.lt.s32.totalorder %s22, 1
      %s335 = scalar_select %p334, %s22, 1
      %p336 = scmp.lt.s32.totalorder %s23, 0
      %s337 = scalar_select %p336, %s23, 0
      %s338 = sadd.s32 %s337, %s335
      %s339 = smul.addr %s338, 8
      %s340 = scalar_lea.vmem %s0, %s339
      %p341 = scmp.lt.s32.totalorder %s22, 1
      %s342 = scalar_select %p341, %s22, 1
      %p343 = scmp.lt.s32.totalorder %s23, 0
      %s344 = scalar_select %p343, %s23, 0
      %s345 = sadd.s32 %s344, %s342
      %s346 = smul.addr %s345, 4
      %s347 = scalar_lea.vmem %s1, %s346
      %p348 = scmp.lt.s32.totalorder %s22, 1
      %s349 = scalar_select %p348, %s22, 1
      %p350 = scmp.lt.s32.totalorder %s24, 0
      %s351 = scalar_select %p350, %s24, 0
      %s352 = sadd.s32 %s351, %s349
      %s353 = smul.addr %s352, 4
      %s354 = scalar_lea.vmem %s2, %s353
      %p355 = scmp.lt.s32.totalorder %s22, 1
      %s356 = scalar_select %p355, %s22, 1
      %p357 = scmp.lt.s32.totalorder %s24, 0
      %s358 = scalar_select %p357, %s24, 0
      %s359 = sadd.s32 %s358, %s356
      %s360 = smul.addr %s359, 4
      %s361 = scalar_lea.vmem %s3, %s360
      %p362 = scmp.lt.s32.totalorder %s22, 1
      %s363 = scalar_select %p362, %s22, 1
      %p364 = scmp.lt.s32.totalorder %s23, 0
      %s365 = scalar_select %p364, %s23, 0
      %s366 = sadd.s32 %s365, %s363
      %s367 = smul.addr %s366, 8
      %s368 = scalar_lea.vmem %s6, %s367
      %p370 = scmp.eq.s32.totalorder %s24, 0
      // Predicated region
      $region45: #{moeut_lm_forward.11} parent=43 // pred_check
        %p371 = pneg %p370
      $region46: #{moeut_lm_forward.11} parent=43 // pred_check_branch
        %373 = sbr.rel (%p371) target = $region48
      $region47: #{moeut_lm_forward.11} parent=43 // pred_region
        %vm374 = vcmask 7168
        %375 = vst.msk [vmem:[#allocation2] sm:$0xff] %vm374, -1e+30
        %376 = vst.msk [vmem:[#allocation2 + $0x8] sm:$0xff] %vm374, -1e+30
        %377 = vst.msk [vmem:[#allocation2 + $0x10] sm:$0xff] %vm374, -1e+30
        %378 = vst.msk [vmem:[#allocation2 + $0x18] sm:$0xff] %vm374, -1e+30
        %379 = vst.msk [vmem:[#allocation3] sm:$0xff] %vm374, 0.0
        %380 = vst.msk [vmem:[#allocation3 + $0x8] sm:$0xff] %vm374, 0.0
        %381 = vst.msk [vmem:[#allocation3 + $0x10] sm:$0xff] %vm374, 0.0
        %382 = vst.msk [vmem:[#allocation3 + $0x18] sm:$0xff] %vm374, 0.0
        %vm383 = vcmask 64512
        %384 = vst.msk [vmem:[#allocation4] sm:$0xff] %vm383, 0.0
        %385 = vst.msk [vmem:[#allocation4 + $0x8] sm:$0xff] %vm383, 0.0
        %386 = vst.msk [vmem:[#allocation4 + $0x10] sm:$0xff] %vm383, 0.0
        %387 = vst.msk [vmem:[#allocation4 + $0x18] sm:$0xff] %vm383, 0.0
      $region48: #{moeut_lm_forward.11} parent=43 // pred_fallthru
        _
      %v388 = vld [vmem:[%s347] sm:$0xf]
      %390 = vrot.lane.b32.xlu0 %v388, 120
      %v391 = vpop.permute.xlu0 %390
      %392 = vrot.lane.b32.xlu0 %v388, 112
      %v393 = vpop.permute.xlu0 %392
      %394 = vrot.lane.b32.xlu0 %v388, 104
      %v395 = vpop.permute.xlu0 %394
      %v398 = vpack.i.b16 %v391, %v388
      %v399 = vshrl.u32 %v388, 16
      %v400 = vshrl.u32 %v391, 16
      %v401 = vpack.i.b16 %v400, %v399
      %v404 = vpack.i.b16 %v395, %v393
      %v405 = vshrl.u32 %v393, 16
      %v406 = vshrl.u32 %v395, 16
      %v407 = vpack.i.b16 %v406, %v405
      %v410 = vunpack.c.l.s4 1983009808
      %v411 = vunpack.c.0.s8 %v410
      %v412 = vlaneseq
      %v413 = vshrl.u32 %v412, 7
      %v414 = vsub.s32 %v411, %v413
      %v415 = vrot.slane %v398, %v414
      %v418 = vunpack.c.l.s4 1983009808
      %v419 = vunpack.c.0.s8 %v418
      %v420 = vlaneseq
      %v421 = vshrl.u32 %v420, 7
      %v422 = vsub.s32 %v419, %v421
      %v423 = vrot.slane %v404, %v422
      %v424 = vcombine.low %v415, %v423
      %v425 = vcombine.high %v415, %v423
      %v427 = vunpack.c.l.s4 1934713408
      %v428 = vunpack.c.0.s8 %v427
      %v429 = vlaneseq
      %v430 = vshrl.u32 %v429, 7
      %v431 = vsub.s32 %v428, %v430
      %v432 = vrot.slane %v424, %v431
      %v434 = vunpack.c.l.s4 1934713408
      %v435 = vunpack.c.0.s8 %v434
      %v436 = vlaneseq
      %v437 = vshrl.u32 %v436, 7
      %v438 = vsub.s32 %v435, %v437
      %v439 = vrot.slane %v425, %v438
      %v440 = vcombine.high %v432, 0
      %v441 = vcombine.high %v439, 0
      %v444 = vunpack.c.l.s4 1983009808
      %v445 = vunpack.c.0.s8 %v444
      %v446 = vlaneseq
      %v447 = vshrl.u32 %v446, 7
      %v448 = vsub.s32 %v445, %v447
      %v449 = vrot.slane %v401, %v448
      %v452 = vunpack.c.l.s4 1983009808
      %v453 = vunpack.c.0.s8 %v452
      %v454 = vlaneseq
      %v455 = vshrl.u32 %v454, 7
      %v456 = vsub.s32 %v453, %v455
      %v457 = vrot.slane %v407, %v456
      %v458 = vcombine.low %v449, %v457
      %v459 = vcombine.high %v449, %v457
      %v461 = vunpack.c.l.s4 1934713408
      %v462 = vunpack.c.0.s8 %v461
      %v463 = vlaneseq
      %v464 = vshrl.u32 %v463, 7
      %v465 = vsub.s32 %v462, %v464
      %v466 = vrot.slane %v458, %v465
      %v468 = vunpack.c.l.s4 1934713408
      %v469 = vunpack.c.0.s8 %v468
      %v470 = vlaneseq
      %v471 = vshrl.u32 %v470, 7
      %v472 = vsub.s32 %v469, %v471
      %v473 = vrot.slane %v459, %v472
      %v474 = vcombine.high %v466, 0
      %v475 = vcombine.high %v473, 0
      %v476 = vcombine.low %v432, %v439
      %v478 = vunpack.c.l.s4 1983009808
      %v479 = vunpack.c.0.s8 %v478
      %v480 = vlaneseq
      %v481 = vshrl.u32 %v480, 7
      %v482 = vsub.s32 %v479, %v481
      %v483 = vrot.slane %v476, %v482
      %v484 = vcombine.low %v440, %v441
      %v486 = vunpack.c.l.s4 1983009808
      %v487 = vunpack.c.0.s8 %v486
      %v488 = vlaneseq
      %v489 = vshrl.u32 %v488, 7
      %v490 = vsub.s32 %v487, %v489
      %v491 = vrot.slane %v484, %v490
      %v492 = vcombine.low %v483, %v491
      %v494 = vunpack.c.l.s4 1934713408
      %v495 = vunpack.c.0.s8 %v494
      %v496 = vlaneseq
      %v497 = vshrl.u32 %v496, 7
      %v498 = vsub.s32 %v495, %v497
      %v499 = vrot.slane %v492, %v498
      %v500 = vcombine.high %v499, 0
      %v501 = vcombine.low %v466, %v473
      %v503 = vunpack.c.l.s4 1983009808
      %v504 = vunpack.c.0.s8 %v503
      %v505 = vlaneseq
      %v506 = vshrl.u32 %v505, 7
      %v507 = vsub.s32 %v504, %v506
      %v508 = vrot.slane %v501, %v507
      %v509 = vcombine.low %v474, %v475
      %v511 = vunpack.c.l.s4 1983009808
      %v512 = vunpack.c.0.s8 %v511
      %v513 = vlaneseq
      %v514 = vshrl.u32 %v513, 7
      %v515 = vsub.s32 %v512, %v514
      %v516 = vrot.slane %v509, %v515
      %v517 = vcombine.low %v508, %v516
      %v519 = vunpack.c.l.s4 1934713408
      %v520 = vunpack.c.0.s8 %v519
      %v521 = vlaneseq
      %v522 = vshrl.u32 %v521, 7
      %v523 = vsub.s32 %v520, %v522
      %v524 = vrot.slane %v517, %v523
      %v525 = vcombine.high %v524, 0
      %v528 = vpack.i.b16 %v524, %v499
      %v529 = vshrl.u32 %v499, 16
      %v530 = vshrl.u32 %v524, 16
      %v531 = vpack.i.b16 %v530, %v529
      %v534 = vpack.i.b16 %v525, %v500
      %v535 = vshrl.u32 %v500, 16
      %v536 = vshrl.u32 %v525, 16
      %v537 = vpack.i.b16 %v536, %v535
      %v538 = vld [vmem:[%s354] sm:$0xf]
      %540 = vrot.lane.b32.xlu0 %v538, 120
      %v541 = vpop.permute.xlu0 %540
      %542 = vrot.lane.b32.xlu0 %v538, 112
      %v543 = vpop.permute.xlu0 %542
      %544 = vrot.lane.b32.xlu0 %v538, 104
      %v545 = vpop.permute.xlu0 %544
      %v548 = vpack.i.b16 %v541, %v538
      %v549 = vshrl.u32 %v538, 16
      %v550 = vshrl.u32 %v541, 16
      %v551 = vpack.i.b16 %v550, %v549
      %v554 = vpack.i.b16 %v545, %v543
      %v555 = vshrl.u32 %v543, 16
      %v556 = vshrl.u32 %v545, 16
      %v557 = vpack.i.b16 %v556, %v555
      %v560 = vunpack.c.l.s4 1983009808
      %v561 = vunpack.c.0.s8 %v560
      %v562 = vlaneseq
      %v563 = vshrl.u32 %v562, 7
      %v564 = vsub.s32 %v561, %v563
      %v565 = vrot.slane %v548, %v564
      %v568 = vunpack.c.l.s4 1983009808
      %v569 = vunpack.c.0.s8 %v568
      %v570 = vlaneseq
      %v571 = vshrl.u32 %v570, 7
      %v572 = vsub.s32 %v569, %v571
      %v573 = vrot.slane %v554, %v572
      %v574 = vcombine.low %v565, %v573
      %v575 = vcombine.high %v565, %v573
      %v577 = vunpack.c.l.s4 1934713408
      %v578 = vunpack.c.0.s8 %v577
      %v579 = vlaneseq
      %v580 = vshrl.u32 %v579, 7
      %v581 = vsub.s32 %v578, %v580
      %v582 = vrot.slane %v574, %v581
      %v584 = vunpack.c.l.s4 1934713408
      %v585 = vunpack.c.0.s8 %v584
      %v586 = vlaneseq
      %v587 = vshrl.u32 %v586, 7
      %v588 = vsub.s32 %v585, %v587
      %v589 = vrot.slane %v575, %v588
      %v590 = vcombine.high %v582, 0
      %v591 = vcombine.high %v589, 0
      %v594 = vunpack.c.l.s4 1983009808
      %v595 = vunpack.c.0.s8 %v594
      %v596 = vlaneseq
      %v597 = vshrl.u32 %v596, 7
      %v598 = vsub.s32 %v595, %v597
      %v599 = vrot.slane %v551, %v598
      %v602 = vunpack.c.l.s4 1983009808
      %v603 = vunpack.c.0.s8 %v602
      %v604 = vlaneseq
      %v605 = vshrl.u32 %v604, 7
      %v606 = vsub.s32 %v603, %v605
      %v607 = vrot.slane %v557, %v606
      %v608 = vcombine.low %v599, %v607
      %v609 = vcombine.high %v599, %v607
      %v611 = vunpack.c.l.s4 1934713408
      %v612 = vunpack.c.0.s8 %v611
      %v613 = vlaneseq
      %v614 = vshrl.u32 %v613, 7
      %v615 = vsub.s32 %v612, %v614
      %v616 = vrot.slane %v608, %v615
      %v618 = vunpack.c.l.s4 1934713408
      %v619 = vunpack.c.0.s8 %v618
      %v620 = vlaneseq
      %v621 = vshrl.u32 %v620, 7
      %v622 = vsub.s32 %v619, %v621
      %v623 = vrot.slane %v609, %v622
      %v624 = vcombine.high %v616, 0
      %v625 = vcombine.high %v623, 0
      %v626 = vcombine.low %v582, %v589
      %v628 = vunpack.c.l.s4 1983009808
      %v629 = vunpack.c.0.s8 %v628
      %v630 = vlaneseq
      %v631 = vshrl.u32 %v630, 7
      %v632 = vsub.s32 %v629, %v631
      %v633 = vrot.slane %v626, %v632
      %v634 = vcombine.low %v590, %v591
      %v636 = vunpack.c.l.s4 1983009808
      %v637 = vunpack.c.0.s8 %v636
      %v638 = vlaneseq
      %v639 = vshrl.u32 %v638, 7
      %v640 = vsub.s32 %v637, %v639
      %v641 = vrot.slane %v634, %v640
      %v642 = vcombine.low %v633, %v641
      %v644 = vunpack.c.l.s4 1934713408
      %v645 = vunpack.c.0.s8 %v644
      %v646 = vlaneseq
      %v647 = vshrl.u32 %v646, 7
      %v648 = vsub.s32 %v645, %v647
      %v649 = vrot.slane %v642, %v648
      %v650 = vcombine.high %v649, 0
      %v651 = vcombine.low %v616, %v623
      %v653 = vunpack.c.l.s4 1983009808
      %v654 = vunpack.c.0.s8 %v653
      %v655 = vlaneseq
      %v656 = vshrl.u32 %v655, 7
      %v657 = vsub.s32 %v654, %v656
      %v658 = vrot.slane %v651, %v657
      %v659 = vcombine.low %v624, %v625
      %v661 = vunpack.c.l.s4 1983009808
      %v662 = vunpack.c.0.s8 %v661
      %v663 = vlaneseq
      %v664 = vshrl.u32 %v663, 7
      %v665 = vsub.s32 %v662, %v664
      %v666 = vrot.slane %v659, %v665
      %v667 = vcombine.low %v658, %v666
      %v669 = vunpack.c.l.s4 1934713408
      %v670 = vunpack.c.0.s8 %v669
      %v671 = vlaneseq
      %v672 = vshrl.u32 %v671, 7
      %v673 = vsub.s32 %v670, %v672
      %v674 = vrot.slane %v667, %v673
      %v675 = vcombine.high %v674, 0
      %v678 = vpack.i.b16 %v674, %v649
      %v679 = vshrl.u32 %v649, 16
      %v680 = vshrl.u32 %v674, 16
      %v681 = vpack.i.b16 %v680, %v679
      %v684 = vpack.i.b16 %v675, %v650
      %v685 = vshrl.u32 %v650, 16
      %v686 = vshrl.u32 %v675, 16
      %v687 = vpack.i.b16 %v686, %v685
      %v688 = vld [vmem:[%s361] sm:$0xf]
      %690 = vrot.lane.b32.xlu0 %v688, 120
      %v691 = vpop.permute.xlu0 %690
      %692 = vrot.lane.b32.xlu0 %v688, 112
      %v693 = vpop.permute.xlu0 %692
      %694 = vrot.lane.b32.xlu0 %v688, 104
      %v695 = vpop.permute.xlu0 %694
      %v698 = vpack.i.b16 %v691, %v688
      %v699 = vshrl.u32 %v688, 16
      %v700 = vshrl.u32 %v691, 16
      %v701 = vpack.i.b16 %v700, %v699
      %v704 = vpack.i.b16 %v695, %v693
      %v705 = vshrl.u32 %v693, 16
      %v706 = vshrl.u32 %v695, 16
      %v707 = vpack.i.b16 %v706, %v705
      %v710 = vunpack.c.l.s4 1983009808
      %v711 = vunpack.c.0.s8 %v710
      %v712 = vlaneseq
      %v713 = vshrl.u32 %v712, 7
      %v714 = vsub.s32 %v711, %v713
      %v715 = vrot.slane %v698, %v714
      %v718 = vunpack.c.l.s4 1983009808
      %v719 = vunpack.c.0.s8 %v718
      %v720 = vlaneseq
      %v721 = vshrl.u32 %v720, 7
      %v722 = vsub.s32 %v719, %v721
      %v723 = vrot.slane %v704, %v722
      %v724 = vcombine.low %v715, %v723
      %v725 = vcombine.high %v715, %v723
      %v727 = vunpack.c.l.s4 1934713408
      %v728 = vunpack.c.0.s8 %v727
      %v729 = vlaneseq
      %v730 = vshrl.u32 %v729, 7
      %v731 = vsub.s32 %v728, %v730
      %v732 = vrot.slane %v724, %v731
      %v734 = vunpack.c.l.s4 1934713408
      %v735 = vunpack.c.0.s8 %v734
      %v736 = vlaneseq
      %v737 = vshrl.u32 %v736, 7
      %v738 = vsub.s32 %v735, %v737
      %v739 = vrot.slane %v725, %v738
      %v740 = vcombine.high %v732, 0
      %v741 = vcombine.high %v739, 0
      %v744 = vunpack.c.l.s4 1983009808
      %v745 = vunpack.c.0.s8 %v744
      %v746 = vlaneseq
      %v747 = vshrl.u32 %v746, 7
      %v748 = vsub.s32 %v745, %v747
      %v749 = vrot.slane %v701, %v748
      %v752 = vunpack.c.l.s4 1983009808
      %v753 = vunpack.c.0.s8 %v752
      %v754 = vlaneseq
      %v755 = vshrl.u32 %v754, 7
      %v756 = vsub.s32 %v753, %v755
      %v757 = vrot.slane %v707, %v756
      %v758 = vcombine.low %v749, %v757
      %v759 = vcombine.high %v749, %v757
      %v761 = vunpack.c.l.s4 1934713408
      %v762 = vunpack.c.0.s8 %v761
      %v763 = vlaneseq
      %v764 = vshrl.u32 %v763, 7
      %v765 = vsub.s32 %v762, %v764
      %v766 = vrot.slane %v758, %v765
      %v768 = vunpack.c.l.s4 1934713408
      %v769 = vunpack.c.0.s8 %v768
      %v770 = vlaneseq
      %v771 = vshrl.u32 %v770, 7
      %v772 = vsub.s32 %v769, %v771
      %v773 = vrot.slane %v759, %v772
      %v774 = vcombine.high %v766, 0
      %v775 = vcombine.high %v773, 0
      %v776 = vcombine.low %v732, %v739
      %v778 = vunpack.c.l.s4 1983009808
      %v779 = vunpack.c.0.s8 %v778
      %v780 = vlaneseq
      %v781 = vshrl.u32 %v780, 7
      %v782 = vsub.s32 %v779, %v781
      %v783 = vrot.slane %v776, %v782
      %v784 = vcombine.low %v740, %v741
      %v786 = vunpack.c.l.s4 1983009808
      %v787 = vunpack.c.0.s8 %v786
      %v788 = vlaneseq
      %v789 = vshrl.u32 %v788, 7
      %v790 = vsub.s32 %v787, %v789
      %v791 = vrot.slane %v784, %v790
      %v792 = vcombine.low %v783, %v791
      %v794 = vunpack.c.l.s4 1934713408
      %v795 = vunpack.c.0.s8 %v794
      %v796 = vlaneseq
      %v797 = vshrl.u32 %v796, 7
      %v798 = vsub.s32 %v795, %v797
      %v799 = vrot.slane %v792, %v798
      %v800 = vcombine.high %v799, 0
      %v801 = vcombine.low %v766, %v773
      %v803 = vunpack.c.l.s4 1983009808
      %v804 = vunpack.c.0.s8 %v803
      %v805 = vlaneseq
      %v806 = vshrl.u32 %v805, 7
      %v807 = vsub.s32 %v804, %v806
      %v808 = vrot.slane %v801, %v807
      %v809 = vcombine.low %v774, %v775
      %v811 = vunpack.c.l.s4 1983009808
      %v812 = vunpack.c.0.s8 %v811
      %v813 = vlaneseq
      %v814 = vshrl.u32 %v813, 7
      %v815 = vsub.s32 %v812, %v814
      %v816 = vrot.slane %v809, %v815
      %v817 = vcombine.low %v808, %v816
      %v819 = vunpack.c.l.s4 1934713408
      %v820 = vunpack.c.0.s8 %v819
      %v821 = vlaneseq
      %v822 = vshrl.u32 %v821, 7
      %v823 = vsub.s32 %v820, %v822
      %v824 = vrot.slane %v817, %v823
      %v825 = vcombine.high %v824, 0
      %v828 = vpack.i.b16 %v824, %v799
      %v829 = vshrl.u32 %v799, 16
      %v830 = vshrl.u32 %v824, 16
      %v831 = vpack.i.b16 %v830, %v829
      %v834 = vpack.i.b16 %v825, %v800
      %v835 = vshrl.u32 %v800, 16
      %v836 = vshrl.u32 %v825, 16
      %v837 = vpack.i.b16 %v836, %v835
      %vm838 = vcmask 64512
      %v840 = vsel %vm838, %v528, 0
      %v843 = vsel %vm838, %v678, 0
      %845 = vmatprep.subr.bf16.mxu0 0
      %846 = vmatpush1.bf16.xpose.msra.mxu0 %v843
      %847 = vmatprep.subr.bf16.mxu0 0
      %848 = vmatpush1.bf16.xpose.msra.mxu0 0
      %849 = vmatprep.subr.bf16.mxu0 0
      %850 = vmatpush1.bf16.xpose.msra.mxu0 0
      %851 = vmatprep.subr.bf16.mxu0 0
      %852 = vmatpush1.bf16.xpose.msra.mxu0 0
      %853 = vmatprep.subr.bf16.mxu0 0
      %854 = vmatpush1.bf16.xpose.msra.mxu0 0
      %855 = vmatprep.subr.bf16.mxu0 0
      %856 = vmatpush1.bf16.xpose.msra.mxu0 0
      %857 = vmatprep.subr.bf16.mxu0 0
      %858 = vmatpush1.bf16.xpose.msra.mxu0 0
      %859 = vmatprep.subr.bf16.mxu0 0
      %860 = vmatpush1.bf16.xpose.msra.mxu0 0
      %861 = vmatprep.subr.bf16.mxu0 0
      %862 = vmatpush1.bf16.xpose.msra.mxu0 0
      %863 = vmatprep.subr.bf16.mxu0 0
      %864 = vmatpush1.bf16.xpose.msra.mxu0 0
      %865 = vmatprep.subr.bf16.mxu0 0
      %866 = vmatpush1.bf16.xpose.msra.mxu0 0
      %867 = vmatprep.subr.bf16.mxu0 0
      %868 = vmatpush1.bf16.xpose.msra.mxu0 0
      %869 = vmatprep.subr.bf16.mxu0 0
      %870 = vmatpush1.bf16.xpose.msra.mxu0 0
      %871 = vmatprep.subr.bf16.mxu0 0
      %872 = vmatpush1.bf16.xpose.msra.mxu0 0
      %873 = vmatprep.subr.bf16.mxu0 0
      %874 = vmatpush1.bf16.xpose.msra.mxu0 0
      %875 = vmatprep.subr.bf16.mxu0 0
      %876 = vmatpush1.bf16.xpose.msra.mxu0 0
      %877 = vmatprep.mubr.bf16.mxu0 0
      %878 = vmatmul.mubr.bf16.gmra.mrb[0].mxu0 %v840
      %v879 = vpop.f32.mrb[0].mxu0
      %v880 = vadd.f32 0.0, %v879
      %v881 = vpop.f32.mrb[0].mxu0
      %v882 = vpop.f32.mrb[0].mxu0
      %v883 = vpop.f32.mrb[0].mxu0
      %884 = vdwg.mxu0
      %v886 = vsel %vm838, %v531, 0
      %v889 = vsel %vm838, %v681, 0
      %891 = vmatprep.subr.bf16.mxu0 0
      %892 = vmatpush1.bf16.xpose.msra.mxu0 %v889
      %893 = vmatprep.subr.bf16.mxu0 0
      %894 = vmatpush1.bf16.xpose.msra.mxu0 0
      %895 = vmatprep.subr.bf16.mxu0 0
      %896 = vmatpush1.bf16.xpose.msra.mxu0 0
      %897 = vmatprep.subr.bf16.mxu0 0
      %898 = vmatpush1.bf16.xpose.msra.mxu0 0
      %899 = vmatprep.subr.bf16.mxu0 0
      %900 = vmatpush1.bf16.xpose.msra.mxu0 0
      %901 = vmatprep.subr.bf16.mxu0 0
      %902 = vmatpush1.bf16.xpose.msra.mxu0 0
      %903 = vmatprep.subr.bf16.mxu0 0
      %904 = vmatpush1.bf16.xpose.msra.mxu0 0
      %905 = vmatprep.subr.bf16.mxu0 0
      %906 = vmatpush1.bf16.xpose.msra.mxu0 0
      %907 = vmatprep.subr.bf16.mxu0 0
      %908 = vmatpush1.bf16.xpose.msra.mxu0 0
      %909 = vmatprep.subr.bf16.mxu0 0
      %910 = vmatpush1.bf16.xpose.msra.mxu0 0
      %911 = vmatprep.subr.bf16.mxu0 0
      %912 = vmatpush1.bf16.xpose.msra.mxu0 0
      %913 = vmatprep.subr.bf16.mxu0 0
      %914 = vmatpush1.bf16.xpose.msra.mxu0 0
      %915 = vmatprep.subr.bf16.mxu0 0
      %916 = vmatpush1.bf16.xpose.msra.mxu0 0
      %917 = vmatprep.subr.bf16.mxu0 0
      %918 = vmatpush1.bf16.xpose.msra.mxu0 0
      %919 = vmatprep.subr.bf16.mxu0 0
      %920 = vmatpush1.bf16.xpose.msra.mxu0 0
      %921 = vmatprep.subr.bf16.mxu0 0
      %922 = vmatpush1.bf16.xpose.msra.mxu0 0
      %923 = vmatprep.mubr.bf16.mxu0 0
      %924 = vmatmul.mubr.bf16.gmra.mrb[0].mxu0 %v886
      %v925 = vpop.f32.mrb[0].mxu0
      %v926 = vadd.f32 0.0, %v925
      %v927 = vpop.f32.mrb[0].mxu0
      %v928 = vpop.f32.mrb[0].mxu0
      %v929 = vpop.f32.mrb[0].mxu0
      %930 = vdwg.mxu0
      %v932 = vsel %vm838, %v534, 0
      %v935 = vsel %vm838, %v684, 0
      %937 = vmatprep.subr.bf16.mxu0 0
      %938 = vmatpush1.bf16.xpose.msra.mxu0 %v935
      %939 = vmatprep.subr.bf16.mxu0 0
      %940 = vmatpush1.bf16.xpose.msra.mxu0 0
      %941 = vmatprep.subr.bf16.mxu0 0
      %942 = vmatpush1.bf16.xpose.msra.mxu0 0
      %943 = vmatprep.subr.bf16.mxu0 0
      %944 = vmatpush1.bf16.xpose.msra.mxu0 0
      %945 = vmatprep.subr.bf16.mxu0 0
      %946 = vmatpush1.bf16.xpose.msra.mxu0 0
      %947 = vmatprep.subr.bf16.mxu0 0
      %948 = vmatpush1.bf16.xpose.msra.mxu0 0
      %949 = vmatprep.subr.bf16.mxu0 0
      %950 = vmatpush1.bf16.xpose.msra.mxu0 0
      %951 = vmatprep.subr.bf16.mxu0 0
      %952 = vmatpush1.bf16.xpose.msra.mxu0 0
      %953 = vmatprep.subr.bf16.mxu0 0
      %954 = vmatpush1.bf16.xpose.msra.mxu0 0
      %955 = vmatprep.subr.bf16.mxu0 0
      %956 = vmatpush1.bf16.xpose.msra.mxu0 0
      %957 = vmatprep.subr.bf16.mxu0 0
      %958 = vmatpush1.bf16.xpose.msra.mxu0 0
      %959 = vmatprep.subr.bf16.mxu0 0
      %960 = vmatpush1.bf16.xpose.msra.mxu0 0
      %961 = vmatprep.subr.bf16.mxu0 0
      %962 = vmatpush1.bf16.xpose.msra.mxu0 0
      %963 = vmatprep.subr.bf16.mxu0 0
      %964 = vmatpush1.bf16.xpose.msra.mxu0 0
      %965 = vmatprep.subr.bf16.mxu0 0
      %966 = vmatpush1.bf16.xpose.msra.mxu0 0
      %967 = vmatprep.subr.bf16.mxu0 0
      %968 = vmatpush1.bf16.xpose.msra.mxu0 0
      %969 = vmatprep.mubr.bf16.mxu0 0
      %970 = vmatmul.mubr.bf16.gmra.mrb[0].mxu0 %v932
      %v971 = vpop.f32.mrb[0].mxu0
      %v972 = vadd.f32 0.0, %v971
      %v973 = vpop.f32.mrb[0].mxu0
      %v974 = vpop.f32.mrb[0].mxu0
      %v975 = vpop.f32.mrb[0].mxu0
      %976 = vdwg.mxu0
      %v978 = vsel %vm838, %v537, 0
      %v981 = vsel %vm838, %v687, 0
      %983 = vmatprep.subr.bf16.mxu0 0
      %984 = vmatpush1.bf16.xpose.msra.mxu0 %v981
      %985 = vmatprep.subr.bf16.mxu0 0
      %986 = vmatpush1.bf16.xpose.msra.mxu0 0
      %987 = vmatprep.subr.bf16.mxu0 0
      %988 = vmatpush1.bf16.xpose.msra.mxu0 0
      %989 = vmatprep.subr.bf16.mxu0 0
      %990 = vmatpush1.bf16.xpose.msra.mxu0 0
      %991 = vmatprep.subr.bf16.mxu0 0
      %992 = vmatpush1.bf16.xpose.msra.mxu0 0
      %993 = vmatprep.subr.bf16.mxu0 0
      %994 = vmatpush1.bf16.xpose.msra.mxu0 0
      %995 = vmatprep.subr.bf16.mxu0 0
      %996 = vmatpush1.bf16.xpose.msra.mxu0 0
      %997 = vmatprep.subr.bf16.mxu0 0
      %998 = vmatpush1.bf16.xpose.msra.mxu0 0
      %999 = vmatprep.subr.bf16.mxu0 0
      %1000 = vmatpush1.bf16.xpose.msra.mxu0 0
      %1001 = vmatprep.subr.bf16.mxu0 0
      %1002 = vmatpush1.bf16.xpose.msra.mxu0 0
      %1003 = vmatprep.subr.bf16.mxu0 0
      %1004 = vmatpush1.bf16.xpose.msra.mxu0 0
      %1005 = vmatprep.subr.bf16.mxu0 0
      %1006 = vmatpush1.bf16.xpose.msra.mxu0 0
      %1007 = vmatprep.subr.bf16.mxu0 0
      %1008 = vmatpush1.bf16.xpose.msra.mxu0 0
      %1009 = vmatprep.subr.bf16.mxu0 0
      %1010 = vmatpush1.bf16.xpose.msra.mxu0 0
      %1011 = vmatprep.subr.bf16.mxu0 0
      %1012 = vmatpush1.bf16.xpose.msra.mxu0 0
      %1013 = vmatprep.subr.bf16.mxu0 0
      %1014 = vmatpush1.bf16.xpose.msra.mxu0 0
      %1015 = vmatprep.mubr.bf16.mxu0 0
      %1016 = vmatmul.mubr.bf16.gmra.mrb[0].mxu0 %v978
      %v1017 = vpop.f32.mrb[0].mxu0
      %v1018 = vadd.f32 0.0, %v1017
      %v1019 = vpop.f32.mrb[0].mxu0
      %v1020 = vpop.f32.mrb[0].mxu0
      %v1021 = vpop.f32.mrb[0].mxu0
      %1022 = vdwg.mxu0
      %v1023 = vld [vmem:[#allocation2] sm:$0xff]
      %v1024 = vld [vmem:[#allocation2 + $0x8] sm:$0xff]
      %v1025 = vld [vmem:[#allocation2 + $0x10] sm:$0xff]
      %v1026 = vld [vmem:[#allocation2 + $0x18] sm:$0xff]
      %v1027 = vsel %vm838, %v880, -inf
      %1028 = vmax.xlane.f32.xlu0 %v1027
      %v1029 = vpop.xlane.xlu0 %1028
      %v1030 = vsel %vm838, %v926, -inf
      %1031 = vmax.xlane.f32.xlu0 %v1030
      %v1032 = vpop.xlane.xlu0 %1031
      %v1033 = vsel %vm838, %v972, -inf
      %1034 = vmax.xlane.f32.xlu0 %v1033
      %v1035 = vpop.xlane.xlu0 %1034
      %v1036 = vsel %vm838, %v1018, -inf
      %1037 = vmax.xlane.f32.xlu0 %v1036
      %v1038 = vpop.xlane.xlu0 %1037
      %v1039 = vmax.f32 %v1023, %v1029
      %v1040 = vmax.f32 %v1024, %v1032
      %v1041 = vmax.f32 %v1025, %v1035
      %v1042 = vmax.f32 %v1026, %v1038
      %v1043 = vsub.f32 %v1023, %v1039
      %v1044 = vsub.f32 %v1024, %v1040
      %v1045 = vsub.f32 %v1025, %v1041
      %v1046 = vsub.f32 %v1026, %v1042
      %v1047 = vmul.f32 %v1043, 1.442695
      %v1048 = vpow.pop %v1047
      %v1049 = vmul.f32 %v1044, 1.442695
      %v1050 = vpow.pop %v1049
      %v1051 = vmul.f32 %v1045, 1.442695
      %v1052 = vpow.pop %v1051
      %v1053 = vmul.f32 %v1046, 1.442695
      %v1054 = vpow.pop %v1053
      %1056 = vset.pattern.permute.xlu0 0
      %1057 = vperm.xlu0 %1056, %v1039
      %v1058 = vpop.permute.xlu0 %1057
      %1061 = vset.pattern.permute.xlu0 0
      %1062 = vperm.xlu0 %1061, %v1040
      %v1063 = vpop.permute.xlu0 %1062
      %1066 = vset.pattern.permute.xlu0 0
      %1067 = vperm.xlu0 %1066, %v1041
      %v1068 = vpop.permute.xlu0 %1067
      %1071 = vset.pattern.permute.xlu0 0
      %1072 = vperm.xlu0 %1071, %v1042
      %v1073 = vpop.permute.xlu0 %1072
      %v1075 = vsub.f32 %v880, %v1058
      %v1076 = vsub.f32 %v926, %v1063
      %v1077 = vsub.f32 %v972, %v1068
      %v1078 = vsub.f32 %v1018, %v1073
      %v1079 = vmul.f32 %v1075, 1.442695
      %v1080 = vpow.pop %v1079
      %v1081 = vmul.f32 %v1076, 1.442695
      %v1082 = vpow.pop %v1081
      %v1083 = vmul.f32 %v1077, 1.442695
      %v1084 = vpow.pop %v1083
      %v1085 = vmul.f32 %v1078, 1.442695
      %v1086 = vpow.pop %v1085
      %v1087 = vld [vmem:[#allocation3] sm:$0xff]
      %v1088 = vld [vmem:[#allocation3 + $0x8] sm:$0xff]
      %v1089 = vld [vmem:[#allocation3 + $0x10] sm:$0xff]
      %v1090 = vld [vmem:[#allocation3 + $0x18] sm:$0xff]
      %v1091 = vmul.f32 %v1048, %v1087
      %v1092 = vmul.f32 %v1050, %v1088
      %v1093 = vmul.f32 %v1052, %v1089
      %v1094 = vmul.f32 %v1054, %v1090
      %v1095 = vsel %vm838, %v1080, 0.0
      %1096 = vadd.xlane.f32.xlu0 %v1095
      %v1097 = vpop.xlane.xlu0 %1096
      %v1098 = vsel %vm838, %v1082, 0.0
      %1099 = vadd.xlane.f32.xlu0 %v1098
      %v1100 = vpop.xlane.xlu0 %1099
      %v1101 = vsel %vm838, %v1084, 0.0
      %1102 = vadd.xlane.f32.xlu0 %v1101
      %v1103 = vpop.xlane.xlu0 %1102
      %v1104 = vsel %vm838, %v1086, 0.0
      %1105 = vadd.xlane.f32.xlu0 %v1104
      %v1106 = vpop.xlane.xlu0 %1105
      %v1107 = vadd.f32 %v1091, %v1097
      %v1108 = vadd.f32 %v1092, %v1100
      %v1109 = vadd.f32 %v1093, %v1103
      %v1110 = vadd.f32 %v1094, %v1106
      %vm1111 = vcmask 7168
      %1112 = vst.msk [vmem:[#allocation3] sm:$0xff] %vm1111, %v1107
      %1113 = vst.msk [vmem:[#allocation3 + $0x8] sm:$0xff] %vm1111, %v1108
      %1114 = vst.msk [vmem:[#allocation3 + $0x10] sm:$0xff] %vm1111, %v1109
      %1115 = vst.msk [vmem:[#allocation3 + $0x18] sm:$0xff] %vm1111, %v1110
      %v1116 = vld [vmem:[#allocation4] sm:$0xff]
      %v1117 = vld [vmem:[#allocation4 + $0x8] sm:$0xff]
      %v1118 = vld [vmem:[#allocation4 + $0x10] sm:$0xff]
      %v1119 = vld [vmem:[#allocation4 + $0x18] sm:$0xff]
      %1121 = vset.pattern.permute.xlu0 0
      %1122 = vperm.xlu0 %1121, %v1048
      %v1123 = vpop.permute.xlu0 %1122
      %1126 = vset.pattern.permute.xlu0 0
      %1127 = vperm.xlu0 %1126, %v1050
      %v1128 = vpop.permute.xlu0 %1127
      %1131 = vset.pattern.permute.xlu0 0
      %1132 = vperm.xlu0 %1131, %v1052
      %v1133 = vpop.permute.xlu0 %1132
      %1136 = vset.pattern.permute.xlu0 0
      %1137 = vperm.xlu0 %1136, %v1054
      %v1138 = vpop.permute.xlu0 %1137
      %v1140 = vmul.f32 %v1123, %v1116
      %v1141 = vmul.f32 %v1128, %v1117
      %v1142 = vmul.f32 %v1133, %v1118
      %v1143 = vmul.f32 %v1138, %v1119
      %v1144 = vpack.c.bf16 %v1080, %v1080
      %v1145 = vpack.c.bf16 %v1082, %v1082
      %v1146 = vpack.c.bf16 %v1084, %v1084
      %v1147 = vpack.c.bf16 %v1086, %v1086
      %v1149 = vsel %vm838, %v1144, 0
      %vm1151 = vcmask 1043456
      %v1153 = vsel %vm1151, %v828, 0
      %1155 = vmatprep.subr.bf16.mxu0 0
      %1156 = vmatpush1.bf16.msra.mxu0 %v1153
      %1157 = vmatprep.subr.bf16.mxu0 0
      %1158 = vmatpush1.bf16.msra.mxu0 0
      %1159 = vmatprep.subr.bf16.mxu0 0
      %1160 = vmatpush1.bf16.msra.mxu0 0
      %1161 = vmatprep.subr.bf16.mxu0 0
      %1162 = vmatpush1.bf16.msra.mxu0 0
      %1163 = vmatprep.subr.bf16.mxu0 0
      %1164 = vmatpush1.bf16.msra.mxu0 0
      %1165 = vmatprep.subr.bf16.mxu0 0
      %1166 = vmatpush1.bf16.msra.mxu0 0
      %1167 = vmatprep.subr.bf16.mxu0 0
      %1168 = vmatpush1.bf16.msra.mxu0 0
      %1169 = vmatprep.subr.bf16.mxu0 0
      %1170 = vmatpush1.bf16.msra.mxu0 0
      %1171 = vmatprep.subr.bf16.mxu0 0
      %1172 = vmatpush1.bf16.msra.mxu0 0
      %1173 = vmatprep.subr.bf16.mxu0 0
      %1174 = vmatpush1.bf16.msra.mxu0 0
      %1175 = vmatprep.subr.bf16.mxu0 0
      %1176 = vmatpush1.bf16.msra.mxu0 0
      %1177 = vmatprep.subr.bf16.mxu0 0
      %1178 = vmatpush1.bf16.msra.mxu0 0
      %1179 = vmatprep.subr.bf16.mxu0 0
      %1180 = vmatpush1.bf16.msra.mxu0 0
      %1181 = vmatprep.subr.bf16.mxu0 0
      %1182 = vmatpush1.bf16.msra.mxu0 0
      %1183 = vmatprep.subr.bf16.mxu0 0
      %1184 = vmatpush1.bf16.msra.mxu0 0
      %1185 = vmatprep.subr.bf16.mxu0 0
      %1186 = vmatpush1.bf16.msra.mxu0 0
      %1187 = vmatprep.mubr.bf16.mxu0 0
      %1188 = vmatmul.mubr.bf16.gmra.mrb[0].mxu0 %v1149
      %v1189 = vpop.f32.mrb[0].mxu0
      %v1190 = vadd.f32 0.0, %v1189
      %v1191 = vpop.f32.mrb[0].mxu0
      %v1192 = vpop.f32.mrb[0].mxu0
      %v1193 = vpop.f32.mrb[0].mxu0
      %1194 = vdwg.mxu0
      %v1196 = vsel %vm838, %v1145, 0
      %v1199 = vsel %vm1151, %v831, 0
      %1201 = vmatprep.subr.bf16.mxu0 0
      %1202 = vmatpush1.bf16.msra.mxu0 %v1199
      %1203 = vmatprep.subr.bf16.mxu0 0
      %1204 = vmatpush1.bf16.msra.mxu0 0
      %1205 = vmatprep.subr.bf16.mxu0 0
      %1206 = vmatpush1.bf16.msra.mxu0 0
      %1207 = vmatprep.subr.bf16.mxu0 0
      %1208 = vmatpush1.bf16.msra.mxu0 0
      %1209 = vmatprep.subr.bf16.mxu0 0
      %1210 = vmatpush1.bf16.msra.mxu0 0
      %1211 = vmatprep.subr.bf16.mxu0 0
      %1212 = vmatpush1.bf16.msra.mxu0 0
      %1213 = vmatprep.subr.bf16.mxu0 0
      %1214 = vmatpush1.bf16.msra.mxu0 0
      %1215 = vmatprep.subr.bf16.mxu0 0
      %1216 = vmatpush1.bf16.msra.mxu0 0
      %1217 = vmatprep.subr.bf16.mxu0 0
      %1218 = vmatpush1.bf16.msra.mxu0 0
      %1219 = vmatprep.subr.bf16.mxu0 0
      %1220 = vmatpush1.bf16.msra.mxu0 0
      %1221 = vmatprep.subr.bf16.mxu0 0
      %1222 = vmatpush1.bf16.msra.mxu0 0
      %1223 = vmatprep.subr.bf16.mxu0 0
      %1224 = vmatpush1.bf16.msra.mxu0 0
      %1225 = vmatprep.subr.bf16.mxu0 0
      %1226 = vmatpush1.bf16.msra.mxu0 0
      %1227 = vmatprep.subr.bf16.mxu0 0
      %1228 = vmatpush1.bf16.msra.mxu0 0
      %1229 = vmatprep.subr.bf16.mxu0 0
      %1230 = vmatpush1.bf16.msra.mxu0 0
      %1231 = vmatprep.subr.bf16.mxu0 0
      %1232 = vmatpush1.bf16.msra.mxu0 0
      %1233 = vmatprep.mubr.bf16.mxu0 0
      %1234 = vmatmul.mubr.bf16.gmra.mrb[0].mxu0 %v1196
      %v1235 = vpop.f32.mrb[0].mxu0
      %v1236 = vadd.f32 0.0, %v1235
      %v1237 = vpop.f32.mrb[0].mxu0
      %v1238 = vpop.f32.mrb[0].mxu0
      %v1239 = vpop.f32.mrb[0].mxu0
      %1240 = vdwg.mxu0
      %v1242 = vsel %vm838, %v1146, 0
      %v1245 = vsel %vm1151, %v834, 0
      %1247 = vmatprep.subr.bf16.mxu0 0
      %1248 = vmatpush1.bf16.msra.mxu0 %v1245
      %1249 = vmatprep.subr.bf16.mxu0 0
      %1250 = vmatpush1.bf16.msra.mxu0 0
      %1251 = vmatprep.subr.bf16.mxu0 0
      %1252 = vmatpush1.bf16.msra.mxu0 0
      %1253 = vmatprep.subr.bf16.mxu0 0
      %1254 = vmatpush1.bf16.msra.mxu0 0
      %1255 = vmatprep.subr.bf16.mxu0 0
      %1256 = vmatpush1.bf16.msra.mxu0 0
      %1257 = vmatprep.subr.bf16.mxu0 0
      %1258 = vmatpush1.bf16.msra.mxu0 0
      %1259 = vmatprep.subr.bf16.mxu0 0
      %1260 = vmatpush1.bf16.msra.mxu0 0
      %1261 = vmatprep.subr.bf16.mxu0 0
      %1262 = vmatpush1.bf16.msra.mxu0 0
      %1263 = vmatprep.subr.bf16.mxu0 0
      %1264 = vmatpush1.bf16.msra.mxu0 0
      %1265 = vmatprep.subr.bf16.mxu0 0
      %1266 = vmatpush1.bf16.msra.mxu0 0
      %1267 = vmatprep.subr.bf16.mxu0 0
      %1268 = vmatpush1.bf16.msra.mxu0 0
      %1269 = vmatprep.subr.bf16.mxu0 0
      %1270 = vmatpush1.bf16.msra.mxu0 0
      %1271 = vmatprep.subr.bf16.mxu0 0
      %1272 = vmatpush1.bf16.msra.mxu0 0
      %1273 = vmatprep.subr.bf16.mxu0 0
      %1274 = vmatpush1.bf16.msra.mxu0 0
      %1275 = vmatprep.subr.bf16.mxu0 0
      %1276 = vmatpush1.bf16.msra.mxu0 0
      %1277 = vmatprep.subr.bf16.mxu0 0
      %1278 = vmatpush1.bf16.msra.mxu0 0
      %1279 = vmatprep.mubr.bf16.mxu0 0
      %1280 = vmatmul.mubr.bf16.gmra.mrb[0].mxu0 %v1242
      %v1281 = vpop.f32.mrb[0].mxu0
      %v1282 = vadd.f32 0.0, %v1281
      %v1283 = vpop.f32.mrb[0].mxu0
      %v1284 = vpop.f32.mrb[0].mxu0
      %v1285 = vpop.f32.mrb[0].mxu0
      %1286 = vdwg.mxu0
      %v1288 = vsel %vm838, %v1147, 0
      %v1291 = vsel %vm1151, %v837, 0
      %1293 = vmatprep.subr.bf16.mxu0 0
      %1294 = vmatpush1.bf16.msra.mxu0 %v1291
      %1295 = vmatprep.subr.bf16.mxu0 0
      %1296 = vmatpush1.bf16.msra.mxu0 0
      %1297 = vmatprep.subr.bf16.mxu0 0
      %1298 = vmatpush1.bf16.msra.mxu0 0
      %1299 = vmatprep.subr.bf16.mxu0 0
      %1300 = vmatpush1.bf16.msra.mxu0 0
      %1301 = vmatprep.subr.bf16.mxu0 0
      %1302 = vmatpush1.bf16.msra.mxu0 0
      %1303 = vmatprep.subr.bf16.mxu0 0
      %1304 = vmatpush1.bf16.msra.mxu0 0
      %1305 = vmatprep.subr.bf16.mxu0 0
      %1306 = vmatpush1.bf16.msra.mxu0 0
      %1307 = vmatprep.subr.bf16.mxu0 0
      %1308 = vmatpush1.bf16.msra.mxu0 0
      %1309 = vmatprep.subr.bf16.mxu0 0
      %1310 = vmatpush1.bf16.msra.mxu0 0
      %1311 = vmatprep.subr.bf16.mxu0 0
      %1312 = vmatpush1.bf16.msra.mxu0 0
      %1313 = vmatprep.subr.bf16.mxu0 0
      %1314 = vmatpush1.bf16.msra.mxu0 0
      %1315 = vmatprep.subr.bf16.mxu0 0
      %1316 = vmatpush1.bf16.msra.mxu0 0
      %1317 = vmatprep.subr.bf16.mxu0 0
      %1318 = vmatpush1.bf16.msra.mxu0 0
      %1319 = vmatprep.subr.bf16.mxu0 0
      %1320 = vmatpush1.bf16.msra.mxu0 0
      %1321 = vmatprep.subr.bf16.mxu0 0
      %1322 = vmatpush1.bf16.msra.mxu0 0
      %1323 = vmatprep.subr.bf16.mxu0 0
      %1324 = vmatpush1.bf16.msra.mxu0 0
      %1325 = vmatprep.mubr.bf16.mxu0 0
      %1326 = vmatmul.mubr.bf16.gmra.mrb[0].mxu0 %v1288
      %v1327 = vpop.f32.mrb[0].mxu0
      %v1328 = vadd.f32 0.0, %v1327
      %v1329 = vpop.f32.mrb[0].mxu0
      %v1330 = vpop.f32.mrb[0].mxu0
      %v1331 = vpop.f32.mrb[0].mxu0
      %1332 = vdwg.mxu0
      %v1333 = vadd.f32 %v1140, %v1190
      %v1334 = vadd.f32 %v1141, %v1236
      %v1335 = vadd.f32 %v1142, %v1282
      %v1336 = vadd.f32 %v1143, %v1328
      %1337 = vst.msk [vmem:[#allocation4] sm:$0xff] %vm838, %v1333
      %1338 = vst.msk [vmem:[#allocation4 + $0x8] sm:$0xff] %vm838, %v1334
      %1339 = vst.msk [vmem:[#allocation4 + $0x10] sm:$0xff] %vm838, %v1335
      %1340 = vst.msk [vmem:[#allocation4 + $0x18] sm:$0xff] %vm838, %v1336
      %1341 = vst.msk [vmem:[#allocation2] sm:$0xff] %vm1111, %v1039
      %1342 = vst.msk [vmem:[#allocation2 + $0x8] sm:$0xff] %vm1111, %v1040
      %1343 = vst.msk [vmem:[#allocation2 + $0x10] sm:$0xff] %vm1111, %v1041
      %1344 = vst.msk [vmem:[#allocation2 + $0x18] sm:$0xff] %vm1111, %v1042
      // Predicated region
      $region49: #{moeut_lm_forward.11} parent=43 // pred_check
        %p1345 = pneg %p370
      $region50: #{moeut_lm_forward.11} parent=43 // pred_check_branch
        %1347 = sbr.rel (%p1345) target = $region52
      $region51: #{moeut_lm_forward.11} parent=43 // pred_region
        %v1348 = vld [vmem:[#allocation4] sm:$0xff]
        %v1349 = vld [vmem:[#allocation4 + $0x8] sm:$0xff]
        %v1350 = vld [vmem:[#allocation4 + $0x10] sm:$0xff]
        %v1351 = vld [vmem:[#allocation4 + $0x18] sm:$0xff]
        %v1352 = vld [vmem:[#allocation3] sm:$0xff]
        %v1353 = vld [vmem:[#allocation3 + $0x8] sm:$0xff]
        %v1354 = vld [vmem:[#allocation3 + $0x10] sm:$0xff]
        %v1355 = vld [vmem:[#allocation3 + $0x18] sm:$0xff]
        %v1356 = vrcp.pop %v1352
        %v1357 = vrcp.pop %v1353
        %v1358 = vrcp.pop %v1354
        %v1359 = vrcp.pop %v1355
        %1361 = vset.pattern.permute.xlu0 0
        %1362 = vperm.xlu0 %1361, %v1356
        %v1363 = vpop.permute.xlu0 %1362
        %1366 = vset.pattern.permute.xlu0 0
        %1367 = vperm.xlu0 %1366, %v1357
        %v1368 = vpop.permute.xlu0 %1367
        %1371 = vset.pattern.permute.xlu0 0
        %1372 = vperm.xlu0 %1371, %v1358
        %v1373 = vpop.permute.xlu0 %1372
        %1376 = vset.pattern.permute.xlu0 0
        %1377 = vperm.xlu0 %1376, %v1359
        %v1378 = vpop.permute.xlu0 %1377
        %v1380 = vmul.f32 %v1348, %v1363
        %v1381 = vmul.f32 %v1349, %v1368
        %v1382 = vmul.f32 %v1350, %v1373
        %v1383 = vmul.f32 %v1351, %v1378
        %v1384 = vpack.c.bf16 %v1380, %v1380
        %v1386 = vunpack.c.l.s4 1983009808
        %v1387 = vunpack.c.0.s8 %v1386
        %v1388 = vlaneseq
        %v1389 = vshrl.u32 %v1388, 7
        %v1390 = vsub.s32 %v1387, %v1389
        %v1391 = vrot.slane %v1384, %v1390
        %v1392 = vpack.c.bf16 %v1382, %v1382
        %v1394 = vunpack.c.l.s4 1983009808
        %v1395 = vunpack.c.0.s8 %v1394
        %v1396 = vlaneseq
        %v1397 = vshrl.u32 %v1396, 7
        %v1398 = vsub.s32 %v1395, %v1397
        %v1399 = vrot.slane %v1392, %v1398
        %v1400 = vcombine.low %v1391, %v1399
        %v1401 = vcombine.high %v1391, %v1399
        %v1403 = vunpack.c.l.s4 1934713408
        %v1404 = vunpack.c.0.s8 %v1403
        %v1405 = vlaneseq
        %v1406 = vshrl.u32 %v1405, 7
        %v1407 = vsub.s32 %v1404, %v1406
        %v1408 = vrot.slane %v1400, %v1407
        %v1410 = vunpack.c.l.s4 1934713408
        %v1411 = vunpack.c.0.s8 %v1410
        %v1412 = vlaneseq
        %v1413 = vshrl.u32 %v1412, 7
        %v1414 = vsub.s32 %v1411, %v1413
        %v1415 = vrot.slane %v1401, %v1414
        %v1416 = vcombine.high %v1408, 0
        %v1417 = vcombine.high %v1415, 0
        %v1418 = vpack.c.bf16 %v1381, %v1381
        %v1420 = vunpack.c.l.s4 1983009808
        %v1421 = vunpack.c.0.s8 %v1420
        %v1422 = vlaneseq
        %v1423 = vshrl.u32 %v1422, 7
        %v1424 = vsub.s32 %v1421, %v1423
        %v1425 = vrot.slane %v1418, %v1424
        %v1426 = vpack.c.bf16 %v1383, %v1383
        %v1428 = vunpack.c.l.s4 1983009808
        %v1429 = vunpack.c.0.s8 %v1428
        %v1430 = vlaneseq
        %v1431 = vshrl.u32 %v1430, 7
        %v1432 = vsub.s32 %v1429, %v1431
        %v1433 = vrot.slane %v1426, %v1432
        %v1434 = vcombine.low %v1425, %v1433
        %v1435 = vcombine.high %v1425, %v1433
        %v1437 = vunpack.c.l.s4 1934713408
        %v1438 = vunpack.c.0.s8 %v1437
        %v1439 = vlaneseq
        %v1440 = vshrl.u32 %v1439, 7
        %v1441 = vsub.s32 %v1438, %v1440
        %v1442 = vrot.slane %v1434, %v1441
        %v1444 = vunpack.c.l.s4 1934713408
        %v1445 = vunpack.c.0.s8 %v1444
        %v1446 = vlaneseq
        %v1447 = vshrl.u32 %v1446, 7
        %v1448 = vsub.s32 %v1445, %v1447
        %v1449 = vrot.slane %v1435, %v1448
        %v1450 = vcombine.high %v1442, 0
        %v1451 = vcombine.high %v1449, 0
        %v1454 = vpack.i.b16 %v1442, %v1408
        %v1456 = vshrl.u32 %v1408, 16
        %v1457 = vshrl.u32 %v1442, 16
        %v1458 = vpack.i.b16 %v1457, %v1456
        %v1462 = vpack.i.b16 %v1450, %v1416
        %v1464 = vshrl.u32 %v1416, 16
        %v1465 = vshrl.u32 %v1450, 16
        %v1466 = vpack.i.b16 %v1465, %v1464
        %v1470 = vpack.i.b16 %v1449, %v1415
        %v1472 = vshrl.u32 %v1415, 16
        %v1473 = vshrl.u32 %v1449, 16
        %v1474 = vpack.i.b16 %v1473, %v1472
        %v1478 = vpack.i.b16 %v1451, %v1417
        %v1480 = vshrl.u32 %v1417, 16
        %v1481 = vshrl.u32 %v1451, 16
        %v1482 = vpack.i.b16 %v1481, %v1480
        %v1484 = vcombine.low %v1454, %v1470
        %v1486 = vunpack.c.l.s4 1983009808
        %v1487 = vunpack.c.0.s8 %v1486
        %v1488 = vlaneseq
        %v1489 = vshrl.u32 %v1488, 7
        %v1490 = vsub.s32 %v1487, %v1489
        %v1491 = vrot.slane %v1484, %v1490
        %v1492 = vcombine.low %v1462, %v1478
        %v1494 = vunpack.c.l.s4 1983009808
        %v1495 = vunpack.c.0.s8 %v1494
        %v1496 = vlaneseq
        %v1497 = vshrl.u32 %v1496, 7
        %v1498 = vsub.s32 %v1495, %v1497
        %v1499 = vrot.slane %v1492, %v1498
        %v1500 = vcombine.low %v1491, %v1499
        %v1502 = vunpack.c.l.s4 1934713408
        %v1503 = vunpack.c.0.s8 %v1502
        %v1504 = vlaneseq
        %v1505 = vshrl.u32 %v1504, 7
        %v1506 = vsub.s32 %v1503, %v1505
        %v1507 = vrot.slane %v1500, %v1506
        %v1508 = vcombine.high %v1507, 0
        %v1509 = vcombine.low %v1458, %v1474
        %v1511 = vunpack.c.l.s4 1983009808
        %v1512 = vunpack.c.0.s8 %v1511
        %v1513 = vlaneseq
        %v1514 = vshrl.u32 %v1513, 7
        %v1515 = vsub.s32 %v1512, %v1514
        %v1516 = vrot.slane %v1509, %v1515
        %v1517 = vcombine.low %v1466, %v1482
        %v1519 = vunpack.c.l.s4 1983009808
        %v1520 = vunpack.c.0.s8 %v1519
        %v1521 = vlaneseq
        %v1522 = vshrl.u32 %v1521, 7
        %v1523 = vsub.s32 %v1520, %v1522
        %v1524 = vrot.slane %v1517, %v1523
        %v1525 = vcombine.low %v1516, %v1524
        %v1527 = vunpack.c.l.s4 1934713408
        %v1528 = vunpack.c.0.s8 %v1527
        %v1529 = vlaneseq
        %v1530 = vshrl.u32 %v1529, 7
        %v1531 = vsub.s32 %v1528, %v1530
        %v1532 = vrot.slane %v1525, %v1531
        %v1533 = vcombine.high %v1532, 0
        %v1536 = vpack.i.b16 %v1532, %v1507
        %v1537 = vshrl.u32 %v1507, 16
        %v1538 = vshrl.u32 %v1532, 16
        %v1539 = vpack.i.b16 %v1538, %v1537
        %v1542 = vpack.i.b16 %v1533, %v1508
        %v1543 = vshrl.u32 %v1508, 16
        %v1544 = vshrl.u32 %v1533, 16
        %v1545 = vpack.i.b16 %v1544, %v1543
        %1546 = vrot.lane.b32.xlu0 %v1539, 8
        %v1547 = vpop.permute.xlu0 %1546
        %1548 = vrot.lane.b32.xlu0 %v1542, 16
        %v1549 = vpop.permute.xlu0 %1548
        %1550 = vrot.lane.b32.xlu0 %v1545, 24
        %v1551 = vpop.permute.xlu0 %1550
        %v1554 = vsel %vm838, %v1536, %v1547
        %vm1555 = vcmask 130048
        %v1557 = vsel %vm1555, %v1554, %v1549
        %vm1558 = vcmask 195584
        %v1560 = vsel %vm1558, %v1557, %v1551
        %v1561 = vld [vmem:[%s4] sm:$0xf]
        %v1562 = vld [vmem:[%s4 + $0x4] sm:$0xf]
        %v1563 = vld [vmem:[%s4 + $0x8] sm:$0xf]
        %v1564 = vld [vmem:[%s4 + $0xc] sm:$0xf]
        %v1565 = vld [vmem:[%s5] sm:$0x1]
        %v1567 = vlaneseq
        %v1568 = vshrl.u32 %v1567, 7
        %v1569 = vsub.s32 0, %v1568
        %v1570 = vrot.slane %v1565, %v1569
        %v1576 = vunpack.c.l.b16 %v1561
        %v1577 = vunpack.c.l.b16 %v1562
        %v1578 = vunpack.c.l.b16 %v1563
        %v1579 = vunpack.c.l.b16 %v1564
        %v1580 = vpack.c.b16 %v1577, %v1576
        %v1581 = vpack.c.b16 %v1579, %v1578
        %vm1584 = vcmask 261120
        %v1585 = vsel %vm1584, %v1560, 0
        %1587 = vmatprep.subr.bf16.mxu0 0
        %1588 = vmatpush1.bf16.msra.mxu0 %v1580
        %1589 = vmatprep.subr.bf16.mxu0 0
        %1590 = vmatpush1.bf16.msra.mxu0 %v1581
        %1591 = vmatprep.subr.bf16.mxu0 0
        %1592 = vmatpush1.bf16.msra.mxu0 0
        %1593 = vmatprep.subr.bf16.mxu0 0
        %1594 = vmatpush1.bf16.msra.mxu0 0
        %1595 = vmatprep.subr.bf16.mxu0 0
        %1596 = vmatpush1.bf16.msra.mxu0 0
        %1597 = vmatprep.subr.bf16.mxu0 0
        %1598 = vmatpush1.bf16.msra.mxu0 0
        %1599 = vmatprep.subr.bf16.mxu0 0
        %1600 = vmatpush1.bf16.msra.mxu0 0
        %1601 = vmatprep.subr.bf16.mxu0 0
        %1602 = vmatpush1.bf16.msra.mxu0 0
        %1603 = vmatprep.subr.bf16.mxu0 0
        %1604 = vmatpush1.bf16.msra.mxu0 0
        %1605 = vmatprep.subr.bf16.mxu0 0
        %1606 = vmatpush1.bf16.msra.mxu0 0
        %1607 = vmatprep.subr.bf16.mxu0 0
        %1608 = vmatpush1.bf16.msra.mxu0 0
        %1609 = vmatprep.subr.bf16.mxu0 0
        %1610 = vmatpush1.bf16.msra.mxu0 0
        %1611 = vmatprep.subr.bf16.mxu0 0
        %1612 = vmatpush1.bf16.msra.mxu0 0
        %1613 = vmatprep.subr.bf16.mxu0 0
        %1614 = vmatpush1.bf16.msra.mxu0 0
        %1615 = vmatprep.subr.bf16.mxu0 0
        %1616 = vmatpush1.bf16.msra.mxu0 0
        %1617 = vmatprep.subr.bf16.mxu0 0
        %1618 = vmatpush1.bf16.msra.mxu0 0
        %1619 = vmatprep.mubr.bf16.mxu0 0
        %1620 = vmatmul.mubr.bf16.gmra.mrb[0].mxu0 %v1585
        %v1621 = vpop.f32.mrb[0].mxu0
        %v1622 = vadd.f32 %v1570, %v1621
        %v1623 = vpop.f32.mrb[0].mxu0
        %v1624 = vpop.f32.mrb[0].mxu0
        %v1625 = vpop.f32.mrb[0].mxu0
        %1626 = vdwg.mxu0
        %v1627 = vld [vmem:[%s340] sm:$0xff]
        %v1628 = vadd.f32 %v1627, %v1622
        %1629 = vst.msk [vmem:[%s368] sm:$0xff] %vm1584, %v1628
      $region52: #{moeut_lm_forward.11} parent=43 // pred_fallthru
        _
      %p1630 = scmp.lt.s32.totalorder %s22, 1
      %s1631 = scalar_select %p1630, %s22, 1
      %p1632 = scmp.lt.s32.totalorder %s23, 0
      %s1633 = scalar_select %p1632, %s23, 0
      %s1634 = sadd.s32 %s1633, %s1631
      %s1635 = smul.addr %s1634, 8
      %s1636 = scalar_lea.vmem %s6, %s1635
      // Predicated region
      $region53: #{moeut_lm_forward.11} parent=43 // pred_check
        %p1637 = pneg %p210
      $region54: #{moeut_lm_forward.11} parent=43 // pred_check_branch
        %1639 = sbr.rel (%p1637) target = $region56
      $region55: #{moeut_lm_forward.11} parent=43 // pred_region
        _
      $region56: #{moeut_lm_forward.11} parent=43 // pred_fallthru
        _
    $region44: #{moeut_lm_forward.11} parent=5 // pred_fallthru
      _
    %p1640 = scmp.le.s32.totalorder 2, %s12
    // Predicated region
    $region57: #{moeut_lm_forward.11} parent=5 // pred_check
      %p1641 = pneg %p1640
    $region58: #{moeut_lm_forward.11} parent=5 // pred_check_branch
      %1643 = sbr.rel (%p1641) target = $region60
    $region59: #{moeut_lm_forward.11} parent=5 // pred_region
      %s1644 = ssub.s32 %s12, 2
      // Predicated region
      $region61: #{moeut_lm_forward.11} parent=59 // pred_check
        %p1645 = pneg %p216
      $region62: #{moeut_lm_forward.11} parent=59 // pred_check_branch
        %1647 = sbr.rel (%p1645) target = $region64
      $region63: #{moeut_lm_forward.11} parent=59 // pred_region
        %p1648 = scmp.lt.s32.totalorder %s25, 1
        %s1649 = scalar_select %p1648, %s25, 1
        %p1650 = scmp.lt.s32.totalorder %s26, 0
        %s1651 = scalar_select %p1650, %s26, 0
        %s1652 = sadd.s32 %s1651, %s1649
        %s1653 = smul.addr %s1652, 8
        %s1654 = scalar_lea.vmem %s6, %s1653
      $region64: #{moeut_lm_forward.11} parent=59 // pred_fallthru
        _
    $region60: #{moeut_lm_forward.11} parent=5 // pred_fallthru
      _
  $region6: #{moeut_lm_forward.11} parent=0 // loop_footer
    %s16 = sadd.s32 1, %s12
  $region7: #{moeut_lm_forward.11} parent=0 // loop_footer_branch
    %11 = sbr.rel target = $region3
  $region8: #{moeut_lm_forward.11} parent=0 // loop_exit
    _

// kernel: moeut_lm_forward.18
$region0: #{moeut_lm_forward.18}
  #allocation0 [shape = 'u32[]', space=smem, size = 0x4, offset = 0x4, fixed_abs, tag = 'smem constant byte address 0x4 - core index']
  #allocation1 [shape = 'u32[144,128]{1,0:T(1,128)}', space=vmem, size = 0x12000, scoped, tag = 'internal scratch']
  %s0 = inlined_call_operand.vmem [shape: f32[16,32], index: 0, kind: input, shape index: {}]
  %s1 = inlined_call_operand.vmem [shape: f32[1,32], index: 1, kind: input, shape index: {}]
  %s2 = inlined_call_operand.vmem [shape: f32[1,32], index: 2, kind: input, shape index: {}]
  %s3 = inlined_call_operand.vmem [shape: bf16[16,32], index: 3, kind: output, shape index: {}]
  %s4 = sld [smem:[#allocation0]]
  $region22: #{moeut_lm_forward.18} parent=0
    _
  %s6 = ssub.s32 1, %s4
  %s7 = scalar_select 0, %s6, %s4
  // Predicated region
  $region2: #{moeut_lm_forward.18} parent=0 // pred_check
    _
  $region3: #{moeut_lm_forward.18} parent=0 // pred_check_branch
    %9 = sbr.rel (0) target = $region5
  $region4: #{moeut_lm_forward.18} parent=0 // pred_region
    _
  $region5: #{moeut_lm_forward.18} parent=0 // pred_fallthru
    _
  // Predicated region
  $region6: #{moeut_lm_forward.18} parent=0 // pred_check
    _
  $region7: #{moeut_lm_forward.18} parent=0 // pred_check_branch
    %11 = sbr.rel (0) target = $region9
  $region8: #{moeut_lm_forward.18} parent=0 // pred_region
    _
  $region9: #{moeut_lm_forward.18} parent=0 // pred_fallthru
    _
  // Predicated region
  $region10: #{moeut_lm_forward.18} parent=0 // pred_check
    _
  $region11: #{moeut_lm_forward.18} parent=0 // pred_check_branch
    %13 = sbr.rel (0) target = $region13
  $region12: #{moeut_lm_forward.18} parent=0 // pred_region
    _
  $region13: #{moeut_lm_forward.18} parent=0 // pred_fallthru
    _
  %v14 = vld [vmem:[%s0] sm:$0xff]
  %v15 = vld [vmem:[%s0 + $0x8] sm:$0xff]
  %v16 = vld [vmem:[%s1] sm:$0x1]
  %v17 = vld [vmem:[%s2] sm:$0x1]
  %vm18 = vcmask 261120
  %v19 = vsel %vm18, %v14, 0.0
  %20 = vadd.xlane.f32.xlu0 %v19
  %v21 = vpop.xlane.xlu0 %20
  %v22 = vsel %vm18, %v15, 0.0
  %23 = vadd.xlane.f32.xlu0 %v22
  %v24 = vpop.xlane.xlu0 %23
  %v25 = vrcp.pop 32.0
  %v26 = vmul.f32 %v21, %v25
  %v27 = vmul.f32 %v24, %v25
  %v28 = vsub.f32 %v14, %v26
  %v29 = vsub.f32 %v15, %v27
  %v30 = vmul.f32 %v28, %v28
  %v31 = vmul.f32 %v29, %v29
  %v32 = vsel %vm18, %v30, 0.0
  %33 = vadd.xlane.f32.xlu0 %v32
  %v34 = vpop.xlane.xlu0 %33
  %v35 = vsel %vm18, %v31, 0.0
  %36 = vadd.xlane.f32.xlu0 %v35
  %v37 = vpop.xlane.xlu0 %36
  %v38 = vmul.f32 %v34, %v25
  %v39 = vmul.f32 %v37, %v25
  %v40 = vadd.f32 %v38, 1e-05
  %v41 = vadd.f32 %v39, 1e-05
  %v42 = vrsqrt.pop %v40
  %v43 = vrsqrt.pop %v41
  %v44 = vmul.f32 %v28, %v42
  %v45 = vmul.f32 %v29, %v43
  %v47 = vlaneseq
  %v48 = vshrl.u32 %v47, 7
  %v49 = vsub.s32 0, %v48
  %v50 = vrot.slane %v16, %v49
  %v52 = vmul.f32 %v44, %v50
  %v53 = vmul.f32 %v45, %v50
  %v55 = vlaneseq
  %v56 = vshrl.u32 %v55, 7
  %v57 = vsub.s32 0, %v56
  %v58 = vrot.slane %v17, %v57
  %v60 = vadd.f32 %v52, %v58
  %v61 = vadd.f32 %v53, %v58
  %v62 = vpack.c.bf16 %v61, %v60
  %v64 = vunpack.c.l.b16 %v62
  %v65 = vunpack.c.h.b16 %v62
  %v66 = vpack.c.b16 %v64, %v64
  %v67 = vpack.c.b16 %v65, %v65
  %vm70 = vcmask 257024
  %71 = vst.msk [vmem:[%s3] sm:$0xf] %vm70, %v66
  %72 = vst.msk [vmem:[%s3 + $0x4] sm:$0xf] %vm70, %v67
  // Predicated region
  $region14: #{moeut_lm_forward.18} parent=0 // pred_check
    _
  $region15: #{moeut_lm_forward.18} parent=0 // pred_check_branch
    %74 = sbr.rel (0) target = $region17
  $region16: #{moeut_lm_forward.18} parent=0 // pred_region
    _
  $region17: #{moeut_lm_forward.18} parent=0 // pred_fallthru
    _
  // Predicated region
  $region18: #{moeut_lm_forward.18} parent=0 // pred_check
    _
  $region19: #{moeut_lm_forward.18} parent=0 // pred_check_branch
    %76 = sbr.rel (0) target = $region21
  $region20: #{moeut_lm_forward.18} parent=0 // pred_region
    _
  $region21: #{moeut_lm_forward.18} parent=0 // pred_fallthru
    _

// kernel: moeut_lm_forward.19
$region0: #{moeut_lm_forward.19}
  #allocation0 [shape = 'u32[]', space=smem, size = 0x4, offset = 0x4, fixed_abs, tag = 'smem constant byte address 0x4 - core index']
  #allocation1 [shape = 'u32[144,128]{1,0:T(1,128)}', space=vmem, size = 0x12000, scoped, tag = 'internal scratch']
  %s0 = inlined_call_operand.vmem [shape: bf16[16,32], index: 0, kind: input, shape index: {}]
  %s1 = inlined_call_operand.vmem [shape: bf16[32,128], index: 1, kind: input, shape index: {}]
  %s2 = inlined_call_operand.vmem [shape: f32[1,128], index: 2, kind: input, shape index: {}]
  %s3 = inlined_call_operand.vmem [shape: f32[16,128], index: 3, kind: output, shape index: {}]
  %s4 = sld [smem:[#allocation0]]
  $region22: #{moeut_lm_forward.19} parent=0
    _
  %s6 = ssub.s32 1, %s4
  %s7 = scalar_select 0, %s6, %s4
  // Predicated region
  $region2: #{moeut_lm_forward.19} parent=0 // pred_check
    _
  $region3: #{moeut_lm_forward.19} parent=0 // pred_check_branch
    %9 = sbr.rel (0) target = $region5
  $region4: #{moeut_lm_forward.19} parent=0 // pred_region
    _
  $region5: #{moeut_lm_forward.19} parent=0 // pred_fallthru
    _
  // Predicated region
  $region6: #{moeut_lm_forward.19} parent=0 // pred_check
    _
  $region7: #{moeut_lm_forward.19} parent=0 // pred_check_branch
    %11 = sbr.rel (0) target = $region9
  $region8: #{moeut_lm_forward.19} parent=0 // pred_region
    _
  $region9: #{moeut_lm_forward.19} parent=0 // pred_fallthru
    _
  // Predicated region
  $region10: #{moeut_lm_forward.19} parent=0 // pred_check
    _
  $region11: #{moeut_lm_forward.19} parent=0 // pred_check_branch
    %13 = sbr.rel (0) target = $region13
  $region12: #{moeut_lm_forward.19} parent=0 // pred_region
    _
  $region13: #{moeut_lm_forward.19} parent=0 // pred_fallthru
    _
  %v15 = vld [vmem:[%s0] sm:$0xf]
  %v16 = vld [vmem:[%s0 + $0x4] sm:$0xf]
  %v17 = vld [vmem:[%s1] sm:$0xf]
  %v18 = vld [vmem:[%s1 + $0x4] sm:$0xf]
  %v19 = vld [vmem:[%s1 + $0x8] sm:$0xf]
  %v20 = vld [vmem:[%s1 + $0xc] sm:$0xf]
  %v21 = vld [vmem:[%s2] sm:$0x1]
  %v23 = vlaneseq
  %v24 = vshrl.u32 %v23, 7
  %v25 = vsub.s32 0, %v24
  %v26 = vrot.slane %v21, %v25
  %v30 = vunpack.c.l.b16 %v15
  %v31 = vunpack.c.l.b16 %v16
  %v32 = vpack.c.b16 %v31, %v30
  %v37 = vunpack.c.l.b16 %v17
  %v38 = vunpack.c.l.b16 %v18
  %v39 = vunpack.c.l.b16 %v19
  %v40 = vunpack.c.l.b16 %v20
  %v41 = vpack.c.b16 %v38, %v37
  %v42 = vpack.c.b16 %v40, %v39
  %vm45 = vcmask 261120
  %v47 = vsel %vm45, %v32, 0
  %49 = vmatprep.subr.bf16.mxu0 0
  %50 = vmatpush1.bf16.msra.mxu0 %v41
  %51 = vmatprep.subr.bf16.mxu0 0
  %52 = vmatpush1.bf16.msra.mxu0 %v42
  %53 = vmatprep.subr.bf16.mxu0 0
  %54 = vmatpush1.bf16.msra.mxu0 0
  %55 = vmatprep.subr.bf16.mxu0 0
  %56 = vmatpush1.bf16.msra.mxu0 0
  %57 = vmatprep.subr.bf16.mxu0 0
  %58 = vmatpush1.bf16.msra.mxu0 0
  %59 = vmatprep.subr.bf16.mxu0 0
  %60 = vmatpush1.bf16.msra.mxu0 0
  %61 = vmatprep.subr.bf16.mxu0 0
  %62 = vmatpush1.bf16.msra.mxu0 0
  %63 = vmatprep.subr.bf16.mxu0 0
  %64 = vmatpush1.bf16.msra.mxu0 0
  %65 = vmatprep.subr.bf16.mxu0 0
  %66 = vmatpush1.bf16.msra.mxu0 0
  %67 = vmatprep.subr.bf16.mxu0 0
  %68 = vmatpush1.bf16.msra.mxu0 0
  %69 = vmatprep.subr.bf16.mxu0 0
  %70 = vmatpush1.bf16.msra.mxu0 0
  %71 = vmatprep.subr.bf16.mxu0 0
  %72 = vmatpush1.bf16.msra.mxu0 0
  %73 = vmatprep.subr.bf16.mxu0 0
  %74 = vmatpush1.bf16.msra.mxu0 0
  %75 = vmatprep.subr.bf16.mxu0 0
  %76 = vmatpush1.bf16.msra.mxu0 0
  %77 = vmatprep.subr.bf16.mxu0 0
  %78 = vmatpush1.bf16.msra.mxu0 0
  %79 = vmatprep.subr.bf16.mxu0 0
  %80 = vmatpush1.bf16.msra.mxu0 0
  %81 = vmatprep.mubr.bf16.mxu0 0
  %82 = vmatmul.mubr.bf16.gmra.mrb[0].mxu0 %v47
  %v83 = vpop.f32.mrb[0].mxu0
  %v84 = vadd.f32 %v26, %v83
  %v85 = vpop.f32.mrb[0].mxu0
  %v86 = vpop.f32.mrb[0].mxu0
  %v87 = vadd.f32 %v26, %v86
  %v88 = vpop.f32.mrb[0].mxu0
  %89 = vdwg.mxu0
  %90 = vst [vmem:[%s3] sm:$0xff] %v84
  %91 = vst [vmem:[%s3 + $0x8] sm:$0xff] %v87
  // Predicated region
  $region14: #{moeut_lm_forward.19} parent=0 // pred_check
    _
  $region15: #{moeut_lm_forward.19} parent=0 // pred_check_branch
    %93 = sbr.rel (0) target = $region17
  $region16: #{moeut_lm_forward.19} parent=0 // pred_region
    _
  $region17: #{moeut_lm_forward.19} parent=0 // pred_fallthru
    _
  // Predicated region
  $region18: #{moeut_lm_forward.19} parent=0 // pred_check
    _
  $region19: #{moeut_lm_forward.19} parent=0 // pred_check_branch
    %95 = sbr.rel (0) target = $region21
  $region20: #{moeut_lm_forward.19} parent=0 // pred_region
    _
  $region21: #{moeut_lm_forward.19} parent=0 // pred_fallthru
    _

// kernel: moeut_lm_forward.13
$region0: #{moeut_lm_forward.13}
  #allocation0 [shape = 'u32[]', space=smem, size = 0x4, offset = 0x4, fixed_abs, tag = 'smem constant byte address 0x4 - core index']
  #allocation1 [shape = 'u32[144,128]{1,0:T(1,128)}', space=vmem, size = 0x12000, scoped, tag = 'internal scratch']
  #allocation2 [shape = 'bf16[8,32]{1,0:T(8,128)(2,1)}', space=vmem, size = 0x800, scoped, tag = 'scratch operand']
  #allocation3 [shape = 'f32[8,32]{1,0:T(8,128)}', space=vmem, size = 0x1000, scoped, tag = 'scratch operand']
  #allocation4 [shape = 's32[1]{0}', space=sflag, size = 0x4, scoped, tag = 'scoped memory for moeut_lm_forward.13']
  #allocation5 [shape = 'u8[1024]{0}', space=smem, size = 0x400, scoped, tag = 'prefetched SMEM operand 0']
  #allocation6 [shape = 'u8[1024]{0}', space=smem, size = 0x400, scoped, tag = 'prefetched SMEM operand 1']
  %s0 = inlined_call_operand.vmem [shape: s32[2,4], index: 0, kind: input, shape index: {}]
  %s1 = inlined_call_operand.vmem [shape: s32[2,4], index: 1, kind: input, shape index: {}]
  %s2 = inlined_call_operand.vmem [shape: f32[2,8,32], index: 2, kind: input, shape index: {}]
  %s3 = inlined_call_operand.vmem [shape: f32[1,32], index: 3, kind: input, shape index: {}]
  %s4 = inlined_call_operand.vmem [shape: f32[1,32], index: 4, kind: input, shape index: {}]
  %s5 = inlined_call_operand.vmem [shape: bf16[2,8,4], index: 5, kind: input, shape index: {}]
  %s6 = inlined_call_operand.vmem [shape: bf16[4,32,16], index: 6, kind: input, shape index: {}]
  %s7 = inlined_call_operand.vmem [shape: f32[4,1,16], index: 7, kind: input, shape index: {}]
  %s8 = inlined_call_operand.vmem [shape: bf16[4,16,32], index: 8, kind: input, shape index: {}]
  %s9 = inlined_call_operand.vmem [shape: f32[4,1,32], index: 9, kind: input, shape index: {}]
  %s10 = inlined_call_operand.vmem [shape: f32[2,8,32], index: 10, kind: output, shape index: {}]
  %s11 = sld [smem:[#allocation0]]
  $region77: #{moeut_lm_forward.13} parent=0
    _
  %s13 = ssub.s32 1, %s11
  %s14 = scalar_select 0, %s13, %s11
  %s15 = sshll.u32 %s0, 4
  %s16 = int_to_ptr.vmem [resolvable:$true] %s15
  %18 = dma.vmem_to_smem %s16, 32, [#allocation5], [#allocation4]
  %s19 = sshll.u32 %s1, 4
  %s20 = int_to_ptr.vmem [resolvable:$true] %s19
  %22 = dma.vmem_to_smem %s20, 32, [#allocation6], [#allocation4]
  %23 = dma.done [#allocation4], 64
  %24 = sfence
  loop: start=0, step=1, limit=10
  $region2: #{moeut_lm_forward.13} parent=0 // loop_pre_header
    _
  $region3: #{moeut_lm_forward.13} parent=0 // loop_header
    %s26 = sphi 0, %s30
    %p27 = scmp.ge.s32.totalorder %s26, 10
    %s33 = sphi 0, %s52
    %s34 = sphi 0, %s48
    %s35 = sphi 0, %s44
    %s36 = sphi 0, %s33
    %s37 = sphi 0, %s34
    %s38 = sphi 0, %s35
    %s39 = sphi 0, %s36
    %s40 = sphi 0, %s37
    %s41 = sphi 0, %s38
    %s57 = sphi 0, %s59
    %s60 = sphi 0, %s57
    %s61 = sphi 0, %s60
    %s77 = sphi 0, %s61
    %s81 = sphi 0, %s81
    %s83 = sphi 0, %s81
    %s84 = sphi 0, %s83
    %s98 = sphi 0, %s84
    %s102 = sphi 0, %s102
    %s104 = sphi 0, %s102
    %s105 = sphi 0, %s104
    %s119 = sphi 0, %s105
    %s127 = sphi 0, %s129
    %s130 = sphi 0, %s127
    %s131 = sphi 0, %s130
    %s147 = sphi 0, %s131
    %s171 = sphi 0, %s173
    %s174 = sphi 0, %s171
    %s175 = sphi 0, %s174
    %s191 = sphi 0, %s175
    %s215 = sphi 0, %s217
    %s218 = sphi 0, %s215
    %s219 = sphi 0, %s218
    %s235 = sphi 0, %s219
    %s259 = sphi 0, %s261
    %s262 = sphi 0, %s259
    %s263 = sphi 0, %s262
    %s279 = sphi 0, %s263
    %s303 = sphi 0, %s305
    %s306 = sphi 0, %s303
    %s307 = sphi 0, %s306
    %s323 = sphi 0, %s307
    %s331 = sphi 0, %s333
    %s334 = sphi 0, %s331
    %s335 = sphi 0, %s334
    %s351 = sphi 0, %s335
  $region4: #{moeut_lm_forward.13} parent=0 // loop_header_branch
    %29 = sbr.rel (%p27) target = $region8
  $region5: #{moeut_lm_forward.13} parent=0 // loop_body
    %s31 = ssub.s32 %s26, 1
    %s32 = ssub.s32 %s26, 2
    %s42 = sadd.s32 1, %s35
    %p43 = scmp.ge.s32.totalorder %s42, 4
    %s44 = scalar_select %p43, 0, %s42
    %s45 = sadd.s32 1, %s34
    %s46 = scalar_select %p43, %s45, %s34
    %p47 = scmp.ge.s32.totalorder %s46, 1
    %s48 = scalar_select %p47, 0, %s46
    %s49 = sadd.s32 1, %s33
    %s50 = scalar_select %p47, %s49, %s33
    %p51 = scmp.ge.s32.totalorder %s50, 2
    %s52 = scalar_select %p51, 0, %s50
    %s53 = ssub.s32 %s33, %s52
    %s54 = ssub.s32 %s34, %s48
    %s55 = sor.u32 %s53, %s54
    %p56 = scmp.eq.s32.totalorder %s55, 0
    %s58 = sadd.s32 %s57, 1
    %s59 = scalar_select %p56, %s57, %s58
    %p62 = pneg %p56
    %p63 = scmp.eq.s32.totalorder %s26, 7
    %p64 = por %p62, %p63
    %p65 = scmp.ne.s32.totalorder %s57, %s60
    %p66 = scmp.eq.s32.totalorder %s26, 0
    %p67 = por %p65, %p66
    %p68 = scmp.ne.s32.totalorder %s57, %s60
    %p69 = scmp.eq.s32.totalorder %s31, 7
    %p70 = por %p68, %p69
    %p71 = scmp.ne.s32.totalorder %s60, %s61
    %p72 = scmp.eq.s32.totalorder %s31, 0
    %p73 = por %p71, %p72
    %p74 = scmp.ne.s32.totalorder %s60, %s61
    %p75 = scmp.eq.s32.totalorder %s32, 7
    %p76 = por %p74, %p75
    %p78 = scmp.ne.s32.totalorder %s61, %s77
    %p79 = scmp.eq.s32.totalorder %s32, 0
    %p80 = por %p78, %p79
    %s82 = sadd.s32 %s81, 1
    %p85 = scmp.eq.s32.totalorder %s26, 7
    %p86 = scmp.ne.s32.totalorder %s81, %s83
    %p87 = scmp.eq.s32.totalorder %s26, 0
    %p88 = por %p86, %p87
    %p89 = scmp.ne.s32.totalorder %s81, %s83
    %p90 = scmp.eq.s32.totalorder %s31, 7
    %p91 = por %p89, %p90
    %p92 = scmp.ne.s32.totalorder %s83, %s84
    %p93 = scmp.eq.s32.totalorder %s31, 0
    %p94 = por %p92, %p93
    %p95 = scmp.ne.s32.totalorder %s83, %s84
    %p96 = scmp.eq.s32.totalorder %s32, 7
    %p97 = por %p95, %p96
    %p99 = scmp.ne.s32.totalorder %s84, %s98
    %p100 = scmp.eq.s32.totalorder %s32, 0
    %p101 = por %p99, %p100
    %s103 = sadd.s32 %s102, 1
    %p106 = scmp.eq.s32.totalorder %s26, 7
    %p107 = scmp.ne.s32.totalorder %s102, %s104
    %p108 = scmp.eq.s32.totalorder %s26, 0
    %p109 = por %p107, %p108
    %p110 = scmp.ne.s32.totalorder %s102, %s104
    %p111 = scmp.eq.s32.totalorder %s31, 7
    %p112 = por %p110, %p111
    %p113 = scmp.ne.s32.totalorder %s104, %s105
    %p114 = scmp.eq.s32.totalorder %s31, 0
    %p115 = por %p113, %p114
    %p116 = scmp.ne.s32.totalorder %s104, %s105
    %p117 = scmp.eq.s32.totalorder %s32, 7
    %p118 = por %p116, %p117
    %p120 = scmp.ne.s32.totalorder %s105, %s119
    %p121 = scmp.eq.s32.totalorder %s32, 0
    %p122 = por %p120, %p121
    %s123 = ssub.s32 %s33, %s52
    %s124 = ssub.s32 %s34, %s48
    %s125 = sor.u32 %s123, %s124
    %p126 = scmp.eq.s32.totalorder %s125, 0
    %s128 = sadd.s32 %s127, 1
    %s129 = scalar_select %p126, %s127, %s128
    %p132 = pneg %p126
    %p133 = scmp.eq.s32.totalorder %s26, 7
    %p134 = por %p132, %p133
    %p135 = scmp.ne.s32.totalorder %s127, %s130
    %p136 = scmp.eq.s32.totalorder %s26, 0
    %p137 = por %p135, %p136
    %p138 = scmp.ne.s32.totalorder %s127, %s130
    %p139 = scmp.eq.s32.totalorder %s31, 7
    %p140 = por %p138, %p139
    %p141 = scmp.ne.s32.totalorder %s130, %s131
    %p142 = scmp.eq.s32.totalorder %s31, 0
    %p143 = por %p141, %p142
    %p144 = scmp.ne.s32.totalorder %s130, %s131
    %p145 = scmp.eq.s32.totalorder %s32, 7
    %p146 = por %p144, %p145
    %p148 = scmp.ne.s32.totalorder %s131, %s147
    %p149 = scmp.eq.s32.totalorder %s32, 0
    %p150 = por %p148, %p149
    %s151 = sadd.s32 %s33, %s34
    %s152 = sshra.s32 %s35, 7
    %s153 = sand.u32 %s35, 127
    %s154 = sadd.s32 %s152, %s151
    %s155 = smul.u32 %s154, 128
    %s156 = sshra.s32 %s35, 7
    %s157 = sand.u32 %s35, 127
    %s158 = sadd.s32 %s155, %s157
    %s159 = sld [smem:[#allocation6 + %s158]]
    %s160 = sadd.s32 %s52, %s48
    %s161 = sshra.s32 %s44, 7
    %s162 = sand.u32 %s44, 127
    %s163 = sadd.s32 %s161, %s160
    %s164 = smul.u32 %s163, 128
    %s165 = sshra.s32 %s44, 7
    %s166 = sand.u32 %s44, 127
    %s167 = sadd.s32 %s164, %s166
    %s168 = sld [smem:[#allocation6 + %s167]]
    %s169 = ssub.s32 %s159, %s168
    %p170 = scmp.eq.s32.totalorder %s169, 0
    %s172 = sadd.s32 %s171, 1
    %s173 = scalar_select %p170, %s171, %s172
    %p176 = pneg %p170
    %p177 = scmp.eq.s32.totalorder %s26, 7
    %p178 = por %p176, %p177
    %p179 = scmp.ne.s32.totalorder %s171, %s174
    %p180 = scmp.eq.s32.totalorder %s26, 0
    %p181 = por %p179, %p180
    %p182 = scmp.ne.s32.totalorder %s171, %s174
    %p183 = scmp.eq.s32.totalorder %s31, 7
    %p184 = por %p182, %p183
    %p185 = scmp.ne.s32.totalorder %s174, %s175
    %p186 = scmp.eq.s32.totalorder %s31, 0
    %p187 = por %p185, %p186
    %p188 = scmp.ne.s32.totalorder %s174, %s175
    %p189 = scmp.eq.s32.totalorder %s32, 7
    %p190 = por %p188, %p189
    %p192 = scmp.ne.s32.totalorder %s175, %s191
    %p193 = scmp.eq.s32.totalorder %s32, 0
    %p194 = por %p192, %p193
    %s195 = sadd.s32 %s33, %s34
    %s196 = sshra.s32 %s35, 7
    %s197 = sand.u32 %s35, 127
    %s198 = sadd.s32 %s196, %s195
    %s199 = smul.u32 %s198, 128
    %s200 = sshra.s32 %s35, 7
    %s201 = sand.u32 %s35, 127
    %s202 = sadd.s32 %s199, %s201
    %s203 = sld [smem:[#allocation6 + %s202]]
    %s204 = sadd.s32 %s52, %s48
    %s205 = sshra.s32 %s44, 7
    %s206 = sand.u32 %s44, 127
    %s207 = sadd.s32 %s205, %s204
    %s208 = smul.u32 %s207, 128
    %s209 = sshra.s32 %s44, 7
    %s210 = sand.u32 %s44, 127
    %s211 = sadd.s32 %s208, %s210
    %s212 = sld [smem:[#allocation6 + %s211]]
    %s213 = ssub.s32 %s203, %s212
    %p214 = scmp.eq.s32.totalorder %s213, 0
    %s216 = sadd.s32 %s215, 1
    %s217 = scalar_select %p214, %s215, %s216
    %p220 = pneg %p214
    %p221 = scmp.eq.s32.totalorder %s26, 7
    %p222 = por %p220, %p221
    %p223 = scmp.ne.s32.totalorder %s215, %s218
    %p224 = scmp.eq.s32.totalorder %s26, 0
    %p225 = por %p223, %p224
    %p226 = scmp.ne.s32.totalorder %s215, %s218
    %p227 = scmp.eq.s32.totalorder %s31, 7
    %p228 = por %p226, %p227
    %p229 = scmp.ne.s32.totalorder %s218, %s219
    %p230 = scmp.eq.s32.totalorder %s31, 0
    %p231 = por %p229, %p230
    %p232 = scmp.ne.s32.totalorder %s218, %s219
    %p233 = scmp.eq.s32.totalorder %s32, 7
    %p234 = por %p232, %p233
    %p236 = scmp.ne.s32.totalorder %s219, %s235
    %p237 = scmp.eq.s32.totalorder %s32, 0
    %p238 = por %p236, %p237
    %s239 = sadd.s32 %s33, %s34
    %s240 = sshra.s32 %s35, 7
    %s241 = sand.u32 %s35, 127
    %s242 = sadd.s32 %s240, %s239
    %s243 = smul.u32 %s242, 128
    %s244 = sshra.s32 %s35, 7
    %s245 = sand.u32 %s35, 127
    %s246 = sadd.s32 %s243, %s245
    %s247 = sld [smem:[#allocation6 + %s246]]
    %s248 = sadd.s32 %s52, %s48
    %s249 = sshra.s32 %s44, 7
    %s250 = sand.u32 %s44, 127
    %s251 = sadd.s32 %s249, %s248
    %s252 = smul.u32 %s251, 128
    %s253 = sshra.s32 %s44, 7
    %s254 = sand.u32 %s44, 127
    %s255 = sadd.s32 %s252, %s254
    %s256 = sld [smem:[#allocation6 + %s255]]
    %s257 = ssub.s32 %s247, %s256
    %p258 = scmp.eq.s32.totalorder %s257, 0
    %s260 = sadd.s32 %s259, 1
    %s261 = scalar_select %p258, %s259, %s260
    %p264 = pneg %p258
    %p265 = scmp.eq.s32.totalorder %s26, 7
    %p266 = por %p264, %p265
    %p267 = scmp.ne.s32.totalorder %s259, %s262
    %p268 = scmp.eq.s32.totalorder %s26, 0
    %p269 = por %p267, %p268
    %p270 = scmp.ne.s32.totalorder %s259, %s262
    %p271 = scmp.eq.s32.totalorder %s31, 7
    %p272 = por %p270, %p271
    %p273 = scmp.ne.s32.totalorder %s262, %s263
    %p274 = scmp.eq.s32.totalorder %s31, 0
    %p275 = por %p273, %p274
    %p276 = scmp.ne.s32.totalorder %s262, %s263
    %p277 = scmp.eq.s32.totalorder %s32, 7
    %p278 = por %p276, %p277
    %p280 = scmp.ne.s32.totalorder %s263, %s279
    %p281 = scmp.eq.s32.totalorder %s32, 0
    %p282 = por %p280, %p281
    %s283 = sadd.s32 %s33, %s34
    %s284 = sshra.s32 %s35, 7
    %s285 = sand.u32 %s35, 127
    %s286 = sadd.s32 %s284, %s283
    %s287 = smul.u32 %s286, 128
    %s288 = sshra.s32 %s35, 7
    %s289 = sand.u32 %s35, 127
    %s290 = sadd.s32 %s287, %s289
    %s291 = sld [smem:[#allocation6 + %s290]]
    %s292 = sadd.s32 %s52, %s48
    %s293 = sshra.s32 %s44, 7
    %s294 = sand.u32 %s44, 127
    %s295 = sadd.s32 %s293, %s292
    %s296 = smul.u32 %s295, 128
    %s297 = sshra.s32 %s44, 7
    %s298 = sand.u32 %s44, 127
    %s299 = sadd.s32 %s296, %s298
    %s300 = sld [smem:[#allocation6 + %s299]]
    %s301 = ssub.s32 %s291, %s300
    %p302 = scmp.eq.s32.totalorder %s301, 0
    %s304 = sadd.s32 %s303, 1
    %s305 = scalar_select %p302, %s303, %s304
    %p308 = pneg %p302
    %p309 = scmp.eq.s32.totalorder %s26, 7
    %p310 = por %p308, %p309
    %p311 = scmp.ne.s32.totalorder %s303, %s306
    %p312 = scmp.eq.s32.totalorder %s26, 0
    %p313 = por %p311, %p312
    %p314 = scmp.ne.s32.totalorder %s303, %s306
    %p315 = scmp.eq.s32.totalorder %s31, 7
    %p316 = por %p314, %p315
    %p317 = scmp.ne.s32.totalorder %s306, %s307
    %p318 = scmp.eq.s32.totalorder %s31, 0
    %p319 = por %p317, %p318
    %p320 = scmp.ne.s32.totalorder %s306, %s307
    %p321 = scmp.eq.s32.totalorder %s32, 7
    %p322 = por %p320, %p321
    %p324 = scmp.ne.s32.totalorder %s307, %s323
    %p325 = scmp.eq.s32.totalorder %s32, 0
    %p326 = por %p324, %p325
    %s327 = ssub.s32 %s33, %s52
    %s328 = ssub.s32 %s34, %s48
    %s329 = sor.u32 %s327, %s328
    %p330 = scmp.eq.s32.totalorder %s329, 0
    %s332 = sadd.s32 %s331, 1
    %s333 = scalar_select %p330, %s331, %s332
    %p336 = pneg %p330
    %p337 = scmp.eq.s32.totalorder %s26, 7
    %p338 = por %p336, %p337
    %p339 = scmp.ne.s32.totalorder %s331, %s334
    %p340 = scmp.eq.s32.totalorder %s26, 0
    %p341 = por %p339, %p340
    %p342 = scmp.ne.s32.totalorder %s331, %s334
    %p343 = scmp.eq.s32.totalorder %s31, 7
    %p344 = por %p342, %p343
    %p345 = scmp.ne.s32.totalorder %s334, %s335
    %p346 = scmp.eq.s32.totalorder %s31, 0
    %p347 = por %p345, %p346
    %p348 = scmp.ne.s32.totalorder %s334, %s335
    %p349 = scmp.eq.s32.totalorder %s32, 7
    %p350 = por %p348, %p349
    %p352 = scmp.ne.s32.totalorder %s335, %s351
    %p353 = scmp.eq.s32.totalorder %s32, 0
    %p354 = por %p352, %p353
    %p355 = scmp.le.s32.totalorder 1, %s26
    %p356 = scmp.lt.s32.totalorder %s26, 9
    %p357 = pnand %p355, %p356
    %p358 = pneg %p357
    // Predicated region
    $region9: #{moeut_lm_forward.13} parent=5 // pred_check
      _
    $region10: #{moeut_lm_forward.13} parent=5 // pred_check_branch
      %360 = sbr.rel (%p357) target = $region12
    $region11: #{moeut_lm_forward.13} parent=5 // pred_region
      %s361 = ssub.s32 %s26, 1
      // Predicated region
      $region13: #{moeut_lm_forward.13} parent=11 // pred_check
        %p362 = pneg %p94
      $region14: #{moeut_lm_forward.13} parent=11 // pred_check_branch
        %364 = sbr.rel (%p362) target = $region16
      $region15: #{moeut_lm_forward.13} parent=11 // pred_region
        _
      $region16: #{moeut_lm_forward.13} parent=11 // pred_fallthru
        _
      // Predicated region
      $region17: #{moeut_lm_forward.13} parent=11 // pred_check
        %p365 = pneg %p115
      $region18: #{moeut_lm_forward.13} parent=11 // pred_check_branch
        %367 = sbr.rel (%p365) target = $region20
      $region19: #{moeut_lm_forward.13} parent=11 // pred_region
        _
      $region20: #{moeut_lm_forward.13} parent=11 // pred_fallthru
        _
    $region12: #{moeut_lm_forward.13} parent=5 // pred_fallthru
      _
    %p368 = scmp.lt.s32.totalorder %s26, 8
    // Predicated region
    $region21: #{moeut_lm_forward.13} parent=5 // pred_check
      %p369 = pneg %p368
    $region22: #{moeut_lm_forward.13} parent=5 // pred_check_branch
      %371 = sbr.rel (%p369) target = $region24
    $region23: #{moeut_lm_forward.13} parent=5 // pred_region
      // Predicated region
      $region25: #{moeut_lm_forward.13} parent=23 // pred_check
        %p372 = pneg %p67
      $region26: #{moeut_lm_forward.13} parent=23 // pred_check_branch
        %374 = sbr.rel (%p372) target = $region28
      $region27: #{moeut_lm_forward.13} parent=23 // pred_region
        %p375 = scmp.lt.s32.totalorder %s33, 1
        %s376 = scalar_select %p375, %s33, 1
        %p377 = scmp.lt.s32.totalorder %s34, 0
        %s378 = scalar_select %p377, %s34, 0
        %s379 = sadd.s32 %s378, %s376
        %s380 = smul.addr %s379, 8
        %s381 = scalar_lea.vmem %s2, %s380
      $region28: #{moeut_lm_forward.13} parent=23 // pred_fallthru
        _
      // Predicated region
      $region29: #{moeut_lm_forward.13} parent=23 // pred_check
        %p382 = pneg %p137
      $region30: #{moeut_lm_forward.13} parent=23 // pred_check_branch
        %384 = sbr.rel (%p382) target = $region32
      $region31: #{moeut_lm_forward.13} parent=23 // pred_region
        %p385 = scmp.lt.s32.totalorder %s33, 1
        %s386 = scalar_select %p385, %s33, 1
        %p387 = scmp.lt.s32.totalorder %s34, 0
        %s388 = scalar_select %p387, %s34, 0
        %s389 = sadd.s32 %s388, %s386
        %s390 = smul.addr %s389, 4
        %s391 = scalar_lea.vmem %s5, %s390
      $region32: #{moeut_lm_forward.13} parent=23 // pred_fallthru
        _
      // Predicated region
      $region33: #{moeut_lm_forward.13} parent=23 // pred_check
        %p392 = pneg %p181
      $region34: #{moeut_lm_forward.13} parent=23 // pred_check_branch
        %394 = sbr.rel (%p392) target = $region36
      $region35: #{moeut_lm_forward.13} parent=23 // pred_region
        %s395 = sadd.s32 %s33, %s34
        %s396 = sshra.s32 %s35, 7
        %s397 = sand.u32 %s35, 127
        %s398 = sadd.s32 %s396, %s395
        %s399 = smul.u32 %s398, 128
        %s400 = sshra.s32 %s35, 7
        %s401 = sand.u32 %s35, 127
        %s402 = sadd.s32 %s399, %s401
        %s403 = sld [smem:[#allocation6 + %s402]]
        %p404 = scmp.lt.s32.totalorder %s403, 3
        %s405 = scalar_select %p404, %s403, 3
        %s406 = smul.addr %s405, 4
        %s407 = smul.addr %s406, 4
        %s408 = scalar_lea.vmem %s6, %s407
        %s409 = sadd.s32 %s33, %s34
        %s410 = sshra.s32 %s35, 7
        %s411 = sand.u32 %s35, 127
        %s412 = sadd.s32 %s410, %s409
        %s413 = smul.u32 %s412, 128
        %s414 = sshra.s32 %s35, 7
        %s415 = sand.u32 %s35, 127
        %s416 = sadd.s32 %s413, %s415
        %s417 = sld [smem:[#allocation6 + %s416]]
      $region36: #{moeut_lm_forward.13} parent=23 // pred_fallthru
        _
      // Predicated region
      $region37: #{moeut_lm_forward.13} parent=23 // pred_check
        %p418 = pneg %p225
      $region38: #{moeut_lm_forward.13} parent=23 // pred_check_branch
        %420 = sbr.rel (%p418) target = $region40
      $region39: #{moeut_lm_forward.13} parent=23 // pred_region
        %s421 = sadd.s32 %s33, %s34
        %s422 = sshra.s32 %s35, 7
        %s423 = sand.u32 %s35, 127
        %s424 = sadd.s32 %s422, %s421
        %s425 = smul.u32 %s424, 128
        %s426 = sshra.s32 %s35, 7
        %s427 = sand.u32 %s35, 127
        %s428 = sadd.s32 %s425, %s427
        %s429 = sld [smem:[#allocation6 + %s428]]
        %p430 = scmp.lt.s32.totalorder %s429, 3
        %s431 = scalar_select %p430, %s429, 3
        %s432 = scalar_lea.vmem %s7, %s431
        %s433 = sadd.s32 %s33, %s34
        %s434 = sshra.s32 %s35, 7
        %s435 = sand.u32 %s35, 127
        %s436 = sadd.s32 %s434, %s433
        %s437 = smul.u32 %s436, 128
        %s438 = sshra.s32 %s35, 7
        %s439 = sand.u32 %s35, 127
        %s440 = sadd.s32 %s437, %s439
        %s441 = sld [smem:[#allocation6 + %s440]]
      $region40: #{moeut_lm_forward.13} parent=23 // pred_fallthru
        _
      // Predicated region
      $region41: #{moeut_lm_forward.13} parent=23 // pred_check
        %p442 = pneg %p269
      $region42: #{moeut_lm_forward.13} parent=23 // pred_check_branch
        %444 = sbr.rel (%p442) target = $region44
      $region43: #{moeut_lm_forward.13} parent=23 // pred_region
        %s445 = sadd.s32 %s33, %s34
        %s446 = sshra.s32 %s35, 7
        %s447 = sand.u32 %s35, 127
        %s448 = sadd.s32 %s446, %s445
        %s449 = smul.u32 %s448, 128
        %s450 = sshra.s32 %s35, 7
        %s451 = sand.u32 %s35, 127
        %s452 = sadd.s32 %s449, %s451
        %s453 = sld [smem:[#allocation6 + %s452]]
        %p454 = scmp.lt.s32.totalorder %s453, 3
        %s455 = scalar_select %p454, %s453, 3
        %s456 = smul.addr %s455, 2
        %s457 = smul.addr %s456, 4
        %s458 = scalar_lea.vmem %s8, %s457
        %s459 = sadd.s32 %s33, %s34
        %s460 = sshra.s32 %s35, 7
        %s461 = sand.u32 %s35, 127
        %s462 = sadd.s32 %s460, %s459
        %s463 = smul.u32 %s462, 128
        %s464 = sshra.s32 %s35, 7
        %s465 = sand.u32 %s35, 127
        %s466 = sadd.s32 %s463, %s465
        %s467 = sld [smem:[#allocation6 + %s466]]
      $region44: #{moeut_lm_forward.13} parent=23 // pred_fallthru
        _
      // Predicated region
      $region45: #{moeut_lm_forward.13} parent=23 // pred_check
        %p468 = pneg %p313
      $region46: #{moeut_lm_forward.13} parent=23 // pred_check_branch
        %470 = sbr.rel (%p468) target = $region48
      $region47: #{moeut_lm_forward.13} parent=23 // pred_region
        %s471 = sadd.s32 %s33, %s34
        %s472 = sshra.s32 %s35, 7
        %s473 = sand.u32 %s35, 127
        %s474 = sadd.s32 %s472, %s471
        %s475 = smul.u32 %s474, 128
        %s476 = sshra.s32 %s35, 7
        %s477 = sand.u32 %s35, 127
        %s478 = sadd.s32 %s475, %s477
        %s479 = sld [smem:[#allocation6 + %s478]]
        %p480 = scmp.lt.s32.totalorder %s479, 3
        %s481 = scalar_select %p480, %s479, 3
        %s482 = scalar_lea.vmem %s9, %s481
        %s483 = sadd.s32 %s33, %s34
        %s484 = sshra.s32 %s35, 7
        %s485 = sand.u32 %s35, 127
        %s486 = sadd.s32 %s484, %s483
        %s487 = smul.u32 %s486, 128
        %s488 = sshra.s32 %s35, 7
        %s489 = sand.u32 %s35, 127
        %s490 = sadd.s32 %s487, %s489
        %s491 = sld [smem:[#allocation6 + %s490]]
      $region48: #{moeut_lm_forward.13} parent=23 // pred_fallthru
        _
    $region24: #{moeut_lm_forward.13} parent=5 // pred_fallthru
      _
    %p492 = scmp.le.s32.totalorder 1, %s26
    %p493 = scmp.lt.s32.totalorder %s26, 9
    %p494 = pnand %p492, %p493
    %p495 = pneg %p494
    // Predicated region
    $region49: #{moeut_lm_forward.13} parent=5 // pred_check
      _
    $region50: #{moeut_lm_forward.13} parent=5 // pred_check_branch
      %497 = sbr.rel (%p494) target = $region52
    $region51: #{moeut_lm_forward.13} parent=5 // pred_region
      %s498 = ssub.s32 %s26, 1
      %p499 = scmp.lt.s32.totalorder %s36, 1
      %s500 = scalar_select %p499, %s36, 1
      %p501 = scmp.lt.s32.totalorder %s37, 0
      %s502 = scalar_select %p501, %s37, 0
      %s503 = sadd.s32 %s502, %s500
      %s504 = smul.addr %s503, 8
      %s505 = scalar_lea.vmem %s2, %s504
      %p506 = pneg %p73
      %p507 = pneg %p70
      %p508 = pneg %p94
      %p509 = pneg %p91
      %p510 = pneg %p115
      %p511 = pneg %p112
      %p512 = scmp.lt.s32.totalorder %s36, 1
      %s513 = scalar_select %p512, %s36, 1
      %p514 = scmp.lt.s32.totalorder %s37, 0
      %s515 = scalar_select %p514, %s37, 0
      %s516 = sadd.s32 %s515, %s513
      %s517 = smul.addr %s516, 4
      %s518 = scalar_lea.vmem %s5, %s517
      %p519 = pneg %p143
      %p520 = pneg %p140
      %s521 = sadd.s32 %s36, %s37
      %s522 = sshra.s32 %s38, 7
      %s523 = sand.u32 %s38, 127
      %s524 = sadd.s32 %s522, %s521
      %s525 = smul.u32 %s524, 128
      %s526 = sshra.s32 %s38, 7
      %s527 = sand.u32 %s38, 127
      %s528 = sadd.s32 %s525, %s527
      %s529 = sld [smem:[#allocation6 + %s528]]
      %p530 = scmp.lt.s32.totalorder %s529, 3
      %s531 = scalar_select %p530, %s529, 3
      %s532 = smul.addr %s531, 4
      %s533 = smul.addr %s532, 4
      %s534 = scalar_lea.vmem %s6, %s533
      %p535 = pneg %p187
      %p536 = pneg %p184
      %s537 = sadd.s32 %s36, %s37
      %s538 = sshra.s32 %s38, 7
      %s539 = sand.u32 %s38, 127
      %s540 = sadd.s32 %s538, %s537
      %s541 = smul.u32 %s540, 128
      %s542 = sshra.s32 %s38, 7
      %s543 = sand.u32 %s38, 127
      %s544 = sadd.s32 %s541, %s543
      %s545 = sld [smem:[#allocation6 + %s544]]
      %p546 = scmp.lt.s32.totalorder %s545, 3
      %s547 = scalar_select %p546, %s545, 3
      %s548 = scalar_lea.vmem %s7, %s547
      %p549 = pneg %p231
      %p550 = pneg %p228
      %s551 = sadd.s32 %s36, %s37
      %s552 = sshra.s32 %s38, 7
      %s553 = sand.u32 %s38, 127
      %s554 = sadd.s32 %s552, %s551
      %s555 = smul.u32 %s554, 128
      %s556 = sshra.s32 %s38, 7
      %s557 = sand.u32 %s38, 127
      %s558 = sadd.s32 %s555, %s557
      %s559 = sld [smem:[#allocation6 + %s558]]
      %p560 = scmp.lt.s32.totalorder %s559, 3
      %s561 = scalar_select %p560, %s559, 3
      %s562 = smul.addr %s561, 2
      %s563 = smul.addr %s562, 4
      %s564 = scalar_lea.vmem %s8, %s563
      %p565 = pneg %p275
      %p566 = pneg %p272
      %s567 = sadd.s32 %s36, %s37
      %s568 = sshra.s32 %s38, 7
      %s569 = sand.u32 %s38, 127
      %s570 = sadd.s32 %s568, %s567
      %s571 = smul.u32 %s570, 128
      %s572 = sshra.s32 %s38, 7
      %s573 = sand.u32 %s38, 127
      %s574 = sadd.s32 %s571, %s573
      %s575 = sld [smem:[#allocation6 + %s574]]
      %p576 = scmp.lt.s32.totalorder %s575, 3
      %s577 = scalar_select %p576, %s575, 3
      %s578 = scalar_lea.vmem %s9, %s577
      %p579 = pneg %p319
      %p580 = pneg %p316
      %p581 = pneg %p347
      %p582 = pneg %p344
      %p583 = scmp.lt.s32.totalorder %s36, 1
      %s584 = scalar_select %p583, %s36, 1
      %p585 = scmp.lt.s32.totalorder %s37, 0
      %s586 = scalar_select %p585, %s37, 0
      %s587 = sadd.s32 %s586, %s584
      %s588 = smul.addr %s587, 8
      %s589 = scalar_lea.vmem %s10, %s588
      %p590 = scmp.lt.s32.totalorder %s36, 1
      %s591 = scalar_select %p590, %s36, 1
      %p592 = scmp.lt.s32.totalorder %s37, 0
      %s593 = scalar_select %p592, %s37, 0
      %s594 = sadd.s32 %s593, %s591
      %s595 = smul.addr %s594, 8
      %s596 = scalar_lea.vmem %s2, %s595
      %p597 = scmp.lt.s32.totalorder %s36, 1
      %s598 = scalar_select %p597, %s36, 1
      %p599 = scmp.lt.s32.totalorder %s37, 0
      %s600 = scalar_select %p599, %s37, 0
      %s601 = sadd.s32 %s600, %s598
      %s602 = smul.addr %s601, 4
      %s603 = scalar_lea.vmem %s5, %s602
      %s604 = sadd.s32 %s36, %s37
      %s605 = sshra.s32 %s38, 7
      %s606 = sand.u32 %s38, 127
      %s607 = sadd.s32 %s605, %s604
      %s608 = smul.u32 %s607, 128
      %s609 = sshra.s32 %s38, 7
      %s610 = sand.u32 %s38, 127
      %s611 = sadd.s32 %s608, %s610
      %s612 = sld [smem:[#allocation6 + %s611]]
      %p613 = scmp.lt.s32.totalorder %s612, 3
      %s614 = scalar_select %p613, %s612, 3
      %s615 = smul.addr %s614, 4
      %s616 = smul.addr %s615, 4
      %s617 = scalar_lea.vmem %s6, %s616
      %s618 = sadd.s32 %s36, %s37
      %s619 = sshra.s32 %s38, 7
      %s620 = sand.u32 %s38, 127
      %s621 = sadd.s32 %s619, %s618
      %s622 = smul.u32 %s621, 128
      %s623 = sshra.s32 %s38, 7
      %s624 = sand.u32 %s38, 127
      %s625 = sadd.s32 %s622, %s624
      %s626 = sld [smem:[#allocation6 + %s625]]
      %s627 = sadd.s32 %s36, %s37
      %s628 = sshra.s32 %s38, 7
      %s629 = sand.u32 %s38, 127
      %s630 = sadd.s32 %s628, %s627
      %s631 = smul.u32 %s630, 128
      %s632 = sshra.s32 %s38, 7
      %s633 = sand.u32 %s38, 127
      %s634 = sadd.s32 %s631, %s633
      %s635 = sld [smem:[#allocation6 + %s634]]
      %p636 = scmp.lt.s32.totalorder %s635, 3
      %s637 = scalar_select %p636, %s635, 3
      %s638 = scalar_lea.vmem %s7, %s637
      %s639 = sadd.s32 %s36, %s37
      %s640 = sshra.s32 %s38, 7
      %s641 = sand.u32 %s38, 127
      %s642 = sadd.s32 %s640, %s639
      %s643 = smul.u32 %s642, 128
      %s644 = sshra.s32 %s38, 7
      %s645 = sand.u32 %s38, 127
      %s646 = sadd.s32 %s643, %s645
      %s647 = sld [smem:[#allocation6 + %s646]]
      %s648 = sadd.s32 %s36, %s37
      %s649 = sshra.s32 %s38, 7
      %s650 = sand.u32 %s38, 127
      %s651 = sadd.s32 %s649, %s648
      %s652 = smul.u32 %s651, 128
      %s653 = sshra.s32 %s38, 7
      %s654 = sand.u32 %s38, 127
      %s655 = sadd.s32 %s652, %s654
      %s656 = sld [smem:[#allocation6 + %s655]]
      %p657 = scmp.lt.s32.totalorder %s656, 3
      %s658 = scalar_select %p657, %s656, 3
      %s659 = smul.addr %s658, 2
      %s660 = smul.addr %s659, 4
      %s661 = scalar_lea.vmem %s8, %s660
      %s662 = sadd.s32 %s36, %s37
      %s663 = sshra.s32 %s38, 7
      %s664 = sand.u32 %s38, 127
      %s665 = sadd.s32 %s663, %s662
      %s666 = smul.u32 %s665, 128
      %s667 = sshra.s32 %s38, 7
      %s668 = sand.u32 %s38, 127
      %s669 = sadd.s32 %s666, %s668
      %s670 = sld [smem:[#allocation6 + %s669]]
      %s671 = sadd.s32 %s36, %s37
      %s672 = sshra.s32 %s38, 7
      %s673 = sand.u32 %s38, 127
      %s674 = sadd.s32 %s672, %s671
      %s675 = smul.u32 %s674, 128
      %s676 = sshra.s32 %s38, 7
      %s677 = sand.u32 %s38, 127
      %s678 = sadd.s32 %s675, %s677
      %s679 = sld [smem:[#allocation6 + %s678]]
      %p680 = scmp.lt.s32.totalorder %s679, 3
      %s681 = scalar_select %p680, %s679, 3
      %s682 = scalar_lea.vmem %s9, %s681
      %s683 = sadd.s32 %s36, %s37
      %s684 = sshra.s32 %s38, 7
      %s685 = sand.u32 %s38, 127
      %s686 = sadd.s32 %s684, %s683
      %s687 = smul.u32 %s686, 128
      %s688 = sshra.s32 %s38, 7
      %s689 = sand.u32 %s38, 127
      %s690 = sadd.s32 %s687, %s689
      %s691 = sld [smem:[#allocation6 + %s690]]
      %p692 = scmp.lt.s32.totalorder %s36, 1
      %s693 = scalar_select %p692, %s36, 1
      %p694 = scmp.lt.s32.totalorder %s37, 0
      %s695 = scalar_select %p694, %s37, 0
      %s696 = sadd.s32 %s695, %s693
      %s697 = smul.addr %s696, 8
      %s698 = scalar_lea.vmem %s10, %s697
      %p700 = scmp.eq.s32.totalorder %s38, 0
      // Predicated region
      $region53: #{moeut_lm_forward.13} parent=51 // pred_check
        %p701 = pneg %p700
      $region54: #{moeut_lm_forward.13} parent=51 // pred_check_branch
        %703 = sbr.rel (%p701) target = $region56
      $region55: #{moeut_lm_forward.13} parent=51 // pred_region
        %v704 = vld [vmem:[%s596] sm:$0xff]
        %v705 = vld [vmem:[%s3] sm:$0x1]
        %v706 = vld [vmem:[%s4] sm:$0x1]
        %vm707 = vcmask 261120
        %v708 = vsel %vm707, %v704, 0.0
        %709 = vadd.xlane.f32.xlu0 %v708
        %v710 = vpop.xlane.xlu0 %709
        %v711 = vrcp.pop 32.0
        %v712 = vmul.f32 %v710, %v711
        %v713 = vsub.f32 %v704, %v712
        %v714 = vmul.f32 %v713, %v713
        %v715 = vsel %vm707, %v714, 0.0
        %716 = vadd.xlane.f32.xlu0 %v715
        %v717 = vpop.xlane.xlu0 %716
        %v718 = vmul.f32 %v717, %v711
        %v719 = vadd.f32 %v718, 1e-05
        %v720 = vrsqrt.pop %v719
        %v721 = vmul.f32 %v713, %v720
        %v723 = vlaneseq
        %v724 = vshrl.u32 %v723, 7
        %v725 = vsub.s32 0, %v724
        %v726 = vrot.slane %v705, %v725
        %v728 = vmul.f32 %v721, %v726
        %v730 = vlaneseq
        %v731 = vshrl.u32 %v730, 7
        %v732 = vsub.s32 0, %v731
        %v733 = vrot.slane %v706, %v732
        %v735 = vadd.f32 %v728, %v733
        %v736 = vpack.c.bf16 %v735, %v735
        %vm737 = vcmask 257024
        %738 = vst.msk [vmem:[#allocation2] sm:$0xf] %vm737, %v736
        %739 = vst.msk [vmem:[#allocation3] sm:$0xff] %vm707, 0.0
      $region56: #{moeut_lm_forward.13} parent=51 // pred_fallthru
        _
      %s740 = sadd.s32 %s36, %s37
      %s741 = sshra.s32 %s38, 7
      %s742 = sand.u32 %s38, 127
      %s743 = sadd.s32 %s741, %s740
      %s744 = smul.u32 %s743, 128
      %s745 = sshra.s32 %s38, 7
      %s746 = sand.u32 %s38, 127
      %s747 = sadd.s32 %s744, %s746
      %s748 = sld [smem:[#allocation5 + %s747]]
      %p749 = scmp.gt.s32.totalorder %s748, 0
      // Predicated region
      $region57: #{moeut_lm_forward.13} parent=51 // pred_check
        %p750 = pneg %p749
      $region58: #{moeut_lm_forward.13} parent=51 // pred_check_branch
        %752 = sbr.rel (%p750) target = $region60
      $region59: #{moeut_lm_forward.13} parent=51 // pred_region
        %v753 = vld [vmem:[#allocation2] sm:$0xf]
        %v754 = vld [vmem:[%s617] sm:$0xf]
        %v755 = vld [vmem:[%s617 + $0x4] sm:$0xf]
        %v756 = vld [vmem:[%s617 + $0x8] sm:$0xf]
        %v757 = vld [vmem:[%s617 + $0xc] sm:$0xf]
        %v758 = vld [vmem:[%s638] sm:$0x1]
        %v760 = vlaneseq
        %v761 = vshrl.u32 %v760, 7
        %v762 = vsub.s32 0, %v761
        %v763 = vrot.slane %v758, %v762
        %v769 = vunpack.c.l.b16 %v754
        %v770 = vunpack.c.l.b16 %v755
        %v771 = vunpack.c.l.b16 %v756
        %v772 = vunpack.c.l.b16 %v757
        %v773 = vpack.c.b16 %v770, %v769
        %v774 = vpack.c.b16 %v772, %v771
        %vm777 = vcmask 261120
        %v779 = vsel %vm777, %v753, 0
        %781 = vmatprep.subr.bf16.mxu0 0
        %782 = vmatpush1.bf16.msra.mxu0 %v773
        %783 = vmatprep.subr.bf16.mxu0 0
        %784 = vmatpush1.bf16.msra.mxu0 %v774
        %785 = vmatprep.subr.bf16.mxu0 0
        %786 = vmatpush1.bf16.msra.mxu0 0
        %787 = vmatprep.subr.bf16.mxu0 0
        %788 = vmatpush1.bf16.msra.mxu0 0
        %789 = vmatprep.subr.bf16.mxu0 0
        %790 = vmatpush1.bf16.msra.mxu0 0
        %791 = vmatprep.subr.bf16.mxu0 0
        %792 = vmatpush1.bf16.msra.mxu0 0
        %793 = vmatprep.subr.bf16.mxu0 0
        %794 = vmatpush1.bf16.msra.mxu0 0
        %795 = vmatprep.subr.bf16.mxu0 0
        %796 = vmatpush1.bf16.msra.mxu0 0
        %797 = vmatprep.subr.bf16.mxu0 0
        %798 = vmatpush1.bf16.msra.mxu0 0
        %799 = vmatprep.subr.bf16.mxu0 0
        %800 = vmatpush1.bf16.msra.mxu0 0
        %801 = vmatprep.subr.bf16.mxu0 0
        %802 = vmatpush1.bf16.msra.mxu0 0
        %803 = vmatprep.subr.bf16.mxu0 0
        %804 = vmatpush1.bf16.msra.mxu0 0
        %805 = vmatprep.subr.bf16.mxu0 0
        %806 = vmatpush1.bf16.msra.mxu0 0
        %807 = vmatprep.subr.bf16.mxu0 0
        %808 = vmatpush1.bf16.msra.mxu0 0
        %809 = vmatprep.subr.bf16.mxu0 0
        %810 = vmatpush1.bf16.msra.mxu0 0
        %811 = vmatprep.subr.bf16.mxu0 0
        %812 = vmatpush1.bf16.msra.mxu0 0
        %813 = vmatprep.mubr.bf16.mxu0 0
        %814 = vmatmul.mubr.bf16.gmra.mrb[0].mxu0 %v779
        %v815 = vpop.f32.mrb[0].mxu0
        %v816 = vadd.f32 %v763, %v815
        %v817 = vpop.f32.mrb[0].mxu0
        %v818 = vpop.f32.mrb[0].mxu0
        %v819 = vpop.f32.mrb[0].mxu0
        %820 = vdwg.mxu0
        %v821 = vmax.f32 %v816, 0.0
        %v822 = vpack.c.bf16 %v821, %v821
        %v823 = vld [vmem:[%s661] sm:$0xf]
        %v824 = vld [vmem:[%s661 + $0x4] sm:$0xf]
        %v825 = vld [vmem:[%s682] sm:$0x1]
        %v827 = vlaneseq
        %v828 = vshrl.u32 %v827, 7
        %v829 = vsub.s32 0, %v828
        %v830 = vrot.slane %v825, %v829
        %v834 = vunpack.c.l.b16 %v823
        %v835 = vunpack.c.l.b16 %v824
        %v836 = vpack.c.b16 %v835, %v834
        %vm838 = vcmask 130048
        %v840 = vsel %vm838, %v822, 0
        %842 = vmatprep.subr.bf16.mxu0 0
        %843 = vmatpush1.bf16.msra.mxu0 %v836
        %844 = vmatprep.subr.bf16.mxu0 0
        %845 = vmatpush1.bf16.msra.mxu0 0
        %846 = vmatprep.subr.bf16.mxu0 0
        %847 = vmatpush1.bf16.msra.mxu0 0
        %848 = vmatprep.subr.bf16.mxu0 0
        %849 = vmatpush1.bf16.msra.mxu0 0
        %850 = vmatprep.subr.bf16.mxu0 0
        %851 = vmatpush1.bf16.msra.mxu0 0
        %852 = vmatprep.subr.bf16.mxu0 0
        %853 = vmatpush1.bf16.msra.mxu0 0
        %854 = vmatprep.subr.bf16.mxu0 0
        %855 = vmatpush1.bf16.msra.mxu0 0
        %856 = vmatprep.subr.bf16.mxu0 0
        %857 = vmatpush1.bf16.msra.mxu0 0
        %858 = vmatprep.subr.bf16.mxu0 0
        %859 = vmatpush1.bf16.msra.mxu0 0
        %860 = vmatprep.subr.bf16.mxu0 0
        %861 = vmatpush1.bf16.msra.mxu0 0
        %862 = vmatprep.subr.bf16.mxu0 0
        %863 = vmatpush1.bf16.msra.mxu0 0
        %864 = vmatprep.subr.bf16.mxu0 0
        %865 = vmatpush1.bf16.msra.mxu0 0
        %866 = vmatprep.subr.bf16.mxu0 0
        %867 = vmatpush1.bf16.msra.mxu0 0
        %868 = vmatprep.subr.bf16.mxu0 0
        %869 = vmatpush1.bf16.msra.mxu0 0
        %870 = vmatprep.subr.bf16.mxu0 0
        %871 = vmatpush1.bf16.msra.mxu0 0
        %872 = vmatprep.subr.bf16.mxu0 0
        %873 = vmatpush1.bf16.msra.mxu0 0
        %874 = vmatprep.mubr.bf16.mxu0 0
        %875 = vmatmul.mubr.bf16.gmra.mrb[0].mxu0 %v840
        %v876 = vpop.f32.mrb[0].mxu0
        %v877 = vadd.f32 %v830, %v876
        %v878 = vpop.f32.mrb[0].mxu0
        %v879 = vpop.f32.mrb[0].mxu0
        %v880 = vpop.f32.mrb[0].mxu0
        %881 = vdwg.mxu0
        %v882 = vld [vmem:[%s603] sm:$0xf]
        %v883 = vunpack.c.l.bf16 %v882
        %v884 = vlaneseq
        %v885 = vand.u32 %v884, 127
        %v886 = vstv %s38
        %vm887 = vcmp.eq.s32.totalorder %v885, %v886
        %v888 = vsel %vm887, %v883, 0.0
        %vm889 = vcmask 31744
        %v890 = vsel %vm889, %v888, 0.0
        %891 = vadd.xlane.f32.xlu0 %v890
        %v892 = vpop.xlane.xlu0 %891
        %v893 = vld [vmem:[#allocation3] sm:$0xff]
        %v894 = vmul.f32 %v892, %v877
        %v895 = vadd.f32 %v893, %v894
        %896 = vst.msk [vmem:[#allocation3] sm:$0xff] %vm777, %v895
      $region60: #{moeut_lm_forward.13} parent=51 // pred_fallthru
        _
      %p897 = scmp.eq.s32.totalorder %s38, 3
      // Predicated region
      $region61: #{moeut_lm_forward.13} parent=51 // pred_check
        %p898 = pneg %p897
      $region62: #{moeut_lm_forward.13} parent=51 // pred_check_branch
        %900 = sbr.rel (%p898) target = $region64
      $region63: #{moeut_lm_forward.13} parent=51 // pred_region
        %v901 = vld [vmem:[%s596] sm:$0xff]
        %v902 = vld [vmem:[#allocation3] sm:$0xff]
        %v903 = vadd.f32 %v901, %v902
        %vm904 = vcmask 261120
        %905 = vst.msk [vmem:[%s698] sm:$0xff] %vm904, %v903
      $region64: #{moeut_lm_forward.13} parent=51 // pred_fallthru
        _
      %p906 = scmp.lt.s32.totalorder %s36, 1
      %s907 = scalar_select %p906, %s36, 1
      %p908 = scmp.lt.s32.totalorder %s37, 0
      %s909 = scalar_select %p908, %s37, 0
      %s910 = sadd.s32 %s909, %s907
      %s911 = smul.addr %s910, 8
      %s912 = scalar_lea.vmem %s10, %s911
      // Predicated region
      $region65: #{moeut_lm_forward.13} parent=51 // pred_check
        %p913 = pneg %p344
      $region66: #{moeut_lm_forward.13} parent=51 // pred_check_branch
        %915 = sbr.rel (%p913) target = $region68
      $region67: #{moeut_lm_forward.13} parent=51 // pred_region
        _
      $region68: #{moeut_lm_forward.13} parent=51 // pred_fallthru
        _
    $region52: #{moeut_lm_forward.13} parent=5 // pred_fallthru
      _
    %p916 = scmp.le.s32.totalorder 2, %s26
    // Predicated region
    $region69: #{moeut_lm_forward.13} parent=5 // pred_check
      %p917 = pneg %p916
    $region70: #{moeut_lm_forward.13} parent=5 // pred_check_branch
      %919 = sbr.rel (%p917) target = $region72
    $region71: #{moeut_lm_forward.13} parent=5 // pred_region
      %s920 = ssub.s32 %s26, 2
      // Predicated region
      $region73: #{moeut_lm_forward.13} parent=71 // pred_check
        %p921 = pneg %p350
      $region74: #{moeut_lm_forward.13} parent=71 // pred_check_branch
        %923 = sbr.rel (%p921) target = $region76
      $region75: #{moeut_lm_forward.13} parent=71 // pred_region
        %p924 = scmp.lt.s32.totalorder %s39, 1
        %s925 = scalar_select %p924, %s39, 1
        %p926 = scmp.lt.s32.totalorder %s40, 0
        %s927 = scalar_select %p926, %s40, 0
        %s928 = sadd.s32 %s927, %s925
        %s929 = smul.addr %s928, 8
        %s930 = scalar_lea.vmem %s10, %s929
      $region76: #{moeut_lm_forward.13} parent=71 // pred_fallthru
        _
    $region72: #{moeut_lm_forward.13} parent=5 // pred_fallthru
      _
  $region6: #{moeut_lm_forward.13} parent=0 // loop_footer
    %s30 = sadd.s32 1, %s26
  $region7: #{moeut_lm_forward.13} parent=0 // loop_footer_branch
    %25 = sbr.rel target = $region3
  $region8: #{moeut_lm_forward.13} parent=0 // loop_exit
    _

</llo_original>
